<compile_context>
chip_gen: v7x
topology: tpu7x:2x2x1
jax: 0.10.0
libtpu: 0.0.40
codegen_flags: <defaults>
</compile_context>

<pallas_src>
import functools

import jax
import jax.numpy as jnp
from jax.experimental import pallas as pl
from jax.experimental.pallas import tpu as pltpu


# --------------------------------------------------------------------------
# Pallas kernel: full forward pass for one batch tile.
# --------------------------------------------------------------------------
def mlp_mae_kernel(x_ref, w0_ref, w_stack_ref, b_stack_ref,
                   w_fin_ref, b_fin_ref, out_ref):
    # x_ref:       (tile_b, F)    f32  (natural feature width, no wrapper pad)
    # w0_ref:      (F, Hp)        bf16 (layer-0 weight, N zero-padded H -> Hp)
    # w_stack_ref: (L-1, Hp, Hp)  bf16 (hidden layers 1..L-1, zero-padded)
    # b_stack_ref: (L, 1, Hp)     f32  (all L hidden biases, zero-padded)
    # w_fin_ref:   (Hp, OUT)      bf16 (final head, N zero-padded F -> OUT=128)
    # b_fin_ref:   (1, OUT)       f32
    # out_ref:     (tile_b, OUT)  f32  (lane-dense; wrapper slices [:, :F])

    # Layer 0: K = F (small), N = Hp (lane-dense).
    z = jnp.dot(x_ref[...].astype(jnp.bfloat16), w0_ref[...],
                preferred_element_type=jnp.float32)          # MXU, f32 acc
    h = jnp.maximum(z + b_stack_ref[0], 0.0)                 # bias+ReLU f32 VPU

    # Layers 1..L-1: Hp x Hp matmuls, static unroll.
    num_rest = w_stack_ref.shape[0]
    for l in range(num_rest):
        z = jnp.dot(h.astype(jnp.bfloat16), w_stack_ref[l],
                    preferred_element_type=jnp.float32)
        h = jnp.maximum(z + b_stack_ref[l + 1], 0.0)

    # Final head: lane-dense (Hp, OUT) -> unmasked full-lane stores.
    out_ref[...] = (jnp.dot(h.astype(jnp.bfloat16), w_fin_ref[...],
                            preferred_element_type=jnp.float32)
                    + b_fin_ref[...]).astype(out_ref.dtype)


# --------------------------------------------------------------------------
# Parameter construction (deterministic, PyTorch-default-style init)
# --------------------------------------------------------------------------
def init_params(key, num_features, hidden_dim=64, num_layers=3):
    dims = []
    in_dim = num_features
    for _ in range(num_layers):          # encoder
        dims.append((in_dim, hidden_dim))
        in_dim = hidden_dim
    for _ in range(num_layers):          # decoder hidden
        dims.append((in_dim, hidden_dim))
        in_dim = hidden_dim

    params = []
    for (din, dout) in dims:
        key, k_w, k_b = jax.random.split(key, 3)
        bound = 1.0 / jnp.sqrt(din)
        W = jax.random.uniform(k_w, (din, dout), jnp.float32, -bound, bound)
        b = jax.random.uniform(k_b, (dout,), jnp.float32, -bound, bound)
        gamma = jnp.ones((dout,), jnp.float32)
        beta = jnp.zeros((dout,), jnp.float32)
        mean = jnp.zeros((dout,), jnp.float32)
        var = jnp.ones((dout,), jnp.float32)
        params.append((W, b, gamma, beta, mean, var))

    din, dout = hidden_dim, num_features
    key, k_w, k_b = jax.random.split(key, 3)
    bound = 1.0 / jnp.sqrt(din)
    W_f = jax.random.uniform(k_w, (din, dout), jnp.float32, -bound, bound)
    b_f = jax.random.uniform(k_b, (dout,), jnp.float32, -bound, bound)
    return params, (W_f, b_f)


def fold_bn(params, eps=1e-5):
    """Fold eval-mode BatchNorm into the preceding Linear: x@W_eff + b_eff."""
    folded = []
    for (W, b, gamma, beta, mean, var) in params:
        scale = gamma / jnp.sqrt(var + eps)
        W_eff = W * scale[None, :]
        b_eff = (b - mean) * scale + beta
        folded.append((W_eff, b_eff))
    return folded


def _round_up(n, m):
    return ((n + m - 1) // m) * m


def pack_params(folded, final_w, final_b, hidden_dim, num_features):
    """Pack the L hidden (W_eff, b_eff) pairs + final head into dense, lane-
    aligned arrays.  The hidden dim is zero-padded to Hp = roundup(H, 128) and
    the final head's output dim to OUT = roundup(F, 128).  Padded channels
    carry exact zeros through every ReLU layer, so the math is unchanged."""
    H = hidden_dim
    F = num_features
    Hp = _round_up(H, 128)
    OUT = _round_up(F, 128)
    L = len(folded)

    W0, b0 = folded[0]                                        # (F, H), (H,)
    w0 = jnp.zeros((F, Hp), jnp.float32).at[:, :H].set(W0)

    w_stack = jnp.zeros((L - 1, Hp, Hp), jnp.float32)
    b_stack = jnp.zeros((L, 1, Hp), jnp.float32)
    b_stack = b_stack.at[0, 0, :H].set(b0.reshape(-1))
    for l in range(1, L):
        W, b = folded[l]
        w_stack = w_stack.at[l - 1, :H, :H].set(W)
        b_stack = b_stack.at[l, 0, :H].set(b.reshape(-1))

    w_fin = jnp.zeros((Hp, OUT), jnp.float32).at[:H, :F].set(final_w)
    b_fin = jnp.zeros((1, OUT), jnp.float32).at[0, :F].set(final_b.reshape(-1))

    return (w0.astype(jnp.bfloat16),
            w_stack.astype(jnp.bfloat16),
            b_stack,
            w_fin.astype(jnp.bfloat16),
            b_fin)


def _num_tensorcores():
    """Grid steps = TensorCores per chip: 1 on v5e/v6e, 2 on v7x."""
    try:
        kind = jax.devices()[0].device_kind.lower()
    except Exception:
        return 1
    return 2 if "v7" in kind else 1


# --------------------------------------------------------------------------
# Wrapper: pallas_call with a batch-tiled grid, packed weights resident.
# --------------------------------------------------------------------------
@functools.partial(jax.jit, static_argnames=("num_grid_steps",))
def water_quality_mlp_mae(x, w0, w_stack, b_stack, w_fin, b_fin, *,
                          num_grid_steps=1):
    B, F = x.shape
    Hp = w0.shape[1]
    Lm1 = w_stack.shape[0]
    L = b_stack.shape[0]
    OUT = w_fin.shape[1]

    # One grid step per TensorCore; tile padded to a sublane multiple.
    tile_b = _round_up(-(-B // num_grid_steps), 8)
    Bp = tile_b * num_grid_steps
    if Bp != B:
        x = jnp.pad(x, ((0, Bp - B), (0, 0)))

    flops = 2 * Bp * (F * Hp + Lm1 * Hp * Hp + Hp * OUT)
    bytes_accessed = (Bp * F * 4 + Bp * OUT * 4
                      + w0.size * 2 + w_stack.size * 2 + b_stack.size * 4
                      + w_fin.size * 2 + b_fin.size * 4)
    cost = pl.CostEstimate(flops=flops, transcendentals=0,
                           bytes_accessed=bytes_accessed)

    out = pl.pallas_call(
        mlp_mae_kernel,
        out_shape=jax.ShapeDtypeStruct((Bp, OUT), jnp.float32),
        grid_spec=pltpu.PrefetchScalarGridSpec(
            num_scalar_prefetch=0,
            grid=(num_grid_steps,),
            in_specs=[
                pl.BlockSpec((tile_b, F), lambda i: (i, 0)),        # x tile
                pl.BlockSpec((F, Hp), lambda i: (0, 0)),            # layer-0 W
                pl.BlockSpec((Lm1, Hp, Hp), lambda i: (0, 0, 0)),   # hidden Ws
                pl.BlockSpec((L, 1, Hp), lambda i: (0, 0, 0)),      # hidden bs
                pl.BlockSpec((Hp, OUT), lambda i: (0, 0)),          # final W
                pl.BlockSpec((1, OUT), lambda i: (0, 0)),           # final b
            ],
            out_specs=pl.BlockSpec((tile_b, OUT), lambda i: (i, 0)),
        ),
        compiler_params=pltpu.CompilerParams(
            dimension_semantics=("parallel",)),
        cost_estimate=cost,
    )(x, w0, w_stack, b_stack, w_fin, b_fin)
    return out[:B, :F]


# --------------------------------------------------------------------------
# Pure-JAX references (for sanity checks)
# --------------------------------------------------------------------------
def reference_forward_f32(x, folded, final_w, final_b):
    h = x
    for (W, b) in folded:
        h = jnp.maximum(h @ W + b.reshape(1, -1), 0.0)
    return h @ final_w + final_b.reshape(1, -1)


def reference_forward_bf16(x, w0, w_stack, b_stack, w_fin, b_fin):
    """Emulates the kernel's numerics (bf16 operands, f32 accumulate)."""
    z = jnp.dot(x.astype(jnp.bfloat16), w0, preferred_element_type=jnp.float32)
    h = jnp.maximum(z + b_stack[0], 0.0)
    for l in range(w_stack.shape[0]):
        z = jnp.dot(h.astype(jnp.bfloat16), w_stack[l],
                    preferred_element_type=jnp.float32)
        h = jnp.maximum(z + b_stack[l + 1], 0.0)
    return (jnp.dot(h.astype(jnp.bfloat16), w_fin,
                    preferred_element_type=jnp.float32) + b_fin)


if __name__ == "__main__":
    key = jax.random.PRNGKey(0)
    key, k_x, k_p = jax.random.split(key, 3)

    B = 512          # small batch; 1 grid step on v5e/v6e, 2 on v7x
    F = 16           # num_features
    H = 64           # hidden_dim
    NUM_LAYERS = 3

    x = jax.random.normal(k_x, (B, F), jnp.float32)

    params, (final_w, final_b) = init_params(k_p, F, H, NUM_LAYERS)
    folded = fold_bn(params)                      # BN folded (eval mode)
    w0, w_stack, b_stack, w_fin, b_fin = pack_params(folded, final_w, final_b, H, F)
    # TODO(synk): training-mode BatchNorm (batch statistics) and stochastic
    # Dropout are not reproduced; inference semantics implemented.

    n_steps = _num_tensorcores()
    out = water_quality_mlp_mae(x, w0, w_stack, b_stack, w_fin, b_fin,
                                num_grid_steps=n_steps)
    out = jax.block_until_ready(out)
    assert out.shape == (B, F)

    # Tight check against a bf16-emulating reference (same numerics as kernel).
    ref_bf16 = reference_forward_bf16(x, w0, w_stack, b_stack, w_fin, b_fin)
    assert jnp.allclose(out, ref_bf16[:, :F], atol=1e-3, rtol=1e-3)

    # Loose check against the full-f32 semantics of the original module
    # (bf16 weight quantization bounds the deviation).
    ref_f32 = reference_forward_f32(x, folded, final_w, final_b)
    assert jnp.allclose(out, ref_f32, atol=5e-2, rtol=5e-2)

    print("KERNEL_OK")
</pallas_src>

<mosaic_0001>
module attributes {stable_mosaic.version = 11 : i64} {
  func.func @mlp_mae_kernel(%arg0: i32, %arg1: memref<512x16xf32, #tpu.memory_space<vmem>>, %arg2: memref<16x128xbf16, #tpu.memory_space<vmem>>, %arg3: memref<5x128x128xbf16, #tpu.memory_space<vmem>>, %arg4: memref<6x1x128xf32, #tpu.memory_space<vmem>>, %arg5: memref<128x128xbf16, #tpu.memory_space<vmem>>, %arg6: memref<1x128xf32, #tpu.memory_space<vmem>>, %arg7: memref<512x128xf32, #tpu.memory_space<vmem>>) attributes {dimension_semantics = [#tpu.dimension_semantics<parallel>], iteration_bounds = array<i64: 1>, scalar_prefetch = 0 : i64, scratch_operands = 0 : i64, tpu.core_type = #tpu.core_type<tc>, window_params = [{transform_indices = @transform_0, window_bounds = array<i64: 512, 16>}, {pipeline_mode = #tpu.pipeline_mode<synchronous>, transform_indices = @transform_1, window_bounds = array<i64: 16, 128>}, {pipeline_mode = #tpu.pipeline_mode<synchronous>, transform_indices = @transform_2, window_bounds = array<i64: 5, 128, 128>}, {pipeline_mode = #tpu.pipeline_mode<synchronous>, transform_indices = @transform_3, window_bounds = array<i64: 6, 1, 128>}, {pipeline_mode = #tpu.pipeline_mode<synchronous>, transform_indices = @transform_4, window_bounds = array<i64: 128, 128>}, {pipeline_mode = #tpu.pipeline_mode<synchronous>, transform_indices = @transform_5, window_bounds = array<i64: 1, 128>}, {transform_indices = @transform_6, window_bounds = array<i64: 512, 128>}]} {
    %c0 = arith.constant 0 : index
    %c0_0 = arith.constant 0 : index
    %0 = vector.load %arg1[%c0, %c0_0] : memref<512x16xf32, #tpu.memory_space<vmem>>, vector<512x16xf32>
    %1 = arith.truncf %0 : vector<512x16xf32> to vector<512x16xbf16>
    %c0_1 = arith.constant 0 : index
    %c0_2 = arith.constant 0 : index
    %2 = vector.load %arg2[%c0_1, %c0_2] : memref<16x128xbf16, #tpu.memory_space<vmem>>, vector<16x128xbf16>
    %cst = arith.constant dense<0.000000e+00> : vector<512x128xf32>
    %3 = tpu.matmul %1, %2, %cst {dimension_numbers = #tpu.dot_dimension_numbers<[1], [0], [0], [1], [0, 0, 1, 1], [], []>} : vector<512x16xbf16>, vector<16x128xbf16>, vector<512x128xf32> -> vector<512x128xf32>
    %c0_3 = arith.constant 0 : index
    %c0_4 = arith.constant 0 : index
    %c0_5 = arith.constant 0 : index
    %4 = vector.load %arg4[%c0_3, %c0_4, %c0_5] : memref<6x1x128xf32, #tpu.memory_space<vmem>>, vector<1x1x128xf32>
    %5 = vector.shape_cast %4 : vector<1x1x128xf32> to vector<1x128xf32>
    %6 = vector.broadcast %5 : vector<1x128xf32> to vector<512x128xf32>
    %7 = arith.addf %3, %6 : vector<512x128xf32>
    %cst_6 = arith.constant 0.000000e+00 : f32
    %8 = vector.broadcast %cst_6 : f32 to vector<512x128xf32>
    %9 = arith.maximumf %7, %8 : vector<512x128xf32>
    %10 = arith.truncf %9 : vector<512x128xf32> to vector<512x128xbf16>
    %c0_7 = arith.constant 0 : index
    %c0_8 = arith.constant 0 : index
    %c0_9 = arith.constant 0 : index
    %11 = vector.load %arg3[%c0_7, %c0_8, %c0_9] : memref<5x128x128xbf16, #tpu.memory_space<vmem>>, vector<1x128x128xbf16>
    %12 = vector.shape_cast %11 : vector<1x128x128xbf16> to vector<128x128xbf16>
    %cst_10 = arith.constant dense<0.000000e+00> : vector<512x128xf32>
    %13 = tpu.matmul %10, %12, %cst_10 {dimension_numbers = #tpu.dot_dimension_numbers<[1], [0], [0], [1], [0, 0, 1, 1], [], []>} : vector<512x128xbf16>, vector<128x128xbf16>, vector<512x128xf32> -> vector<512x128xf32>
    %c1 = arith.constant 1 : index
    %c0_11 = arith.constant 0 : index
    %c0_12 = arith.constant 0 : index
    %14 = vector.load %arg4[%c1, %c0_11, %c0_12] : memref<6x1x128xf32, #tpu.memory_space<vmem>>, vector<1x1x128xf32>
    %15 = vector.shape_cast %14 : vector<1x1x128xf32> to vector<1x128xf32>
    %16 = vector.broadcast %15 : vector<1x128xf32> to vector<512x128xf32>
    %17 = arith.addf %13, %16 : vector<512x128xf32>
    %cst_13 = arith.constant 0.000000e+00 : f32
    %18 = vector.broadcast %cst_13 : f32 to vector<512x128xf32>
    %19 = arith.maximumf %17, %18 : vector<512x128xf32>
    %20 = arith.truncf %19 : vector<512x128xf32> to vector<512x128xbf16>
    %c1_14 = arith.constant 1 : index
    %c0_15 = arith.constant 0 : index
    %c0_16 = arith.constant 0 : index
    %21 = vector.load %arg3[%c1_14, %c0_15, %c0_16] : memref<5x128x128xbf16, #tpu.memory_space<vmem>>, vector<1x128x128xbf16>
    %22 = vector.shape_cast %21 : vector<1x128x128xbf16> to vector<128x128xbf16>
    %cst_17 = arith.constant dense<0.000000e+00> : vector<512x128xf32>
    %23 = tpu.matmul %20, %22, %cst_17 {dimension_numbers = #tpu.dot_dimension_numbers<[1], [0], [0], [1], [0, 0, 1, 1], [], []>} : vector<512x128xbf16>, vector<128x128xbf16>, vector<512x128xf32> -> vector<512x128xf32>
    %c2 = arith.constant 2 : index
    %c0_18 = arith.constant 0 : index
    %c0_19 = arith.constant 0 : index
    %24 = vector.load %arg4[%c2, %c0_18, %c0_19] : memref<6x1x128xf32, #tpu.memory_space<vmem>>, vector<1x1x128xf32>
    %25 = vector.shape_cast %24 : vector<1x1x128xf32> to vector<1x128xf32>
    %26 = vector.broadcast %25 : vector<1x128xf32> to vector<512x128xf32>
    %27 = arith.addf %23, %26 : vector<512x128xf32>
    %cst_20 = arith.constant 0.000000e+00 : f32
    %28 = vector.broadcast %cst_20 : f32 to vector<512x128xf32>
    %29 = arith.maximumf %27, %28 : vector<512x128xf32>
    %30 = arith.truncf %29 : vector<512x128xf32> to vector<512x128xbf16>
    %c2_21 = arith.constant 2 : index
    %c0_22 = arith.constant 0 : index
    %c0_23 = arith.constant 0 : index
    %31 = vector.load %arg3[%c2_21, %c0_22, %c0_23] : memref<5x128x128xbf16, #tpu.memory_space<vmem>>, vector<1x128x128xbf16>
    %32 = vector.shape_cast %31 : vector<1x128x128xbf16> to vector<128x128xbf16>
    %cst_24 = arith.constant dense<0.000000e+00> : vector<512x128xf32>
    %33 = tpu.matmul %30, %32, %cst_24 {dimension_numbers = #tpu.dot_dimension_numbers<[1], [0], [0], [1], [0, 0, 1, 1], [], []>} : vector<512x128xbf16>, vector<128x128xbf16>, vector<512x128xf32> -> vector<512x128xf32>
    %c3 = arith.constant 3 : index
    %c0_25 = arith.constant 0 : index
    %c0_26 = arith.constant 0 : index
    %34 = vector.load %arg4[%c3, %c0_25, %c0_26] : memref<6x1x128xf32, #tpu.memory_space<vmem>>, vector<1x1x128xf32>
    %35 = vector.shape_cast %34 : vector<1x1x128xf32> to vector<1x128xf32>
    %36 = vector.broadcast %35 : vector<1x128xf32> to vector<512x128xf32>
    %37 = arith.addf %33, %36 : vector<512x128xf32>
    %cst_27 = arith.constant 0.000000e+00 : f32
    %38 = vector.broadcast %cst_27 : f32 to vector<512x128xf32>
    %39 = arith.maximumf %37, %38 : vector<512x128xf32>
    %40 = arith.truncf %39 : vector<512x128xf32> to vector<512x128xbf16>
    %c3_28 = arith.constant 3 : index
    %c0_29 = arith.constant 0 : index
    %c0_30 = arith.constant 0 : index
    %41 = vector.load %arg3[%c3_28, %c0_29, %c0_30] : memref<5x128x128xbf16, #tpu.memory_space<vmem>>, vector<1x128x128xbf16>
    %42 = vector.shape_cast %41 : vector<1x128x128xbf16> to vector<128x128xbf16>
    %cst_31 = arith.constant dense<0.000000e+00> : vector<512x128xf32>
    %43 = tpu.matmul %40, %42, %cst_31 {dimension_numbers = #tpu.dot_dimension_numbers<[1], [0], [0], [1], [0, 0, 1, 1], [], []>} : vector<512x128xbf16>, vector<128x128xbf16>, vector<512x128xf32> -> vector<512x128xf32>
    %c4 = arith.constant 4 : index
    %c0_32 = arith.constant 0 : index
    %c0_33 = arith.constant 0 : index
    %44 = vector.load %arg4[%c4, %c0_32, %c0_33] : memref<6x1x128xf32, #tpu.memory_space<vmem>>, vector<1x1x128xf32>
    %45 = vector.shape_cast %44 : vector<1x1x128xf32> to vector<1x128xf32>
    %46 = vector.broadcast %45 : vector<1x128xf32> to vector<512x128xf32>
    %47 = arith.addf %43, %46 : vector<512x128xf32>
    %cst_34 = arith.constant 0.000000e+00 : f32
    %48 = vector.broadcast %cst_34 : f32 to vector<512x128xf32>
    %49 = arith.maximumf %47, %48 : vector<512x128xf32>
    %50 = arith.truncf %49 : vector<512x128xf32> to vector<512x128xbf16>
    %c4_35 = arith.constant 4 : index
    %c0_36 = arith.constant 0 : index
    %c0_37 = arith.constant 0 : index
    %51 = vector.load %arg3[%c4_35, %c0_36, %c0_37] : memref<5x128x128xbf16, #tpu.memory_space<vmem>>, vector<1x128x128xbf16>
    %52 = vector.shape_cast %51 : vector<1x128x128xbf16> to vector<128x128xbf16>
    %cst_38 = arith.constant dense<0.000000e+00> : vector<512x128xf32>
    %53 = tpu.matmul %50, %52, %cst_38 {dimension_numbers = #tpu.dot_dimension_numbers<[1], [0], [0], [1], [0, 0, 1, 1], [], []>} : vector<512x128xbf16>, vector<128x128xbf16>, vector<512x128xf32> -> vector<512x128xf32>
    %c5 = arith.constant 5 : index
    %c0_39 = arith.constant 0 : index
    %c0_40 = arith.constant 0 : index
    %54 = vector.load %arg4[%c5, %c0_39, %c0_40] : memref<6x1x128xf32, #tpu.memory_space<vmem>>, vector<1x1x128xf32>
    %55 = vector.shape_cast %54 : vector<1x1x128xf32> to vector<1x128xf32>
    %56 = vector.broadcast %55 : vector<1x128xf32> to vector<512x128xf32>
    %57 = arith.addf %53, %56 : vector<512x128xf32>
    %cst_41 = arith.constant 0.000000e+00 : f32
    %58 = vector.broadcast %cst_41 : f32 to vector<512x128xf32>
    %59 = arith.maximumf %57, %58 : vector<512x128xf32>
    %60 = arith.truncf %59 : vector<512x128xf32> to vector<512x128xbf16>
    %c0_42 = arith.constant 0 : index
    %c0_43 = arith.constant 0 : index
    %61 = vector.load %arg5[%c0_42, %c0_43] : memref<128x128xbf16, #tpu.memory_space<vmem>>, vector<128x128xbf16>
    %cst_44 = arith.constant dense<0.000000e+00> : vector<512x128xf32>
    %62 = tpu.matmul %60, %61, %cst_44 {dimension_numbers = #tpu.dot_dimension_numbers<[1], [0], [0], [1], [0, 0, 1, 1], [], []>} : vector<512x128xbf16>, vector<128x128xbf16>, vector<512x128xf32> -> vector<512x128xf32>
    %c0_45 = arith.constant 0 : index
    %c0_46 = arith.constant 0 : index
    %63 = vector.load %arg6[%c0_45, %c0_46] : memref<1x128xf32, #tpu.memory_space<vmem>>, vector<1x128xf32>
    %64 = vector.broadcast %63 : vector<1x128xf32> to vector<512x128xf32>
    %65 = arith.addf %62, %64 : vector<512x128xf32>
    %c0_47 = arith.constant 0 : index
    %c0_48 = arith.constant 0 : index
    %66 = vector.load %arg7[%c0_47, %c0_48] : memref<512x128xf32, #tpu.memory_space<vmem>>, vector<512x128xf32>
    tpu.vector_store %arg7[%c0_47, %c0_48], %65 {strides = array<i32>} : memref<512x128xf32, #tpu.memory_space<vmem>>, vector<512x128xf32>,
    return
  }
  func.func @transform_0(%arg0: i32) -> (i32, i32) {
    %c0_i32 = arith.constant 0 : i32
    %c0_i32_0 = arith.constant 0 : i32
    return %arg0, %c0_i32 : i32, i32
  }
  func.func @transform_1(%arg0: i32) -> (i32, i32) {
    %c0_i32 = arith.constant 0 : i32
    %c0_i32_0 = arith.constant 0 : i32
    %c0_i32_1 = arith.constant 0 : i32
    return %c0_i32, %c0_i32_0 : i32, i32
  }
  func.func @transform_2(%arg0: i32) -> (i32, i32, i32) {
    %c0_i32 = arith.constant 0 : i32
    %c0_i32_0 = arith.constant 0 : i32
    %c0_i32_1 = arith.constant 0 : i32
    %c0_i32_2 = arith.constant 0 : i32
    return %c0_i32, %c0_i32_0, %c0_i32_1 : i32, i32, i32
  }
  func.func @transform_3(%arg0: i32) -> (i32, i32, i32) {
    %c0_i32 = arith.constant 0 : i32
    %c0_i32_0 = arith.constant 0 : i32
    %c0_i32_1 = arith.constant 0 : i32
    %c0_i32_2 = arith.constant 0 : i32
    return %c0_i32, %c0_i32_0, %c0_i32_1 : i32, i32, i32
  }
  func.func @transform_4(%arg0: i32) -> (i32, i32) {
    %c0_i32 = arith.constant 0 : i32
    %c0_i32_0 = arith.constant 0 : i32
    %c0_i32_1 = arith.constant 0 : i32
    return %c0_i32, %c0_i32_0 : i32, i32
  }
  func.func @transform_5(%arg0: i32) -> (i32, i32) {
    %c0_i32 = arith.constant 0 : i32
    %c0_i32_0 = arith.constant 0 : i32
    %c0_i32_1 = arith.constant 0 : i32
    return %c0_i32, %c0_i32_0 : i32, i32
  }
  func.func @transform_6(%arg0: i32) -> (i32, i32) {
    %c0_i32 = arith.constant 0 : i32
    %c0_i32_0 = arith.constant 0 : i32
    return %arg0, %c0_i32 : i32, i32
  }
}

</mosaic_0001>

<llo_original>
// kernel: water_quality_mlp_mae.1
$region0: #{water_quality_mlp_mae.1}
  #allocation0 [shape = 'u32[]', space=smem, size = 0x4, offset = 0x4, fixed_abs, tag = 'smem constant byte address 0x4 - core index']
  #allocation1 [shape = 'u32[144,128]{1,0:T(1,128)}', space=vmem, size = 0x12000, scoped, tag = 'internal scratch']
  %s0 = inlined_call_operand.vmem [shape: f32[512,16], index: 0, kind: input, shape index: {}]
  %s1 = inlined_call_operand.vmem [shape: bf16[16,128], index: 1, kind: input, shape index: {}]
  %s2 = inlined_call_operand.vmem [shape: bf16[5,128,128], index: 2, kind: input, shape index: {}]
  %s3 = inlined_call_operand.vmem [shape: f32[6,1,128], index: 3, kind: input, shape index: {}]
  %s4 = inlined_call_operand.vmem [shape: bf16[128,128], index: 4, kind: input, shape index: {}]
  %s5 = inlined_call_operand.vmem [shape: f32[1,128], index: 5, kind: input, shape index: {}]
  %s6 = inlined_call_operand.vmem [shape: f32[512,128], index: 6, kind: output, shape index: {}]
  %s7 = sld [smem:[#allocation0]]
  $region34: #{water_quality_mlp_mae.1} parent=0
    _
  %s9 = ssub.s32 1, %s7
  %s10 = scalar_select 0, %s9, %s7
  // Predicated region
  $region2: #{water_quality_mlp_mae.1} parent=0 // pred_check
    _
  $region3: #{water_quality_mlp_mae.1} parent=0 // pred_check_branch
    %12 = sbr.rel (0) target = $region5
  $region4: #{water_quality_mlp_mae.1} parent=0 // pred_region
    _
  $region5: #{water_quality_mlp_mae.1} parent=0 // pred_fallthru
    _
  // Predicated region
  $region6: #{water_quality_mlp_mae.1} parent=0 // pred_check
    _
  $region7: #{water_quality_mlp_mae.1} parent=0 // pred_check_branch
    %14 = sbr.rel (0) target = $region9
  $region8: #{water_quality_mlp_mae.1} parent=0 // pred_region
    _
  $region9: #{water_quality_mlp_mae.1} parent=0 // pred_fallthru
    _
  // Predicated region
  $region10: #{water_quality_mlp_mae.1} parent=0 // pred_check
    _
  $region11: #{water_quality_mlp_mae.1} parent=0 // pred_check_branch
    %16 = sbr.rel (0) target = $region13
  $region12: #{water_quality_mlp_mae.1} parent=0 // pred_region
    _
  $region13: #{water_quality_mlp_mae.1} parent=0 // pred_fallthru
    _
  // Predicated region
  $region14: #{water_quality_mlp_mae.1} parent=0 // pred_check
    _
  $region15: #{water_quality_mlp_mae.1} parent=0 // pred_check_branch
    %18 = sbr.rel (0) target = $region17
  $region16: #{water_quality_mlp_mae.1} parent=0 // pred_region
    _
  $region17: #{water_quality_mlp_mae.1} parent=0 // pred_fallthru
    _
  // Predicated region
  $region18: #{water_quality_mlp_mae.1} parent=0 // pred_check
    _
  $region19: #{water_quality_mlp_mae.1} parent=0 // pred_check_branch
    %20 = sbr.rel (0) target = $region21
  $region20: #{water_quality_mlp_mae.1} parent=0 // pred_region
    _
  $region21: #{water_quality_mlp_mae.1} parent=0 // pred_fallthru
    _
  // Predicated region
  $region22: #{water_quality_mlp_mae.1} parent=0 // pred_check
    _
  $region23: #{water_quality_mlp_mae.1} parent=0 // pred_check_branch
    %22 = sbr.rel (0) target = $region25
  $region24: #{water_quality_mlp_mae.1} parent=0 // pred_region
    _
  $region25: #{water_quality_mlp_mae.1} parent=0 // pred_fallthru
    _
  %v24 = vld [vmem:[%s0] sm:$0xff]
  %v25 = vld [vmem:[%s0 + $0x8] sm:$0xff]
  %v26 = vld [vmem:[%s0 + $0x10] sm:$0xff]
  %v27 = vld [vmem:[%s0 + $0x18] sm:$0xff]
  %v28 = vld [vmem:[%s0 + $0x20] sm:$0xff]
  %v29 = vld [vmem:[%s0 + $0x28] sm:$0xff]
  %v30 = vld [vmem:[%s0 + $0x30] sm:$0xff]
  %v31 = vld [vmem:[%s0 + $0x38] sm:$0xff]
  %v32 = vld [vmem:[%s0 + $0x40] sm:$0xff]
  %v33 = vld [vmem:[%s0 + $0x48] sm:$0xff]
  %v34 = vld [vmem:[%s0 + $0x50] sm:$0xff]
  %v35 = vld [vmem:[%s0 + $0x58] sm:$0xff]
  %v36 = vld [vmem:[%s0 + $0x60] sm:$0xff]
  %v37 = vld [vmem:[%s0 + $0x68] sm:$0xff]
  %v38 = vld [vmem:[%s0 + $0x70] sm:$0xff]
  %v39 = vld [vmem:[%s0 + $0x78] sm:$0xff]
  %v40 = vld [vmem:[%s0 + $0x80] sm:$0xff]
  %v41 = vld [vmem:[%s0 + $0x88] sm:$0xff]
  %v42 = vld [vmem:[%s0 + $0x90] sm:$0xff]
  %v43 = vld [vmem:[%s0 + $0x98] sm:$0xff]
  %v44 = vld [vmem:[%s0 + $0xa0] sm:$0xff]
  %v45 = vld [vmem:[%s0 + $0xa8] sm:$0xff]
  %v46 = vld [vmem:[%s0 + $0xb0] sm:$0xff]
  %v47 = vld [vmem:[%s0 + $0xb8] sm:$0xff]
  %v48 = vld [vmem:[%s0 + $0xc0] sm:$0xff]
  %v49 = vld [vmem:[%s0 + $0xc8] sm:$0xff]
  %v50 = vld [vmem:[%s0 + $0xd0] sm:$0xff]
  %v51 = vld [vmem:[%s0 + $0xd8] sm:$0xff]
  %v52 = vld [vmem:[%s0 + $0xe0] sm:$0xff]
  %v53 = vld [vmem:[%s0 + $0xe8] sm:$0xff]
  %v54 = vld [vmem:[%s0 + $0xf0] sm:$0xff]
  %v55 = vld [vmem:[%s0 + $0xf8] sm:$0xff]
  %v56 = vld [vmem:[%s0 + $0x100] sm:$0xff]
  %v57 = vld [vmem:[%s0 + $0x108] sm:$0xff]
  %v58 = vld [vmem:[%s0 + $0x110] sm:$0xff]
  %v59 = vld [vmem:[%s0 + $0x118] sm:$0xff]
  %v60 = vld [vmem:[%s0 + $0x120] sm:$0xff]
  %v61 = vld [vmem:[%s0 + $0x128] sm:$0xff]
  %v62 = vld [vmem:[%s0 + $0x130] sm:$0xff]
  %v63 = vld [vmem:[%s0 + $0x138] sm:$0xff]
  %v64 = vld [vmem:[%s0 + $0x140] sm:$0xff]
  %v65 = vld [vmem:[%s0 + $0x148] sm:$0xff]
  %v66 = vld [vmem:[%s0 + $0x150] sm:$0xff]
  %v67 = vld [vmem:[%s0 + $0x158] sm:$0xff]
  %v68 = vld [vmem:[%s0 + $0x160] sm:$0xff]
  %v69 = vld [vmem:[%s0 + $0x168] sm:$0xff]
  %v70 = vld [vmem:[%s0 + $0x170] sm:$0xff]
  %v71 = vld [vmem:[%s0 + $0x178] sm:$0xff]
  %v72 = vld [vmem:[%s0 + $0x180] sm:$0xff]
  %v73 = vld [vmem:[%s0 + $0x188] sm:$0xff]
  %v74 = vld [vmem:[%s0 + $0x190] sm:$0xff]
  %v75 = vld [vmem:[%s0 + $0x198] sm:$0xff]
  %v76 = vld [vmem:[%s0 + $0x1a0] sm:$0xff]
  %v77 = vld [vmem:[%s0 + $0x1a8] sm:$0xff]
  %v78 = vld [vmem:[%s0 + $0x1b0] sm:$0xff]
  %v79 = vld [vmem:[%s0 + $0x1b8] sm:$0xff]
  %v80 = vld [vmem:[%s0 + $0x1c0] sm:$0xff]
  %v81 = vld [vmem:[%s0 + $0x1c8] sm:$0xff]
  %v82 = vld [vmem:[%s0 + $0x1d0] sm:$0xff]
  %v83 = vld [vmem:[%s0 + $0x1d8] sm:$0xff]
  %v84 = vld [vmem:[%s0 + $0x1e0] sm:$0xff]
  %v85 = vld [vmem:[%s0 + $0x1e8] sm:$0xff]
  %v86 = vld [vmem:[%s0 + $0x1f0] sm:$0xff]
  %v87 = vld [vmem:[%s0 + $0x1f8] sm:$0xff]
  %v88 = vpack.c.bf16 %v25, %v24
  %v89 = vpack.c.bf16 %v27, %v26
  %v90 = vpack.c.bf16 %v29, %v28
  %v91 = vpack.c.bf16 %v31, %v30
  %v92 = vpack.c.bf16 %v33, %v32
  %v93 = vpack.c.bf16 %v35, %v34
  %v94 = vpack.c.bf16 %v37, %v36
  %v95 = vpack.c.bf16 %v39, %v38
  %v96 = vpack.c.bf16 %v41, %v40
  %v97 = vpack.c.bf16 %v43, %v42
  %v98 = vpack.c.bf16 %v45, %v44
  %v99 = vpack.c.bf16 %v47, %v46
  %v100 = vpack.c.bf16 %v49, %v48
  %v101 = vpack.c.bf16 %v51, %v50
  %v102 = vpack.c.bf16 %v53, %v52
  %v103 = vpack.c.bf16 %v55, %v54
  %v104 = vpack.c.bf16 %v57, %v56
  %v105 = vpack.c.bf16 %v59, %v58
  %v106 = vpack.c.bf16 %v61, %v60
  %v107 = vpack.c.bf16 %v63, %v62
  %v108 = vpack.c.bf16 %v65, %v64
  %v109 = vpack.c.bf16 %v67, %v66
  %v110 = vpack.c.bf16 %v69, %v68
  %v111 = vpack.c.bf16 %v71, %v70
  %v112 = vpack.c.bf16 %v73, %v72
  %v113 = vpack.c.bf16 %v75, %v74
  %v114 = vpack.c.bf16 %v77, %v76
  %v115 = vpack.c.bf16 %v79, %v78
  %v116 = vpack.c.bf16 %v81, %v80
  %v117 = vpack.c.bf16 %v83, %v82
  %v118 = vpack.c.bf16 %v85, %v84
  %v119 = vpack.c.bf16 %v87, %v86
  %v120 = vld [vmem:[%s1] sm:$0xf]
  %v121 = vld [vmem:[%s1 + $0x4] sm:$0xf]
  %v122 = vld [vmem:[%s3] sm:$0x1]
  %v124 = vlaneseq
  %v125 = vshrl.u32 %v124, 7
  %v126 = vsub.s32 0, %v125
  %v127 = vrot.slane %v122, %v126
  %v131 = vunpack.c.l.b16 %v120
  %v132 = vunpack.c.l.b16 %v121
  %v133 = vpack.c.b16 %v132, %v131
  %vm135 = vcmask 130048
  %v137 = vsel %vm135, %v88, 0
  %v140 = vsel %vm135, %v89, 0
  %v143 = vsel %vm135, %v90, 0
  %v146 = vsel %vm135, %v91, 0
  %v149 = vsel %vm135, %v92, 0
  %v152 = vsel %vm135, %v93, 0
  %v155 = vsel %vm135, %v94, 0
  %v158 = vsel %vm135, %v95, 0
  %v161 = vsel %vm135, %v96, 0
  %v164 = vsel %vm135, %v97, 0
  %v167 = vsel %vm135, %v98, 0
  %v170 = vsel %vm135, %v99, 0
  %v173 = vsel %vm135, %v100, 0
  %v176 = vsel %vm135, %v101, 0
  %v179 = vsel %vm135, %v102, 0
  %v182 = vsel %vm135, %v103, 0
  %v185 = vsel %vm135, %v104, 0
  %v188 = vsel %vm135, %v105, 0
  %v191 = vsel %vm135, %v106, 0
  %v194 = vsel %vm135, %v107, 0
  %v197 = vsel %vm135, %v108, 0
  %v200 = vsel %vm135, %v109, 0
  %v203 = vsel %vm135, %v110, 0
  %v206 = vsel %vm135, %v111, 0
  %v209 = vsel %vm135, %v112, 0
  %v212 = vsel %vm135, %v113, 0
  %v215 = vsel %vm135, %v114, 0
  %v218 = vsel %vm135, %v115, 0
  %v221 = vsel %vm135, %v116, 0
  %v224 = vsel %vm135, %v117, 0
  %v227 = vsel %vm135, %v118, 0
  %v230 = vsel %vm135, %v119, 0
  %232 = vmatprep.subr.bf16.mxu0 0
  %233 = vmatpush1.bf16.msra.mxu0 %v133
  %234 = vmatprep.subr.bf16.mxu0 0
  %235 = vmatpush1.bf16.msra.mxu0 0
  %236 = vmatprep.subr.bf16.mxu0 0
  %237 = vmatpush1.bf16.msra.mxu0 0
  %238 = vmatprep.subr.bf16.mxu0 0
  %239 = vmatpush1.bf16.msra.mxu0 0
  %240 = vmatprep.subr.bf16.mxu0 0
  %241 = vmatpush1.bf16.msra.mxu0 0
  %242 = vmatprep.subr.bf16.mxu0 0
  %243 = vmatpush1.bf16.msra.mxu0 0
  %244 = vmatprep.subr.bf16.mxu0 0
  %245 = vmatpush1.bf16.msra.mxu0 0
  %246 = vmatprep.subr.bf16.mxu0 0
  %247 = vmatpush1.bf16.msra.mxu0 0
  %248 = vmatprep.subr.bf16.mxu0 0
  %249 = vmatpush1.bf16.msra.mxu0 0
  %250 = vmatprep.subr.bf16.mxu0 0
  %251 = vmatpush1.bf16.msra.mxu0 0
  %252 = vmatprep.subr.bf16.mxu0 0
  %253 = vmatpush1.bf16.msra.mxu0 0
  %254 = vmatprep.subr.bf16.mxu0 0
  %255 = vmatpush1.bf16.msra.mxu0 0
  %256 = vmatprep.subr.bf16.mxu0 0
  %257 = vmatpush1.bf16.msra.mxu0 0
  %258 = vmatprep.subr.bf16.mxu0 0
  %259 = vmatpush1.bf16.msra.mxu0 0
  %260 = vmatprep.subr.bf16.mxu0 0
  %261 = vmatpush1.bf16.msra.mxu0 0
  %262 = vmatprep.subr.bf16.mxu0 0
  %263 = vmatpush1.bf16.msra.mxu0 0
  %264 = vmatprep.mubr.bf16.mxu0 0
  %265 = vmatmul.mubr.bf16.gmra.mrb[0].mxu0 %v137
  %v266 = vpop.f32.mrb[0].mxu0
  %v267 = vadd.f32 %v127, %v266
  %v268 = vpop.f32.mrb[0].mxu0
  %v269 = vpop.f32.mrb[0].mxu0
  %v270 = vadd.f32 %v127, %v269
  %v271 = vpop.f32.mrb[0].mxu0
  %272 = vmatprep.mubr.bf16.mxu0 0
  %273 = vmatmul.mubr.bf16.gmra.mrb[0].mxu0 %v140
  %v274 = vpop.f32.mrb[0].mxu0
  %v275 = vadd.f32 %v127, %v274
  %v276 = vpop.f32.mrb[0].mxu0
  %v277 = vpop.f32.mrb[0].mxu0
  %v278 = vadd.f32 %v127, %v277
  %v279 = vpop.f32.mrb[0].mxu0
  %280 = vmatprep.mubr.bf16.mxu0 0
  %281 = vmatmul.mubr.bf16.gmra.mrb[0].mxu0 %v143
  %v282 = vpop.f32.mrb[0].mxu0
  %v283 = vadd.f32 %v127, %v282
  %v284 = vpop.f32.mrb[0].mxu0
  %v285 = vpop.f32.mrb[0].mxu0
  %v286 = vadd.f32 %v127, %v285
  %v287 = vpop.f32.mrb[0].mxu0
  %288 = vmatprep.mubr.bf16.mxu0 0
  %289 = vmatmul.mubr.bf16.gmra.mrb[0].mxu0 %v146
  %v290 = vpop.f32.mrb[0].mxu0
  %v291 = vadd.f32 %v127, %v290
  %v292 = vpop.f32.mrb[0].mxu0
  %v293 = vpop.f32.mrb[0].mxu0
  %v294 = vadd.f32 %v127, %v293
  %v295 = vpop.f32.mrb[0].mxu0
  %296 = vmatprep.mubr.bf16.mxu0 0
  %297 = vmatmul.mubr.bf16.gmra.mrb[0].mxu0 %v149
  %v298 = vpop.f32.mrb[0].mxu0
  %v299 = vadd.f32 %v127, %v298
  %v300 = vpop.f32.mrb[0].mxu0
  %v301 = vpop.f32.mrb[0].mxu0
  %v302 = vadd.f32 %v127, %v301
  %v303 = vpop.f32.mrb[0].mxu0
  %304 = vmatprep.mubr.bf16.mxu0 0
  %305 = vmatmul.mubr.bf16.gmra.mrb[0].mxu0 %v152
  %v306 = vpop.f32.mrb[0].mxu0
  %v307 = vadd.f32 %v127, %v306
  %v308 = vpop.f32.mrb[0].mxu0
  %v309 = vpop.f32.mrb[0].mxu0
  %v310 = vadd.f32 %v127, %v309
  %v311 = vpop.f32.mrb[0].mxu0
  %312 = vmatprep.mubr.bf16.mxu0 0
  %313 = vmatmul.mubr.bf16.gmra.mrb[0].mxu0 %v155
  %v314 = vpop.f32.mrb[0].mxu0
  %v315 = vadd.f32 %v127, %v314
  %v316 = vpop.f32.mrb[0].mxu0
  %v317 = vpop.f32.mrb[0].mxu0
  %v318 = vadd.f32 %v127, %v317
  %v319 = vpop.f32.mrb[0].mxu0
  %320 = vmatprep.mubr.bf16.mxu0 0
  %321 = vmatmul.mubr.bf16.gmra.mrb[0].mxu0 %v158
  %v322 = vpop.f32.mrb[0].mxu0
  %v323 = vadd.f32 %v127, %v322
  %v324 = vpop.f32.mrb[0].mxu0
  %v325 = vpop.f32.mrb[0].mxu0
  %v326 = vadd.f32 %v127, %v325
  %v327 = vpop.f32.mrb[0].mxu0
  %328 = vmatprep.mubr.bf16.mxu0 0
  %329 = vmatmul.mubr.bf16.gmra.mrb[0].mxu0 %v161
  %v330 = vpop.f32.mrb[0].mxu0
  %v331 = vadd.f32 %v127, %v330
  %v332 = vpop.f32.mrb[0].mxu0
  %v333 = vpop.f32.mrb[0].mxu0
  %v334 = vadd.f32 %v127, %v333
  %v335 = vpop.f32.mrb[0].mxu0
  %336 = vmatprep.mubr.bf16.mxu0 0
  %337 = vmatmul.mubr.bf16.gmra.mrb[0].mxu0 %v164
  %v338 = vpop.f32.mrb[0].mxu0
  %v339 = vadd.f32 %v127, %v338
  %v340 = vpop.f32.mrb[0].mxu0
  %v341 = vpop.f32.mrb[0].mxu0
  %v342 = vadd.f32 %v127, %v341
  %v343 = vpop.f32.mrb[0].mxu0
  %344 = vmatprep.mubr.bf16.mxu0 0
  %345 = vmatmul.mubr.bf16.gmra.mrb[0].mxu0 %v167
  %v346 = vpop.f32.mrb[0].mxu0
  %v347 = vadd.f32 %v127, %v346
  %v348 = vpop.f32.mrb[0].mxu0
  %v349 = vpop.f32.mrb[0].mxu0
  %v350 = vadd.f32 %v127, %v349
  %v351 = vpop.f32.mrb[0].mxu0
  %352 = vmatprep.mubr.bf16.mxu0 0
  %353 = vmatmul.mubr.bf16.gmra.mrb[0].mxu0 %v170
  %v354 = vpop.f32.mrb[0].mxu0
  %v355 = vadd.f32 %v127, %v354
  %v356 = vpop.f32.mrb[0].mxu0
  %v357 = vpop.f32.mrb[0].mxu0
  %v358 = vadd.f32 %v127, %v357
  %v359 = vpop.f32.mrb[0].mxu0
  %360 = vmatprep.mubr.bf16.mxu0 0
  %361 = vmatmul.mubr.bf16.gmra.mrb[0].mxu0 %v173
  %v362 = vpop.f32.mrb[0].mxu0
  %v363 = vadd.f32 %v127, %v362
  %v364 = vpop.f32.mrb[0].mxu0
  %v365 = vpop.f32.mrb[0].mxu0
  %v366 = vadd.f32 %v127, %v365
  %v367 = vpop.f32.mrb[0].mxu0
  %368 = vmatprep.mubr.bf16.mxu0 0
  %369 = vmatmul.mubr.bf16.gmra.mrb[0].mxu0 %v176
  %v370 = vpop.f32.mrb[0].mxu0
  %v371 = vadd.f32 %v127, %v370
  %v372 = vpop.f32.mrb[0].mxu0
  %v373 = vpop.f32.mrb[0].mxu0
  %v374 = vadd.f32 %v127, %v373
  %v375 = vpop.f32.mrb[0].mxu0
  %376 = vmatprep.mubr.bf16.mxu0 0
  %377 = vmatmul.mubr.bf16.gmra.mrb[0].mxu0 %v179
  %v378 = vpop.f32.mrb[0].mxu0
  %v379 = vadd.f32 %v127, %v378
  %v380 = vpop.f32.mrb[0].mxu0
  %v381 = vpop.f32.mrb[0].mxu0
  %v382 = vadd.f32 %v127, %v381
  %v383 = vpop.f32.mrb[0].mxu0
  %384 = vmatprep.mubr.bf16.mxu0 0
  %385 = vmatmul.mubr.bf16.gmra.mrb[0].mxu0 %v182
  %v386 = vpop.f32.mrb[0].mxu0
  %v387 = vadd.f32 %v127, %v386
  %v388 = vpop.f32.mrb[0].mxu0
  %v389 = vpop.f32.mrb[0].mxu0
  %v390 = vadd.f32 %v127, %v389
  %v391 = vpop.f32.mrb[0].mxu0
  %392 = vmatprep.mubr.bf16.mxu0 0
  %393 = vmatmul.mubr.bf16.gmra.mrb[0].mxu0 %v185
  %v394 = vpop.f32.mrb[0].mxu0
  %v395 = vadd.f32 %v127, %v394
  %v396 = vpop.f32.mrb[0].mxu0
  %v397 = vpop.f32.mrb[0].mxu0
  %v398 = vadd.f32 %v127, %v397
  %v399 = vpop.f32.mrb[0].mxu0
  %400 = vmatprep.mubr.bf16.mxu0 0
  %401 = vmatmul.mubr.bf16.gmra.mrb[0].mxu0 %v188
  %v402 = vpop.f32.mrb[0].mxu0
  %v403 = vadd.f32 %v127, %v402
  %v404 = vpop.f32.mrb[0].mxu0
  %v405 = vpop.f32.mrb[0].mxu0
  %v406 = vadd.f32 %v127, %v405
  %v407 = vpop.f32.mrb[0].mxu0
  %408 = vmatprep.mubr.bf16.mxu0 0
  %409 = vmatmul.mubr.bf16.gmra.mrb[0].mxu0 %v191
  %v410 = vpop.f32.mrb[0].mxu0
  %v411 = vadd.f32 %v127, %v410
  %v412 = vpop.f32.mrb[0].mxu0
  %v413 = vpop.f32.mrb[0].mxu0
  %v414 = vadd.f32 %v127, %v413
  %v415 = vpop.f32.mrb[0].mxu0
  %416 = vmatprep.mubr.bf16.mxu0 0
  %417 = vmatmul.mubr.bf16.gmra.mrb[0].mxu0 %v194
  %v418 = vpop.f32.mrb[0].mxu0
  %v419 = vadd.f32 %v127, %v418
  %v420 = vpop.f32.mrb[0].mxu0
  %v421 = vpop.f32.mrb[0].mxu0
  %v422 = vadd.f32 %v127, %v421
  %v423 = vpop.f32.mrb[0].mxu0
  %424 = vmatprep.mubr.bf16.mxu0 0
  %425 = vmatmul.mubr.bf16.gmra.mrb[0].mxu0 %v197
  %v426 = vpop.f32.mrb[0].mxu0
  %v427 = vadd.f32 %v127, %v426
  %v428 = vpop.f32.mrb[0].mxu0
  %v429 = vpop.f32.mrb[0].mxu0
  %v430 = vadd.f32 %v127, %v429
  %v431 = vpop.f32.mrb[0].mxu0
  %432 = vmatprep.mubr.bf16.mxu0 0
  %433 = vmatmul.mubr.bf16.gmra.mrb[0].mxu0 %v200
  %v434 = vpop.f32.mrb[0].mxu0
  %v435 = vadd.f32 %v127, %v434
  %v436 = vpop.f32.mrb[0].mxu0
  %v437 = vpop.f32.mrb[0].mxu0
  %v438 = vadd.f32 %v127, %v437
  %v439 = vpop.f32.mrb[0].mxu0
  %440 = vmatprep.mubr.bf16.mxu0 0
  %441 = vmatmul.mubr.bf16.gmra.mrb[0].mxu0 %v203
  %v442 = vpop.f32.mrb[0].mxu0
  %v443 = vadd.f32 %v127, %v442
  %v444 = vpop.f32.mrb[0].mxu0
  %v445 = vpop.f32.mrb[0].mxu0
  %v446 = vadd.f32 %v127, %v445
  %v447 = vpop.f32.mrb[0].mxu0
  %448 = vmatprep.mubr.bf16.mxu0 0
  %449 = vmatmul.mubr.bf16.gmra.mrb[0].mxu0 %v206
  %v450 = vpop.f32.mrb[0].mxu0
  %v451 = vadd.f32 %v127, %v450
  %v452 = vpop.f32.mrb[0].mxu0
  %v453 = vpop.f32.mrb[0].mxu0
  %v454 = vadd.f32 %v127, %v453
  %v455 = vpop.f32.mrb[0].mxu0
  %456 = vmatprep.mubr.bf16.mxu0 0
  %457 = vmatmul.mubr.bf16.gmra.mrb[0].mxu0 %v209
  %v458 = vpop.f32.mrb[0].mxu0
  %v459 = vadd.f32 %v127, %v458
  %v460 = vpop.f32.mrb[0].mxu0
  %v461 = vpop.f32.mrb[0].mxu0
  %v462 = vadd.f32 %v127, %v461
  %v463 = vpop.f32.mrb[0].mxu0
  %464 = vmatprep.mubr.bf16.mxu0 0
  %465 = vmatmul.mubr.bf16.gmra.mrb[0].mxu0 %v212
  %v466 = vpop.f32.mrb[0].mxu0
  %v467 = vadd.f32 %v127, %v466
  %v468 = vpop.f32.mrb[0].mxu0
  %v469 = vpop.f32.mrb[0].mxu0
  %v470 = vadd.f32 %v127, %v469
  %v471 = vpop.f32.mrb[0].mxu0
  %472 = vmatprep.mubr.bf16.mxu0 0
  %473 = vmatmul.mubr.bf16.gmra.mrb[0].mxu0 %v215
  %v474 = vpop.f32.mrb[0].mxu0
  %v475 = vadd.f32 %v127, %v474
  %v476 = vpop.f32.mrb[0].mxu0
  %v477 = vpop.f32.mrb[0].mxu0
  %v478 = vadd.f32 %v127, %v477
  %v479 = vpop.f32.mrb[0].mxu0
  %480 = vmatprep.mubr.bf16.mxu0 0
  %481 = vmatmul.mubr.bf16.gmra.mrb[0].mxu0 %v218
  %v482 = vpop.f32.mrb[0].mxu0
  %v483 = vadd.f32 %v127, %v482
  %v484 = vpop.f32.mrb[0].mxu0
  %v485 = vpop.f32.mrb[0].mxu0
  %v486 = vadd.f32 %v127, %v485
  %v487 = vpop.f32.mrb[0].mxu0
  %488 = vmatprep.mubr.bf16.mxu0 0
  %489 = vmatmul.mubr.bf16.gmra.mrb[0].mxu0 %v221
  %v490 = vpop.f32.mrb[0].mxu0
  %v491 = vadd.f32 %v127, %v490
  %v492 = vpop.f32.mrb[0].mxu0
  %v493 = vpop.f32.mrb[0].mxu0
  %v494 = vadd.f32 %v127, %v493
  %v495 = vpop.f32.mrb[0].mxu0
  %496 = vmatprep.mubr.bf16.mxu0 0
  %497 = vmatmul.mubr.bf16.gmra.mrb[0].mxu0 %v224
  %v498 = vpop.f32.mrb[0].mxu0
  %v499 = vadd.f32 %v127, %v498
  %v500 = vpop.f32.mrb[0].mxu0
  %v501 = vpop.f32.mrb[0].mxu0
  %v502 = vadd.f32 %v127, %v501
  %v503 = vpop.f32.mrb[0].mxu0
  %504 = vmatprep.mubr.bf16.mxu0 0
  %505 = vmatmul.mubr.bf16.gmra.mrb[0].mxu0 %v227
  %v506 = vpop.f32.mrb[0].mxu0
  %v507 = vadd.f32 %v127, %v506
  %v508 = vpop.f32.mrb[0].mxu0
  %v509 = vpop.f32.mrb[0].mxu0
  %v510 = vadd.f32 %v127, %v509
  %v511 = vpop.f32.mrb[0].mxu0
  %512 = vmatprep.mubr.bf16.mxu0 0
  %513 = vmatmul.mubr.bf16.gmra.mrb[0].mxu0 %v230
  %v514 = vpop.f32.mrb[0].mxu0
  %v515 = vadd.f32 %v127, %v514
  %v516 = vpop.f32.mrb[0].mxu0
  %v517 = vpop.f32.mrb[0].mxu0
  %v518 = vadd.f32 %v127, %v517
  %v519 = vpop.f32.mrb[0].mxu0
  %520 = vdwg.mxu0
  %v521 = vmax.f32 %v267, 0.0
  %v522 = vmax.f32 %v270, 0.0
  %v523 = vmax.f32 %v275, 0.0
  %v524 = vmax.f32 %v278, 0.0
  %v525 = vmax.f32 %v283, 0.0
  %v526 = vmax.f32 %v286, 0.0
  %v527 = vmax.f32 %v291, 0.0
  %v528 = vmax.f32 %v294, 0.0
  %v529 = vmax.f32 %v299, 0.0
  %v530 = vmax.f32 %v302, 0.0
  %v531 = vmax.f32 %v307, 0.0
  %v532 = vmax.f32 %v310, 0.0
  %v533 = vmax.f32 %v315, 0.0
  %v534 = vmax.f32 %v318, 0.0
  %v535 = vmax.f32 %v323, 0.0
  %v536 = vmax.f32 %v326, 0.0
  %v537 = vmax.f32 %v331, 0.0
  %v538 = vmax.f32 %v334, 0.0
  %v539 = vmax.f32 %v339, 0.0
  %v540 = vmax.f32 %v342, 0.0
  %v541 = vmax.f32 %v347, 0.0
  %v542 = vmax.f32 %v350, 0.0
  %v543 = vmax.f32 %v355, 0.0
  %v544 = vmax.f32 %v358, 0.0
  %v545 = vmax.f32 %v363, 0.0
  %v546 = vmax.f32 %v366, 0.0
  %v547 = vmax.f32 %v371, 0.0
  %v548 = vmax.f32 %v374, 0.0
  %v549 = vmax.f32 %v379, 0.0
  %v550 = vmax.f32 %v382, 0.0
  %v551 = vmax.f32 %v387, 0.0
  %v552 = vmax.f32 %v390, 0.0
  %v553 = vmax.f32 %v395, 0.0
  %v554 = vmax.f32 %v398, 0.0
  %v555 = vmax.f32 %v403, 0.0
  %v556 = vmax.f32 %v406, 0.0
  %v557 = vmax.f32 %v411, 0.0
  %v558 = vmax.f32 %v414, 0.0
  %v559 = vmax.f32 %v419, 0.0
  %v560 = vmax.f32 %v422, 0.0
  %v561 = vmax.f32 %v427, 0.0
  %v562 = vmax.f32 %v430, 0.0
  %v563 = vmax.f32 %v435, 0.0
  %v564 = vmax.f32 %v438, 0.0
  %v565 = vmax.f32 %v443, 0.0
  %v566 = vmax.f32 %v446, 0.0
  %v567 = vmax.f32 %v451, 0.0
  %v568 = vmax.f32 %v454, 0.0
  %v569 = vmax.f32 %v459, 0.0
  %v570 = vmax.f32 %v462, 0.0
  %v571 = vmax.f32 %v467, 0.0
  %v572 = vmax.f32 %v470, 0.0
  %v573 = vmax.f32 %v475, 0.0
  %v574 = vmax.f32 %v478, 0.0
  %v575 = vmax.f32 %v483, 0.0
  %v576 = vmax.f32 %v486, 0.0
  %v577 = vmax.f32 %v491, 0.0
  %v578 = vmax.f32 %v494, 0.0
  %v579 = vmax.f32 %v499, 0.0
  %v580 = vmax.f32 %v502, 0.0
  %v581 = vmax.f32 %v507, 0.0
  %v582 = vmax.f32 %v510, 0.0
  %v583 = vmax.f32 %v515, 0.0
  %v584 = vmax.f32 %v518, 0.0
  %v585 = vpack.c.bf16 %v522, %v521
  %v586 = vpack.c.bf16 %v524, %v523
  %v587 = vpack.c.bf16 %v526, %v525
  %v588 = vpack.c.bf16 %v528, %v527
  %v589 = vpack.c.bf16 %v530, %v529
  %v590 = vpack.c.bf16 %v532, %v531
  %v591 = vpack.c.bf16 %v534, %v533
  %v592 = vpack.c.bf16 %v536, %v535
  %v593 = vpack.c.bf16 %v538, %v537
  %v594 = vpack.c.bf16 %v540, %v539
  %v595 = vpack.c.bf16 %v542, %v541
  %v596 = vpack.c.bf16 %v544, %v543
  %v597 = vpack.c.bf16 %v546, %v545
  %v598 = vpack.c.bf16 %v548, %v547
  %v599 = vpack.c.bf16 %v550, %v549
  %v600 = vpack.c.bf16 %v552, %v551
  %v601 = vpack.c.bf16 %v554, %v553
  %v602 = vpack.c.bf16 %v556, %v555
  %v603 = vpack.c.bf16 %v558, %v557
  %v604 = vpack.c.bf16 %v560, %v559
  %v605 = vpack.c.bf16 %v562, %v561
  %v606 = vpack.c.bf16 %v564, %v563
  %v607 = vpack.c.bf16 %v566, %v565
  %v608 = vpack.c.bf16 %v568, %v567
  %v609 = vpack.c.bf16 %v570, %v569
  %v610 = vpack.c.bf16 %v572, %v571
  %v611 = vpack.c.bf16 %v574, %v573
  %v612 = vpack.c.bf16 %v576, %v575
  %v613 = vpack.c.bf16 %v578, %v577
  %v614 = vpack.c.bf16 %v580, %v579
  %v615 = vpack.c.bf16 %v582, %v581
  %v616 = vpack.c.bf16 %v584, %v583
  %v617 = vld [vmem:[%s2] sm:$0xf]
  %v618 = vld [vmem:[%s2 + $0x4] sm:$0xf]
  %v619 = vld [vmem:[%s2 + $0x8] sm:$0xf]
  %v620 = vld [vmem:[%s2 + $0xc] sm:$0xf]
  %v621 = vld [vmem:[%s2 + $0x10] sm:$0xf]
  %v622 = vld [vmem:[%s2 + $0x14] sm:$0xf]
  %v623 = vld [vmem:[%s2 + $0x18] sm:$0xf]
  %v624 = vld [vmem:[%s2 + $0x1c] sm:$0xf]
  %v625 = vld [vmem:[%s2 + $0x20] sm:$0xf]
  %v626 = vld [vmem:[%s2 + $0x24] sm:$0xf]
  %v627 = vld [vmem:[%s2 + $0x28] sm:$0xf]
  %v628 = vld [vmem:[%s2 + $0x2c] sm:$0xf]
  %v629 = vld [vmem:[%s2 + $0x30] sm:$0xf]
  %v630 = vld [vmem:[%s2 + $0x34] sm:$0xf]
  %v631 = vld [vmem:[%s2 + $0x38] sm:$0xf]
  %v632 = vld [vmem:[%s2 + $0x3c] sm:$0xf]
  %s633 = scalar_lea.vmem %s3, 1
  %v634 = vld [vmem:[%s633] sm:$0x1]
  %v636 = vlaneseq
  %v637 = vshrl.u32 %v636, 7
  %v638 = vsub.s32 0, %v637
  %v639 = vrot.slane %v634, %v638
  %v657 = vunpack.c.l.b16 %v617
  %v658 = vunpack.c.l.b16 %v618
  %v659 = vunpack.c.l.b16 %v619
  %v660 = vunpack.c.l.b16 %v620
  %v661 = vunpack.c.l.b16 %v621
  %v662 = vunpack.c.l.b16 %v622
  %v663 = vunpack.c.l.b16 %v623
  %v664 = vunpack.c.l.b16 %v624
  %v665 = vunpack.c.l.b16 %v625
  %v666 = vunpack.c.l.b16 %v626
  %v667 = vunpack.c.l.b16 %v627
  %v668 = vunpack.c.l.b16 %v628
  %v669 = vunpack.c.l.b16 %v629
  %v670 = vunpack.c.l.b16 %v630
  %v671 = vunpack.c.l.b16 %v631
  %v672 = vunpack.c.l.b16 %v632
  %v673 = vpack.c.b16 %v658, %v657
  %v674 = vpack.c.b16 %v660, %v659
  %v675 = vpack.c.b16 %v662, %v661
  %v676 = vpack.c.b16 %v664, %v663
  %v677 = vpack.c.b16 %v666, %v665
  %v678 = vpack.c.b16 %v668, %v667
  %v679 = vpack.c.b16 %v670, %v669
  %v680 = vpack.c.b16 %v672, %v671
  %689 = vmatprep.subr.bf16.mxu0 0
  %690 = vmatpush1.bf16.msra.mxu0 %v673
  %691 = vmatprep.subr.bf16.mxu0 0
  %692 = vmatpush1.bf16.msra.mxu0 %v674
  %693 = vmatprep.subr.bf16.mxu0 0
  %694 = vmatpush1.bf16.msra.mxu0 %v675
  %695 = vmatprep.subr.bf16.mxu0 0
  %696 = vmatpush1.bf16.msra.mxu0 %v676
  %697 = vmatprep.subr.bf16.mxu0 0
  %698 = vmatpush1.bf16.msra.mxu0 %v677
  %699 = vmatprep.subr.bf16.mxu0 0
  %700 = vmatpush1.bf16.msra.mxu0 %v678
  %701 = vmatprep.subr.bf16.mxu0 0
  %702 = vmatpush1.bf16.msra.mxu0 %v679
  %703 = vmatprep.subr.bf16.mxu0 0
  %704 = vmatpush1.bf16.msra.mxu0 %v680
  %705 = vmatprep.subr.bf16.mxu0 0
  %706 = vmatpush1.bf16.msra.mxu0 0
  %707 = vmatprep.subr.bf16.mxu0 0
  %708 = vmatpush1.bf16.msra.mxu0 0
  %709 = vmatprep.subr.bf16.mxu0 0
  %710 = vmatpush1.bf16.msra.mxu0 0
  %711 = vmatprep.subr.bf16.mxu0 0
  %712 = vmatpush1.bf16.msra.mxu0 0
  %713 = vmatprep.subr.bf16.mxu0 0
  %714 = vmatpush1.bf16.msra.mxu0 0
  %715 = vmatprep.subr.bf16.mxu0 0
  %716 = vmatpush1.bf16.msra.mxu0 0
  %717 = vmatprep.subr.bf16.mxu0 0
  %718 = vmatpush1.bf16.msra.mxu0 0
  %719 = vmatprep.subr.bf16.mxu0 0
  %720 = vmatpush1.bf16.msra.mxu0 0
  %721 = vmatprep.mubr.bf16.mxu0 0
  %722 = vmatmul.mubr.bf16.gmra.mrb[0].mxu0 %v585
  %v723 = vpop.f32.mrb[0].mxu0
  %v724 = vadd.f32 %v639, %v723
  %v725 = vpop.f32.mrb[0].mxu0
  %v726 = vpop.f32.mrb[0].mxu0
  %v727 = vadd.f32 %v639, %v726
  %v728 = vpop.f32.mrb[0].mxu0
  %729 = vmatprep.mubr.bf16.mxu0 0
  %730 = vmatmul.mubr.bf16.gmra.mrb[0].mxu0 %v586
  %v731 = vpop.f32.mrb[0].mxu0
  %v732 = vadd.f32 %v639, %v731
  %v733 = vpop.f32.mrb[0].mxu0
  %v734 = vpop.f32.mrb[0].mxu0
  %v735 = vadd.f32 %v639, %v734
  %v736 = vpop.f32.mrb[0].mxu0
  %737 = vmatprep.mubr.bf16.mxu0 0
  %738 = vmatmul.mubr.bf16.gmra.mrb[0].mxu0 %v587
  %v739 = vpop.f32.mrb[0].mxu0
  %v740 = vadd.f32 %v639, %v739
  %v741 = vpop.f32.mrb[0].mxu0
  %v742 = vpop.f32.mrb[0].mxu0
  %v743 = vadd.f32 %v639, %v742
  %v744 = vpop.f32.mrb[0].mxu0
  %745 = vmatprep.mubr.bf16.mxu0 0
  %746 = vmatmul.mubr.bf16.gmra.mrb[0].mxu0 %v588
  %v747 = vpop.f32.mrb[0].mxu0
  %v748 = vadd.f32 %v639, %v747
  %v749 = vpop.f32.mrb[0].mxu0
  %v750 = vpop.f32.mrb[0].mxu0
  %v751 = vadd.f32 %v639, %v750
  %v752 = vpop.f32.mrb[0].mxu0
  %753 = vmatprep.mubr.bf16.mxu0 0
  %754 = vmatmul.mubr.bf16.gmra.mrb[0].mxu0 %v589
  %v755 = vpop.f32.mrb[0].mxu0
  %v756 = vadd.f32 %v639, %v755
  %v757 = vpop.f32.mrb[0].mxu0
  %v758 = vpop.f32.mrb[0].mxu0
  %v759 = vadd.f32 %v639, %v758
  %v760 = vpop.f32.mrb[0].mxu0
  %761 = vmatprep.mubr.bf16.mxu0 0
  %762 = vmatmul.mubr.bf16.gmra.mrb[0].mxu0 %v590
  %v763 = vpop.f32.mrb[0].mxu0
  %v764 = vadd.f32 %v639, %v763
  %v765 = vpop.f32.mrb[0].mxu0
  %v766 = vpop.f32.mrb[0].mxu0
  %v767 = vadd.f32 %v639, %v766
  %v768 = vpop.f32.mrb[0].mxu0
  %769 = vmatprep.mubr.bf16.mxu0 0
  %770 = vmatmul.mubr.bf16.gmra.mrb[0].mxu0 %v591
  %v771 = vpop.f32.mrb[0].mxu0
  %v772 = vadd.f32 %v639, %v771
  %v773 = vpop.f32.mrb[0].mxu0
  %v774 = vpop.f32.mrb[0].mxu0
  %v775 = vadd.f32 %v639, %v774
  %v776 = vpop.f32.mrb[0].mxu0
  %777 = vmatprep.mubr.bf16.mxu0 0
  %778 = vmatmul.mubr.bf16.gmra.mrb[0].mxu0 %v592
  %v779 = vpop.f32.mrb[0].mxu0
  %v780 = vadd.f32 %v639, %v779
  %v781 = vpop.f32.mrb[0].mxu0
  %v782 = vpop.f32.mrb[0].mxu0
  %v783 = vadd.f32 %v639, %v782
  %v784 = vpop.f32.mrb[0].mxu0
  %785 = vmatprep.mubr.bf16.mxu0 0
  %786 = vmatmul.mubr.bf16.gmra.mrb[0].mxu0 %v593
  %v787 = vpop.f32.mrb[0].mxu0
  %v788 = vadd.f32 %v639, %v787
  %v789 = vpop.f32.mrb[0].mxu0
  %v790 = vpop.f32.mrb[0].mxu0
  %v791 = vadd.f32 %v639, %v790
  %v792 = vpop.f32.mrb[0].mxu0
  %793 = vmatprep.mubr.bf16.mxu0 0
  %794 = vmatmul.mubr.bf16.gmra.mrb[0].mxu0 %v594
  %v795 = vpop.f32.mrb[0].mxu0
  %v796 = vadd.f32 %v639, %v795
  %v797 = vpop.f32.mrb[0].mxu0
  %v798 = vpop.f32.mrb[0].mxu0
  %v799 = vadd.f32 %v639, %v798
  %v800 = vpop.f32.mrb[0].mxu0
  %801 = vmatprep.mubr.bf16.mxu0 0
  %802 = vmatmul.mubr.bf16.gmra.mrb[0].mxu0 %v595
  %v803 = vpop.f32.mrb[0].mxu0
  %v804 = vadd.f32 %v639, %v803
  %v805 = vpop.f32.mrb[0].mxu0
  %v806 = vpop.f32.mrb[0].mxu0
  %v807 = vadd.f32 %v639, %v806
  %v808 = vpop.f32.mrb[0].mxu0
  %809 = vmatprep.mubr.bf16.mxu0 0
  %810 = vmatmul.mubr.bf16.gmra.mrb[0].mxu0 %v596
  %v811 = vpop.f32.mrb[0].mxu0
  %v812 = vadd.f32 %v639, %v811
  %v813 = vpop.f32.mrb[0].mxu0
  %v814 = vpop.f32.mrb[0].mxu0
  %v815 = vadd.f32 %v639, %v814
  %v816 = vpop.f32.mrb[0].mxu0
  %817 = vmatprep.mubr.bf16.mxu0 0
  %818 = vmatmul.mubr.bf16.gmra.mrb[0].mxu0 %v597
  %v819 = vpop.f32.mrb[0].mxu0
  %v820 = vadd.f32 %v639, %v819
  %v821 = vpop.f32.mrb[0].mxu0
  %v822 = vpop.f32.mrb[0].mxu0
  %v823 = vadd.f32 %v639, %v822
  %v824 = vpop.f32.mrb[0].mxu0
  %825 = vmatprep.mubr.bf16.mxu0 0
  %826 = vmatmul.mubr.bf16.gmra.mrb[0].mxu0 %v598
  %v827 = vpop.f32.mrb[0].mxu0
  %v828 = vadd.f32 %v639, %v827
  %v829 = vpop.f32.mrb[0].mxu0
  %v830 = vpop.f32.mrb[0].mxu0
  %v831 = vadd.f32 %v639, %v830
  %v832 = vpop.f32.mrb[0].mxu0
  %833 = vmatprep.mubr.bf16.mxu0 0
  %834 = vmatmul.mubr.bf16.gmra.mrb[0].mxu0 %v599
  %v835 = vpop.f32.mrb[0].mxu0
  %v836 = vadd.f32 %v639, %v835
  %v837 = vpop.f32.mrb[0].mxu0
  %v838 = vpop.f32.mrb[0].mxu0
  %v839 = vadd.f32 %v639, %v838
  %v840 = vpop.f32.mrb[0].mxu0
  %841 = vmatprep.mubr.bf16.mxu0 0
  %842 = vmatmul.mubr.bf16.gmra.mrb[0].mxu0 %v600
  %v843 = vpop.f32.mrb[0].mxu0
  %v844 = vadd.f32 %v639, %v843
  %v845 = vpop.f32.mrb[0].mxu0
  %v846 = vpop.f32.mrb[0].mxu0
  %v847 = vadd.f32 %v639, %v846
  %v848 = vpop.f32.mrb[0].mxu0
  %849 = vmatprep.mubr.bf16.mxu0 0
  %850 = vmatmul.mubr.bf16.gmra.mrb[0].mxu0 %v601
  %v851 = vpop.f32.mrb[0].mxu0
  %v852 = vadd.f32 %v639, %v851
  %v853 = vpop.f32.mrb[0].mxu0
  %v854 = vpop.f32.mrb[0].mxu0
  %v855 = vadd.f32 %v639, %v854
  %v856 = vpop.f32.mrb[0].mxu0
  %857 = vmatprep.mubr.bf16.mxu0 0
  %858 = vmatmul.mubr.bf16.gmra.mrb[0].mxu0 %v602
  %v859 = vpop.f32.mrb[0].mxu0
  %v860 = vadd.f32 %v639, %v859
  %v861 = vpop.f32.mrb[0].mxu0
  %v862 = vpop.f32.mrb[0].mxu0
  %v863 = vadd.f32 %v639, %v862
  %v864 = vpop.f32.mrb[0].mxu0
  %865 = vmatprep.mubr.bf16.mxu0 0
  %866 = vmatmul.mubr.bf16.gmra.mrb[0].mxu0 %v603
  %v867 = vpop.f32.mrb[0].mxu0
  %v868 = vadd.f32 %v639, %v867
  %v869 = vpop.f32.mrb[0].mxu0
  %v870 = vpop.f32.mrb[0].mxu0
  %v871 = vadd.f32 %v639, %v870
  %v872 = vpop.f32.mrb[0].mxu0
  %873 = vmatprep.mubr.bf16.mxu0 0
  %874 = vmatmul.mubr.bf16.gmra.mrb[0].mxu0 %v604
  %v875 = vpop.f32.mrb[0].mxu0
  %v876 = vadd.f32 %v639, %v875
  %v877 = vpop.f32.mrb[0].mxu0
  %v878 = vpop.f32.mrb[0].mxu0
  %v879 = vadd.f32 %v639, %v878
  %v880 = vpop.f32.mrb[0].mxu0
  %881 = vmatprep.mubr.bf16.mxu0 0
  %882 = vmatmul.mubr.bf16.gmra.mrb[0].mxu0 %v605
  %v883 = vpop.f32.mrb[0].mxu0
  %v884 = vadd.f32 %v639, %v883
  %v885 = vpop.f32.mrb[0].mxu0
  %v886 = vpop.f32.mrb[0].mxu0
  %v887 = vadd.f32 %v639, %v886
  %v888 = vpop.f32.mrb[0].mxu0
  %889 = vmatprep.mubr.bf16.mxu0 0
  %890 = vmatmul.mubr.bf16.gmra.mrb[0].mxu0 %v606
  %v891 = vpop.f32.mrb[0].mxu0
  %v892 = vadd.f32 %v639, %v891
  %v893 = vpop.f32.mrb[0].mxu0
  %v894 = vpop.f32.mrb[0].mxu0
  %v895 = vadd.f32 %v639, %v894
  %v896 = vpop.f32.mrb[0].mxu0
  %897 = vmatprep.mubr.bf16.mxu0 0
  %898 = vmatmul.mubr.bf16.gmra.mrb[0].mxu0 %v607
  %v899 = vpop.f32.mrb[0].mxu0
  %v900 = vadd.f32 %v639, %v899
  %v901 = vpop.f32.mrb[0].mxu0
  %v902 = vpop.f32.mrb[0].mxu0
  %v903 = vadd.f32 %v639, %v902
  %v904 = vpop.f32.mrb[0].mxu0
  %905 = vmatprep.mubr.bf16.mxu0 0
  %906 = vmatmul.mubr.bf16.gmra.mrb[0].mxu0 %v608
  %v907 = vpop.f32.mrb[0].mxu0
  %v908 = vadd.f32 %v639, %v907
  %v909 = vpop.f32.mrb[0].mxu0
  %v910 = vpop.f32.mrb[0].mxu0
  %v911 = vadd.f32 %v639, %v910
  %v912 = vpop.f32.mrb[0].mxu0
  %913 = vmatprep.mubr.bf16.mxu0 0
  %914 = vmatmul.mubr.bf16.gmra.mrb[0].mxu0 %v609
  %v915 = vpop.f32.mrb[0].mxu0
  %v916 = vadd.f32 %v639, %v915
  %v917 = vpop.f32.mrb[0].mxu0
  %v918 = vpop.f32.mrb[0].mxu0
  %v919 = vadd.f32 %v639, %v918
  %v920 = vpop.f32.mrb[0].mxu0
  %921 = vmatprep.mubr.bf16.mxu0 0
  %922 = vmatmul.mubr.bf16.gmra.mrb[0].mxu0 %v610
  %v923 = vpop.f32.mrb[0].mxu0
  %v924 = vadd.f32 %v639, %v923
  %v925 = vpop.f32.mrb[0].mxu0
  %v926 = vpop.f32.mrb[0].mxu0
  %v927 = vadd.f32 %v639, %v926
  %v928 = vpop.f32.mrb[0].mxu0
  %929 = vmatprep.mubr.bf16.mxu0 0
  %930 = vmatmul.mubr.bf16.gmra.mrb[0].mxu0 %v611
  %v931 = vpop.f32.mrb[0].mxu0
  %v932 = vadd.f32 %v639, %v931
  %v933 = vpop.f32.mrb[0].mxu0
  %v934 = vpop.f32.mrb[0].mxu0
  %v935 = vadd.f32 %v639, %v934
  %v936 = vpop.f32.mrb[0].mxu0
  %937 = vmatprep.mubr.bf16.mxu0 0
  %938 = vmatmul.mubr.bf16.gmra.mrb[0].mxu0 %v612
  %v939 = vpop.f32.mrb[0].mxu0
  %v940 = vadd.f32 %v639, %v939
  %v941 = vpop.f32.mrb[0].mxu0
  %v942 = vpop.f32.mrb[0].mxu0
  %v943 = vadd.f32 %v639, %v942
  %v944 = vpop.f32.mrb[0].mxu0
  %945 = vmatprep.mubr.bf16.mxu0 0
  %946 = vmatmul.mubr.bf16.gmra.mrb[0].mxu0 %v613
  %v947 = vpop.f32.mrb[0].mxu0
  %v948 = vadd.f32 %v639, %v947
  %v949 = vpop.f32.mrb[0].mxu0
  %v950 = vpop.f32.mrb[0].mxu0
  %v951 = vadd.f32 %v639, %v950
  %v952 = vpop.f32.mrb[0].mxu0
  %953 = vmatprep.mubr.bf16.mxu0 0
  %954 = vmatmul.mubr.bf16.gmra.mrb[0].mxu0 %v614
  %v955 = vpop.f32.mrb[0].mxu0
  %v956 = vadd.f32 %v639, %v955
  %v957 = vpop.f32.mrb[0].mxu0
  %v958 = vpop.f32.mrb[0].mxu0
  %v959 = vadd.f32 %v639, %v958
  %v960 = vpop.f32.mrb[0].mxu0
  %961 = vmatprep.mubr.bf16.mxu0 0
  %962 = vmatmul.mubr.bf16.gmra.mrb[0].mxu0 %v615
  %v963 = vpop.f32.mrb[0].mxu0
  %v964 = vadd.f32 %v639, %v963
  %v965 = vpop.f32.mrb[0].mxu0
  %v966 = vpop.f32.mrb[0].mxu0
  %v967 = vadd.f32 %v639, %v966
  %v968 = vpop.f32.mrb[0].mxu0
  %969 = vmatprep.mubr.bf16.mxu0 0
  %970 = vmatmul.mubr.bf16.gmra.mrb[0].mxu0 %v616
  %v971 = vpop.f32.mrb[0].mxu0
  %v972 = vadd.f32 %v639, %v971
  %v973 = vpop.f32.mrb[0].mxu0
  %v974 = vpop.f32.mrb[0].mxu0
  %v975 = vadd.f32 %v639, %v974
  %v976 = vpop.f32.mrb[0].mxu0
  %977 = vdwg.mxu0
  %v978 = vmax.f32 %v724, 0.0
  %v979 = vmax.f32 %v727, 0.0
  %v980 = vmax.f32 %v732, 0.0
  %v981 = vmax.f32 %v735, 0.0
  %v982 = vmax.f32 %v740, 0.0
  %v983 = vmax.f32 %v743, 0.0
  %v984 = vmax.f32 %v748, 0.0
  %v985 = vmax.f32 %v751, 0.0
  %v986 = vmax.f32 %v756, 0.0
  %v987 = vmax.f32 %v759, 0.0
  %v988 = vmax.f32 %v764, 0.0
  %v989 = vmax.f32 %v767, 0.0
  %v990 = vmax.f32 %v772, 0.0
  %v991 = vmax.f32 %v775, 0.0
  %v992 = vmax.f32 %v780, 0.0
  %v993 = vmax.f32 %v783, 0.0
  %v994 = vmax.f32 %v788, 0.0
  %v995 = vmax.f32 %v791, 0.0
  %v996 = vmax.f32 %v796, 0.0
  %v997 = vmax.f32 %v799, 0.0
  %v998 = vmax.f32 %v804, 0.0
  %v999 = vmax.f32 %v807, 0.0
  %v1000 = vmax.f32 %v812, 0.0
  %v1001 = vmax.f32 %v815, 0.0
  %v1002 = vmax.f32 %v820, 0.0
  %v1003 = vmax.f32 %v823, 0.0
  %v1004 = vmax.f32 %v828, 0.0
  %v1005 = vmax.f32 %v831, 0.0
  %v1006 = vmax.f32 %v836, 0.0
  %v1007 = vmax.f32 %v839, 0.0
  %v1008 = vmax.f32 %v844, 0.0
  %v1009 = vmax.f32 %v847, 0.0
  %v1010 = vmax.f32 %v852, 0.0
  %v1011 = vmax.f32 %v855, 0.0
  %v1012 = vmax.f32 %v860, 0.0
  %v1013 = vmax.f32 %v863, 0.0
  %v1014 = vmax.f32 %v868, 0.0
  %v1015 = vmax.f32 %v871, 0.0
  %v1016 = vmax.f32 %v876, 0.0
  %v1017 = vmax.f32 %v879, 0.0
  %v1018 = vmax.f32 %v884, 0.0
  %v1019 = vmax.f32 %v887, 0.0
  %v1020 = vmax.f32 %v892, 0.0
  %v1021 = vmax.f32 %v895, 0.0
  %v1022 = vmax.f32 %v900, 0.0
  %v1023 = vmax.f32 %v903, 0.0
  %v1024 = vmax.f32 %v908, 0.0
  %v1025 = vmax.f32 %v911, 0.0
  %v1026 = vmax.f32 %v916, 0.0
  %v1027 = vmax.f32 %v919, 0.0
  %v1028 = vmax.f32 %v924, 0.0
  %v1029 = vmax.f32 %v927, 0.0
  %v1030 = vmax.f32 %v932, 0.0
  %v1031 = vmax.f32 %v935, 0.0
  %v1032 = vmax.f32 %v940, 0.0
  %v1033 = vmax.f32 %v943, 0.0
  %v1034 = vmax.f32 %v948, 0.0
  %v1035 = vmax.f32 %v951, 0.0
  %v1036 = vmax.f32 %v956, 0.0
  %v1037 = vmax.f32 %v959, 0.0
  %v1038 = vmax.f32 %v964, 0.0
  %v1039 = vmax.f32 %v967, 0.0
  %v1040 = vmax.f32 %v972, 0.0
  %v1041 = vmax.f32 %v975, 0.0
  %v1042 = vpack.c.bf16 %v979, %v978
  %v1043 = vpack.c.bf16 %v981, %v980
  %v1044 = vpack.c.bf16 %v983, %v982
  %v1045 = vpack.c.bf16 %v985, %v984
  %v1046 = vpack.c.bf16 %v987, %v986
  %v1047 = vpack.c.bf16 %v989, %v988
  %v1048 = vpack.c.bf16 %v991, %v990
  %v1049 = vpack.c.bf16 %v993, %v992
  %v1050 = vpack.c.bf16 %v995, %v994
  %v1051 = vpack.c.bf16 %v997, %v996
  %v1052 = vpack.c.bf16 %v999, %v998
  %v1053 = vpack.c.bf16 %v1001, %v1000
  %v1054 = vpack.c.bf16 %v1003, %v1002
  %v1055 = vpack.c.bf16 %v1005, %v1004
  %v1056 = vpack.c.bf16 %v1007, %v1006
  %v1057 = vpack.c.bf16 %v1009, %v1008
  %v1058 = vpack.c.bf16 %v1011, %v1010
  %v1059 = vpack.c.bf16 %v1013, %v1012
  %v1060 = vpack.c.bf16 %v1015, %v1014
  %v1061 = vpack.c.bf16 %v1017, %v1016
  %v1062 = vpack.c.bf16 %v1019, %v1018
  %v1063 = vpack.c.bf16 %v1021, %v1020
  %v1064 = vpack.c.bf16 %v1023, %v1022
  %v1065 = vpack.c.bf16 %v1025, %v1024
  %v1066 = vpack.c.bf16 %v1027, %v1026
  %v1067 = vpack.c.bf16 %v1029, %v1028
  %v1068 = vpack.c.bf16 %v1031, %v1030
  %v1069 = vpack.c.bf16 %v1033, %v1032
  %v1070 = vpack.c.bf16 %v1035, %v1034
  %v1071 = vpack.c.bf16 %v1037, %v1036
  %v1072 = vpack.c.bf16 %v1039, %v1038
  %v1073 = vpack.c.bf16 %v1041, %v1040
  %s1074 = scalar_lea.vmem %s2, 64
  %v1075 = vld [vmem:[%s1074] sm:$0xf]
  %v1076 = vld [vmem:[%s1074 + $0x4] sm:$0xf]
  %v1077 = vld [vmem:[%s1074 + $0x8] sm:$0xf]
  %v1078 = vld [vmem:[%s1074 + $0xc] sm:$0xf]
  %v1079 = vld [vmem:[%s1074 + $0x10] sm:$0xf]
  %v1080 = vld [vmem:[%s1074 + $0x14] sm:$0xf]
  %v1081 = vld [vmem:[%s1074 + $0x18] sm:$0xf]
  %v1082 = vld [vmem:[%s1074 + $0x1c] sm:$0xf]
  %v1083 = vld [vmem:[%s1074 + $0x20] sm:$0xf]
  %v1084 = vld [vmem:[%s1074 + $0x24] sm:$0xf]
  %v1085 = vld [vmem:[%s1074 + $0x28] sm:$0xf]
  %v1086 = vld [vmem:[%s1074 + $0x2c] sm:$0xf]
  %v1087 = vld [vmem:[%s1074 + $0x30] sm:$0xf]
  %v1088 = vld [vmem:[%s1074 + $0x34] sm:$0xf]
  %v1089 = vld [vmem:[%s1074 + $0x38] sm:$0xf]
  %v1090 = vld [vmem:[%s1074 + $0x3c] sm:$0xf]
  %s1091 = scalar_lea.vmem %s3, 2
  %v1092 = vld [vmem:[%s1091] sm:$0x1]
  %v1094 = vlaneseq
  %v1095 = vshrl.u32 %v1094, 7
  %v1096 = vsub.s32 0, %v1095
  %v1097 = vrot.slane %v1092, %v1096
  %v1115 = vunpack.c.l.b16 %v1075
  %v1116 = vunpack.c.l.b16 %v1076
  %v1117 = vunpack.c.l.b16 %v1077
  %v1118 = vunpack.c.l.b16 %v1078
  %v1119 = vunpack.c.l.b16 %v1079
  %v1120 = vunpack.c.l.b16 %v1080
  %v1121 = vunpack.c.l.b16 %v1081
  %v1122 = vunpack.c.l.b16 %v1082
  %v1123 = vunpack.c.l.b16 %v1083
  %v1124 = vunpack.c.l.b16 %v1084
  %v1125 = vunpack.c.l.b16 %v1085
  %v1126 = vunpack.c.l.b16 %v1086
  %v1127 = vunpack.c.l.b16 %v1087
  %v1128 = vunpack.c.l.b16 %v1088
  %v1129 = vunpack.c.l.b16 %v1089
  %v1130 = vunpack.c.l.b16 %v1090
  %v1131 = vpack.c.b16 %v1116, %v1115
  %v1132 = vpack.c.b16 %v1118, %v1117
  %v1133 = vpack.c.b16 %v1120, %v1119
  %v1134 = vpack.c.b16 %v1122, %v1121
  %v1135 = vpack.c.b16 %v1124, %v1123
  %v1136 = vpack.c.b16 %v1126, %v1125
  %v1137 = vpack.c.b16 %v1128, %v1127
  %v1138 = vpack.c.b16 %v1130, %v1129
  %1147 = vmatprep.subr.bf16.mxu0 0
  %1148 = vmatpush1.bf16.msra.mxu0 %v1131
  %1149 = vmatprep.subr.bf16.mxu0 0
  %1150 = vmatpush1.bf16.msra.mxu0 %v1132
  %1151 = vmatprep.subr.bf16.mxu0 0
  %1152 = vmatpush1.bf16.msra.mxu0 %v1133
  %1153 = vmatprep.subr.bf16.mxu0 0
  %1154 = vmatpush1.bf16.msra.mxu0 %v1134
  %1155 = vmatprep.subr.bf16.mxu0 0
  %1156 = vmatpush1.bf16.msra.mxu0 %v1135
  %1157 = vmatprep.subr.bf16.mxu0 0
  %1158 = vmatpush1.bf16.msra.mxu0 %v1136
  %1159 = vmatprep.subr.bf16.mxu0 0
  %1160 = vmatpush1.bf16.msra.mxu0 %v1137
  %1161 = vmatprep.subr.bf16.mxu0 0
  %1162 = vmatpush1.bf16.msra.mxu0 %v1138
  %1163 = vmatprep.subr.bf16.mxu0 0
  %1164 = vmatpush1.bf16.msra.mxu0 0
  %1165 = vmatprep.subr.bf16.mxu0 0
  %1166 = vmatpush1.bf16.msra.mxu0 0
  %1167 = vmatprep.subr.bf16.mxu0 0
  %1168 = vmatpush1.bf16.msra.mxu0 0
  %1169 = vmatprep.subr.bf16.mxu0 0
  %1170 = vmatpush1.bf16.msra.mxu0 0
  %1171 = vmatprep.subr.bf16.mxu0 0
  %1172 = vmatpush1.bf16.msra.mxu0 0
  %1173 = vmatprep.subr.bf16.mxu0 0
  %1174 = vmatpush1.bf16.msra.mxu0 0
  %1175 = vmatprep.subr.bf16.mxu0 0
  %1176 = vmatpush1.bf16.msra.mxu0 0
  %1177 = vmatprep.subr.bf16.mxu0 0
  %1178 = vmatpush1.bf16.msra.mxu0 0
  %1179 = vmatprep.mubr.bf16.mxu0 0
  %1180 = vmatmul.mubr.bf16.gmra.mrb[0].mxu0 %v1042
  %v1181 = vpop.f32.mrb[0].mxu0
  %v1182 = vadd.f32 %v1097, %v1181
  %v1183 = vpop.f32.mrb[0].mxu0
  %v1184 = vpop.f32.mrb[0].mxu0
  %v1185 = vadd.f32 %v1097, %v1184
  %v1186 = vpop.f32.mrb[0].mxu0
  %1187 = vmatprep.mubr.bf16.mxu0 0
  %1188 = vmatmul.mubr.bf16.gmra.mrb[0].mxu0 %v1043
  %v1189 = vpop.f32.mrb[0].mxu0
  %v1190 = vadd.f32 %v1097, %v1189
  %v1191 = vpop.f32.mrb[0].mxu0
  %v1192 = vpop.f32.mrb[0].mxu0
  %v1193 = vadd.f32 %v1097, %v1192
  %v1194 = vpop.f32.mrb[0].mxu0
  %1195 = vmatprep.mubr.bf16.mxu0 0
  %1196 = vmatmul.mubr.bf16.gmra.mrb[0].mxu0 %v1044
  %v1197 = vpop.f32.mrb[0].mxu0
  %v1198 = vadd.f32 %v1097, %v1197
  %v1199 = vpop.f32.mrb[0].mxu0
  %v1200 = vpop.f32.mrb[0].mxu0
  %v1201 = vadd.f32 %v1097, %v1200
  %v1202 = vpop.f32.mrb[0].mxu0
  %1203 = vmatprep.mubr.bf16.mxu0 0
  %1204 = vmatmul.mubr.bf16.gmra.mrb[0].mxu0 %v1045
  %v1205 = vpop.f32.mrb[0].mxu0
  %v1206 = vadd.f32 %v1097, %v1205
  %v1207 = vpop.f32.mrb[0].mxu0
  %v1208 = vpop.f32.mrb[0].mxu0
  %v1209 = vadd.f32 %v1097, %v1208
  %v1210 = vpop.f32.mrb[0].mxu0
  %1211 = vmatprep.mubr.bf16.mxu0 0
  %1212 = vmatmul.mubr.bf16.gmra.mrb[0].mxu0 %v1046
  %v1213 = vpop.f32.mrb[0].mxu0
  %v1214 = vadd.f32 %v1097, %v1213
  %v1215 = vpop.f32.mrb[0].mxu0
  %v1216 = vpop.f32.mrb[0].mxu0
  %v1217 = vadd.f32 %v1097, %v1216
  %v1218 = vpop.f32.mrb[0].mxu0
  %1219 = vmatprep.mubr.bf16.mxu0 0
  %1220 = vmatmul.mubr.bf16.gmra.mrb[0].mxu0 %v1047
  %v1221 = vpop.f32.mrb[0].mxu0
  %v1222 = vadd.f32 %v1097, %v1221
  %v1223 = vpop.f32.mrb[0].mxu0
  %v1224 = vpop.f32.mrb[0].mxu0
  %v1225 = vadd.f32 %v1097, %v1224
  %v1226 = vpop.f32.mrb[0].mxu0
  %1227 = vmatprep.mubr.bf16.mxu0 0
  %1228 = vmatmul.mubr.bf16.gmra.mrb[0].mxu0 %v1048
  %v1229 = vpop.f32.mrb[0].mxu0
  %v1230 = vadd.f32 %v1097, %v1229
  %v1231 = vpop.f32.mrb[0].mxu0
  %v1232 = vpop.f32.mrb[0].mxu0
  %v1233 = vadd.f32 %v1097, %v1232
  %v1234 = vpop.f32.mrb[0].mxu0
  %1235 = vmatprep.mubr.bf16.mxu0 0
  %1236 = vmatmul.mubr.bf16.gmra.mrb[0].mxu0 %v1049
  %v1237 = vpop.f32.mrb[0].mxu0
  %v1238 = vadd.f32 %v1097, %v1237
  %v1239 = vpop.f32.mrb[0].mxu0
  %v1240 = vpop.f32.mrb[0].mxu0
  %v1241 = vadd.f32 %v1097, %v1240
  %v1242 = vpop.f32.mrb[0].mxu0
  %1243 = vmatprep.mubr.bf16.mxu0 0
  %1244 = vmatmul.mubr.bf16.gmra.mrb[0].mxu0 %v1050
  %v1245 = vpop.f32.mrb[0].mxu0
  %v1246 = vadd.f32 %v1097, %v1245
  %v1247 = vpop.f32.mrb[0].mxu0
  %v1248 = vpop.f32.mrb[0].mxu0
  %v1249 = vadd.f32 %v1097, %v1248
  %v1250 = vpop.f32.mrb[0].mxu0
  %1251 = vmatprep.mubr.bf16.mxu0 0
  %1252 = vmatmul.mubr.bf16.gmra.mrb[0].mxu0 %v1051
  %v1253 = vpop.f32.mrb[0].mxu0
  %v1254 = vadd.f32 %v1097, %v1253
  %v1255 = vpop.f32.mrb[0].mxu0
  %v1256 = vpop.f32.mrb[0].mxu0
  %v1257 = vadd.f32 %v1097, %v1256
  %v1258 = vpop.f32.mrb[0].mxu0
  %1259 = vmatprep.mubr.bf16.mxu0 0
  %1260 = vmatmul.mubr.bf16.gmra.mrb[0].mxu0 %v1052
  %v1261 = vpop.f32.mrb[0].mxu0
  %v1262 = vadd.f32 %v1097, %v1261
  %v1263 = vpop.f32.mrb[0].mxu0
  %v1264 = vpop.f32.mrb[0].mxu0
  %v1265 = vadd.f32 %v1097, %v1264
  %v1266 = vpop.f32.mrb[0].mxu0
  %1267 = vmatprep.mubr.bf16.mxu0 0
  %1268 = vmatmul.mubr.bf16.gmra.mrb[0].mxu0 %v1053
  %v1269 = vpop.f32.mrb[0].mxu0
  %v1270 = vadd.f32 %v1097, %v1269
  %v1271 = vpop.f32.mrb[0].mxu0
  %v1272 = vpop.f32.mrb[0].mxu0
  %v1273 = vadd.f32 %v1097, %v1272
  %v1274 = vpop.f32.mrb[0].mxu0
  %1275 = vmatprep.mubr.bf16.mxu0 0
  %1276 = vmatmul.mubr.bf16.gmra.mrb[0].mxu0 %v1054
  %v1277 = vpop.f32.mrb[0].mxu0
  %v1278 = vadd.f32 %v1097, %v1277
  %v1279 = vpop.f32.mrb[0].mxu0
  %v1280 = vpop.f32.mrb[0].mxu0
  %v1281 = vadd.f32 %v1097, %v1280
  %v1282 = vpop.f32.mrb[0].mxu0
  %1283 = vmatprep.mubr.bf16.mxu0 0
  %1284 = vmatmul.mubr.bf16.gmra.mrb[0].mxu0 %v1055
  %v1285 = vpop.f32.mrb[0].mxu0
  %v1286 = vadd.f32 %v1097, %v1285
  %v1287 = vpop.f32.mrb[0].mxu0
  %v1288 = vpop.f32.mrb[0].mxu0
  %v1289 = vadd.f32 %v1097, %v1288
  %v1290 = vpop.f32.mrb[0].mxu0
  %1291 = vmatprep.mubr.bf16.mxu0 0
  %1292 = vmatmul.mubr.bf16.gmra.mrb[0].mxu0 %v1056
  %v1293 = vpop.f32.mrb[0].mxu0
  %v1294 = vadd.f32 %v1097, %v1293
  %v1295 = vpop.f32.mrb[0].mxu0
  %v1296 = vpop.f32.mrb[0].mxu0
  %v1297 = vadd.f32 %v1097, %v1296
  %v1298 = vpop.f32.mrb[0].mxu0
  %1299 = vmatprep.mubr.bf16.mxu0 0
  %1300 = vmatmul.mubr.bf16.gmra.mrb[0].mxu0 %v1057
  %v1301 = vpop.f32.mrb[0].mxu0
  %v1302 = vadd.f32 %v1097, %v1301
  %v1303 = vpop.f32.mrb[0].mxu0
  %v1304 = vpop.f32.mrb[0].mxu0
  %v1305 = vadd.f32 %v1097, %v1304
  %v1306 = vpop.f32.mrb[0].mxu0
  %1307 = vmatprep.mubr.bf16.mxu0 0
  %1308 = vmatmul.mubr.bf16.gmra.mrb[0].mxu0 %v1058
  %v1309 = vpop.f32.mrb[0].mxu0
  %v1310 = vadd.f32 %v1097, %v1309
  %v1311 = vpop.f32.mrb[0].mxu0
  %v1312 = vpop.f32.mrb[0].mxu0
  %v1313 = vadd.f32 %v1097, %v1312
  %v1314 = vpop.f32.mrb[0].mxu0
  %1315 = vmatprep.mubr.bf16.mxu0 0
  %1316 = vmatmul.mubr.bf16.gmra.mrb[0].mxu0 %v1059
  %v1317 = vpop.f32.mrb[0].mxu0
  %v1318 = vadd.f32 %v1097, %v1317
  %v1319 = vpop.f32.mrb[0].mxu0
  %v1320 = vpop.f32.mrb[0].mxu0
  %v1321 = vadd.f32 %v1097, %v1320
  %v1322 = vpop.f32.mrb[0].mxu0
  %1323 = vmatprep.mubr.bf16.mxu0 0
  %1324 = vmatmul.mubr.bf16.gmra.mrb[0].mxu0 %v1060
  %v1325 = vpop.f32.mrb[0].mxu0
  %v1326 = vadd.f32 %v1097, %v1325
  %v1327 = vpop.f32.mrb[0].mxu0
  %v1328 = vpop.f32.mrb[0].mxu0
  %v1329 = vadd.f32 %v1097, %v1328
  %v1330 = vpop.f32.mrb[0].mxu0
  %1331 = vmatprep.mubr.bf16.mxu0 0
  %1332 = vmatmul.mubr.bf16.gmra.mrb[0].mxu0 %v1061
  %v1333 = vpop.f32.mrb[0].mxu0
  %v1334 = vadd.f32 %v1097, %v1333
  %v1335 = vpop.f32.mrb[0].mxu0
  %v1336 = vpop.f32.mrb[0].mxu0
  %v1337 = vadd.f32 %v1097, %v1336
  %v1338 = vpop.f32.mrb[0].mxu0
  %1339 = vmatprep.mubr.bf16.mxu0 0
  %1340 = vmatmul.mubr.bf16.gmra.mrb[0].mxu0 %v1062
  %v1341 = vpop.f32.mrb[0].mxu0
  %v1342 = vadd.f32 %v1097, %v1341
  %v1343 = vpop.f32.mrb[0].mxu0
  %v1344 = vpop.f32.mrb[0].mxu0
  %v1345 = vadd.f32 %v1097, %v1344
  %v1346 = vpop.f32.mrb[0].mxu0
  %1347 = vmatprep.mubr.bf16.mxu0 0
  %1348 = vmatmul.mubr.bf16.gmra.mrb[0].mxu0 %v1063
  %v1349 = vpop.f32.mrb[0].mxu0
  %v1350 = vadd.f32 %v1097, %v1349
  %v1351 = vpop.f32.mrb[0].mxu0
  %v1352 = vpop.f32.mrb[0].mxu0
  %v1353 = vadd.f32 %v1097, %v1352
  %v1354 = vpop.f32.mrb[0].mxu0
  %1355 = vmatprep.mubr.bf16.mxu0 0
  %1356 = vmatmul.mubr.bf16.gmra.mrb[0].mxu0 %v1064
  %v1357 = vpop.f32.mrb[0].mxu0
  %v1358 = vadd.f32 %v1097, %v1357
  %v1359 = vpop.f32.mrb[0].mxu0
  %v1360 = vpop.f32.mrb[0].mxu0
  %v1361 = vadd.f32 %v1097, %v1360
  %v1362 = vpop.f32.mrb[0].mxu0
  %1363 = vmatprep.mubr.bf16.mxu0 0
  %1364 = vmatmul.mubr.bf16.gmra.mrb[0].mxu0 %v1065
  %v1365 = vpop.f32.mrb[0].mxu0
  %v1366 = vadd.f32 %v1097, %v1365
  %v1367 = vpop.f32.mrb[0].mxu0
  %v1368 = vpop.f32.mrb[0].mxu0
  %v1369 = vadd.f32 %v1097, %v1368
  %v1370 = vpop.f32.mrb[0].mxu0
  %1371 = vmatprep.mubr.bf16.mxu0 0
  %1372 = vmatmul.mubr.bf16.gmra.mrb[0].mxu0 %v1066
  %v1373 = vpop.f32.mrb[0].mxu0
  %v1374 = vadd.f32 %v1097, %v1373
  %v1375 = vpop.f32.mrb[0].mxu0
  %v1376 = vpop.f32.mrb[0].mxu0
  %v1377 = vadd.f32 %v1097, %v1376
  %v1378 = vpop.f32.mrb[0].mxu0
  %1379 = vmatprep.mubr.bf16.mxu0 0
  %1380 = vmatmul.mubr.bf16.gmra.mrb[0].mxu0 %v1067
  %v1381 = vpop.f32.mrb[0].mxu0
  %v1382 = vadd.f32 %v1097, %v1381
  %v1383 = vpop.f32.mrb[0].mxu0
  %v1384 = vpop.f32.mrb[0].mxu0
  %v1385 = vadd.f32 %v1097, %v1384
  %v1386 = vpop.f32.mrb[0].mxu0
  %1387 = vmatprep.mubr.bf16.mxu0 0
  %1388 = vmatmul.mubr.bf16.gmra.mrb[0].mxu0 %v1068
  %v1389 = vpop.f32.mrb[0].mxu0
  %v1390 = vadd.f32 %v1097, %v1389
  %v1391 = vpop.f32.mrb[0].mxu0
  %v1392 = vpop.f32.mrb[0].mxu0
  %v1393 = vadd.f32 %v1097, %v1392
  %v1394 = vpop.f32.mrb[0].mxu0
  %1395 = vmatprep.mubr.bf16.mxu0 0
  %1396 = vmatmul.mubr.bf16.gmra.mrb[0].mxu0 %v1069
  %v1397 = vpop.f32.mrb[0].mxu0
  %v1398 = vadd.f32 %v1097, %v1397
  %v1399 = vpop.f32.mrb[0].mxu0
  %v1400 = vpop.f32.mrb[0].mxu0
  %v1401 = vadd.f32 %v1097, %v1400
  %v1402 = vpop.f32.mrb[0].mxu0
  %1403 = vmatprep.mubr.bf16.mxu0 0
  %1404 = vmatmul.mubr.bf16.gmra.mrb[0].mxu0 %v1070
  %v1405 = vpop.f32.mrb[0].mxu0
  %v1406 = vadd.f32 %v1097, %v1405
  %v1407 = vpop.f32.mrb[0].mxu0
  %v1408 = vpop.f32.mrb[0].mxu0
  %v1409 = vadd.f32 %v1097, %v1408
  %v1410 = vpop.f32.mrb[0].mxu0
  %1411 = vmatprep.mubr.bf16.mxu0 0
  %1412 = vmatmul.mubr.bf16.gmra.mrb[0].mxu0 %v1071
  %v1413 = vpop.f32.mrb[0].mxu0
  %v1414 = vadd.f32 %v1097, %v1413
  %v1415 = vpop.f32.mrb[0].mxu0
  %v1416 = vpop.f32.mrb[0].mxu0
  %v1417 = vadd.f32 %v1097, %v1416
  %v1418 = vpop.f32.mrb[0].mxu0
  %1419 = vmatprep.mubr.bf16.mxu0 0
  %1420 = vmatmul.mubr.bf16.gmra.mrb[0].mxu0 %v1072
  %v1421 = vpop.f32.mrb[0].mxu0
  %v1422 = vadd.f32 %v1097, %v1421
  %v1423 = vpop.f32.mrb[0].mxu0
  %v1424 = vpop.f32.mrb[0].mxu0
  %v1425 = vadd.f32 %v1097, %v1424
  %v1426 = vpop.f32.mrb[0].mxu0
  %1427 = vmatprep.mubr.bf16.mxu0 0
  %1428 = vmatmul.mubr.bf16.gmra.mrb[0].mxu0 %v1073
  %v1429 = vpop.f32.mrb[0].mxu0
  %v1430 = vadd.f32 %v1097, %v1429
  %v1431 = vpop.f32.mrb[0].mxu0
  %v1432 = vpop.f32.mrb[0].mxu0
  %v1433 = vadd.f32 %v1097, %v1432
  %v1434 = vpop.f32.mrb[0].mxu0
  %1435 = vdwg.mxu0
  %v1436 = vmax.f32 %v1182, 0.0
  %v1437 = vmax.f32 %v1185, 0.0
  %v1438 = vmax.f32 %v1190, 0.0
  %v1439 = vmax.f32 %v1193, 0.0
  %v1440 = vmax.f32 %v1198, 0.0
  %v1441 = vmax.f32 %v1201, 0.0
  %v1442 = vmax.f32 %v1206, 0.0
  %v1443 = vmax.f32 %v1209, 0.0
  %v1444 = vmax.f32 %v1214, 0.0
  %v1445 = vmax.f32 %v1217, 0.0
  %v1446 = vmax.f32 %v1222, 0.0
  %v1447 = vmax.f32 %v1225, 0.0
  %v1448 = vmax.f32 %v1230, 0.0
  %v1449 = vmax.f32 %v1233, 0.0
  %v1450 = vmax.f32 %v1238, 0.0
  %v1451 = vmax.f32 %v1241, 0.0
  %v1452 = vmax.f32 %v1246, 0.0
  %v1453 = vmax.f32 %v1249, 0.0
  %v1454 = vmax.f32 %v1254, 0.0
  %v1455 = vmax.f32 %v1257, 0.0
  %v1456 = vmax.f32 %v1262, 0.0
  %v1457 = vmax.f32 %v1265, 0.0
  %v1458 = vmax.f32 %v1270, 0.0
  %v1459 = vmax.f32 %v1273, 0.0
  %v1460 = vmax.f32 %v1278, 0.0
  %v1461 = vmax.f32 %v1281, 0.0
  %v1462 = vmax.f32 %v1286, 0.0
  %v1463 = vmax.f32 %v1289, 0.0
  %v1464 = vmax.f32 %v1294, 0.0
  %v1465 = vmax.f32 %v1297, 0.0
  %v1466 = vmax.f32 %v1302, 0.0
  %v1467 = vmax.f32 %v1305, 0.0
  %v1468 = vmax.f32 %v1310, 0.0
  %v1469 = vmax.f32 %v1313, 0.0
  %v1470 = vmax.f32 %v1318, 0.0
  %v1471 = vmax.f32 %v1321, 0.0
  %v1472 = vmax.f32 %v1326, 0.0
  %v1473 = vmax.f32 %v1329, 0.0
  %v1474 = vmax.f32 %v1334, 0.0
  %v1475 = vmax.f32 %v1337, 0.0
  %v1476 = vmax.f32 %v1342, 0.0
  %v1477 = vmax.f32 %v1345, 0.0
  %v1478 = vmax.f32 %v1350, 0.0
  %v1479 = vmax.f32 %v1353, 0.0
  %v1480 = vmax.f32 %v1358, 0.0
  %v1481 = vmax.f32 %v1361, 0.0
  %v1482 = vmax.f32 %v1366, 0.0
  %v1483 = vmax.f32 %v1369, 0.0
  %v1484 = vmax.f32 %v1374, 0.0
  %v1485 = vmax.f32 %v1377, 0.0
  %v1486 = vmax.f32 %v1382, 0.0
  %v1487 = vmax.f32 %v1385, 0.0
  %v1488 = vmax.f32 %v1390, 0.0
  %v1489 = vmax.f32 %v1393, 0.0
  %v1490 = vmax.f32 %v1398, 0.0
  %v1491 = vmax.f32 %v1401, 0.0
  %v1492 = vmax.f32 %v1406, 0.0
  %v1493 = vmax.f32 %v1409, 0.0
  %v1494 = vmax.f32 %v1414, 0.0
  %v1495 = vmax.f32 %v1417, 0.0
  %v1496 = vmax.f32 %v1422, 0.0
  %v1497 = vmax.f32 %v1425, 0.0
  %v1498 = vmax.f32 %v1430, 0.0
  %v1499 = vmax.f32 %v1433, 0.0
  %v1500 = vpack.c.bf16 %v1437, %v1436
  %v1501 = vpack.c.bf16 %v1439, %v1438
  %v1502 = vpack.c.bf16 %v1441, %v1440
  %v1503 = vpack.c.bf16 %v1443, %v1442
  %v1504 = vpack.c.bf16 %v1445, %v1444
  %v1505 = vpack.c.bf16 %v1447, %v1446
  %v1506 = vpack.c.bf16 %v1449, %v1448
  %v1507 = vpack.c.bf16 %v1451, %v1450
  %v1508 = vpack.c.bf16 %v1453, %v1452
  %v1509 = vpack.c.bf16 %v1455, %v1454
  %v1510 = vpack.c.bf16 %v1457, %v1456
  %v1511 = vpack.c.bf16 %v1459, %v1458
  %v1512 = vpack.c.bf16 %v1461, %v1460
  %v1513 = vpack.c.bf16 %v1463, %v1462
  %v1514 = vpack.c.bf16 %v1465, %v1464
  %v1515 = vpack.c.bf16 %v1467, %v1466
  %v1516 = vpack.c.bf16 %v1469, %v1468
  %v1517 = vpack.c.bf16 %v1471, %v1470
  %v1518 = vpack.c.bf16 %v1473, %v1472
  %v1519 = vpack.c.bf16 %v1475, %v1474
  %v1520 = vpack.c.bf16 %v1477, %v1476
  %v1521 = vpack.c.bf16 %v1479, %v1478
  %v1522 = vpack.c.bf16 %v1481, %v1480
  %v1523 = vpack.c.bf16 %v1483, %v1482
  %v1524 = vpack.c.bf16 %v1485, %v1484
  %v1525 = vpack.c.bf16 %v1487, %v1486
  %v1526 = vpack.c.bf16 %v1489, %v1488
  %v1527 = vpack.c.bf16 %v1491, %v1490
  %v1528 = vpack.c.bf16 %v1493, %v1492
  %v1529 = vpack.c.bf16 %v1495, %v1494
  %v1530 = vpack.c.bf16 %v1497, %v1496
  %v1531 = vpack.c.bf16 %v1499, %v1498
  %s1532 = scalar_lea.vmem %s2, 128
  %v1533 = vld [vmem:[%s1532] sm:$0xf]
  %v1534 = vld [vmem:[%s1532 + $0x4] sm:$0xf]
  %v1535 = vld [vmem:[%s1532 + $0x8] sm:$0xf]
  %v1536 = vld [vmem:[%s1532 + $0xc] sm:$0xf]
  %v1537 = vld [vmem:[%s1532 + $0x10] sm:$0xf]
  %v1538 = vld [vmem:[%s1532 + $0x14] sm:$0xf]
  %v1539 = vld [vmem:[%s1532 + $0x18] sm:$0xf]
  %v1540 = vld [vmem:[%s1532 + $0x1c] sm:$0xf]
  %v1541 = vld [vmem:[%s1532 + $0x20] sm:$0xf]
  %v1542 = vld [vmem:[%s1532 + $0x24] sm:$0xf]
  %v1543 = vld [vmem:[%s1532 + $0x28] sm:$0xf]
  %v1544 = vld [vmem:[%s1532 + $0x2c] sm:$0xf]
  %v1545 = vld [vmem:[%s1532 + $0x30] sm:$0xf]
  %v1546 = vld [vmem:[%s1532 + $0x34] sm:$0xf]
  %v1547 = vld [vmem:[%s1532 + $0x38] sm:$0xf]
  %v1548 = vld [vmem:[%s1532 + $0x3c] sm:$0xf]
  %s1549 = scalar_lea.vmem %s3, 3
  %v1550 = vld [vmem:[%s1549] sm:$0x1]
  %v1552 = vlaneseq
  %v1553 = vshrl.u32 %v1552, 7
  %v1554 = vsub.s32 0, %v1553
  %v1555 = vrot.slane %v1550, %v1554
  %v1573 = vunpack.c.l.b16 %v1533
  %v1574 = vunpack.c.l.b16 %v1534
  %v1575 = vunpack.c.l.b16 %v1535
  %v1576 = vunpack.c.l.b16 %v1536
  %v1577 = vunpack.c.l.b16 %v1537
  %v1578 = vunpack.c.l.b16 %v1538
  %v1579 = vunpack.c.l.b16 %v1539
  %v1580 = vunpack.c.l.b16 %v1540
  %v1581 = vunpack.c.l.b16 %v1541
  %v1582 = vunpack.c.l.b16 %v1542
  %v1583 = vunpack.c.l.b16 %v1543
  %v1584 = vunpack.c.l.b16 %v1544
  %v1585 = vunpack.c.l.b16 %v1545
  %v1586 = vunpack.c.l.b16 %v1546
  %v1587 = vunpack.c.l.b16 %v1547
  %v1588 = vunpack.c.l.b16 %v1548
  %v1589 = vpack.c.b16 %v1574, %v1573
  %v1590 = vpack.c.b16 %v1576, %v1575
  %v1591 = vpack.c.b16 %v1578, %v1577
  %v1592 = vpack.c.b16 %v1580, %v1579
  %v1593 = vpack.c.b16 %v1582, %v1581
  %v1594 = vpack.c.b16 %v1584, %v1583
  %v1595 = vpack.c.b16 %v1586, %v1585
  %v1596 = vpack.c.b16 %v1588, %v1587
  %1605 = vmatprep.subr.bf16.mxu0 0
  %1606 = vmatpush1.bf16.msra.mxu0 %v1589
  %1607 = vmatprep.subr.bf16.mxu0 0
  %1608 = vmatpush1.bf16.msra.mxu0 %v1590
  %1609 = vmatprep.subr.bf16.mxu0 0
  %1610 = vmatpush1.bf16.msra.mxu0 %v1591
  %1611 = vmatprep.subr.bf16.mxu0 0
  %1612 = vmatpush1.bf16.msra.mxu0 %v1592
  %1613 = vmatprep.subr.bf16.mxu0 0
  %1614 = vmatpush1.bf16.msra.mxu0 %v1593
  %1615 = vmatprep.subr.bf16.mxu0 0
  %1616 = vmatpush1.bf16.msra.mxu0 %v1594
  %1617 = vmatprep.subr.bf16.mxu0 0
  %1618 = vmatpush1.bf16.msra.mxu0 %v1595
  %1619 = vmatprep.subr.bf16.mxu0 0
  %1620 = vmatpush1.bf16.msra.mxu0 %v1596
  %1621 = vmatprep.subr.bf16.mxu0 0
  %1622 = vmatpush1.bf16.msra.mxu0 0
  %1623 = vmatprep.subr.bf16.mxu0 0
  %1624 = vmatpush1.bf16.msra.mxu0 0
  %1625 = vmatprep.subr.bf16.mxu0 0
  %1626 = vmatpush1.bf16.msra.mxu0 0
  %1627 = vmatprep.subr.bf16.mxu0 0
  %1628 = vmatpush1.bf16.msra.mxu0 0
  %1629 = vmatprep.subr.bf16.mxu0 0
  %1630 = vmatpush1.bf16.msra.mxu0 0
  %1631 = vmatprep.subr.bf16.mxu0 0
  %1632 = vmatpush1.bf16.msra.mxu0 0
  %1633 = vmatprep.subr.bf16.mxu0 0
  %1634 = vmatpush1.bf16.msra.mxu0 0
  %1635 = vmatprep.subr.bf16.mxu0 0
  %1636 = vmatpush1.bf16.msra.mxu0 0
  %1637 = vmatprep.mubr.bf16.mxu0 0
  %1638 = vmatmul.mubr.bf16.gmra.mrb[0].mxu0 %v1500
  %v1639 = vpop.f32.mrb[0].mxu0
  %v1640 = vadd.f32 %v1555, %v1639
  %v1641 = vpop.f32.mrb[0].mxu0
  %v1642 = vpop.f32.mrb[0].mxu0
  %v1643 = vadd.f32 %v1555, %v1642
  %v1644 = vpop.f32.mrb[0].mxu0
  %1645 = vmatprep.mubr.bf16.mxu0 0
  %1646 = vmatmul.mubr.bf16.gmra.mrb[0].mxu0 %v1501
  %v1647 = vpop.f32.mrb[0].mxu0
  %v1648 = vadd.f32 %v1555, %v1647
  %v1649 = vpop.f32.mrb[0].mxu0
  %v1650 = vpop.f32.mrb[0].mxu0
  %v1651 = vadd.f32 %v1555, %v1650
  %v1652 = vpop.f32.mrb[0].mxu0
  %1653 = vmatprep.mubr.bf16.mxu0 0
  %1654 = vmatmul.mubr.bf16.gmra.mrb[0].mxu0 %v1502
  %v1655 = vpop.f32.mrb[0].mxu0
  %v1656 = vadd.f32 %v1555, %v1655
  %v1657 = vpop.f32.mrb[0].mxu0
  %v1658 = vpop.f32.mrb[0].mxu0
  %v1659 = vadd.f32 %v1555, %v1658
  %v1660 = vpop.f32.mrb[0].mxu0
  %1661 = vmatprep.mubr.bf16.mxu0 0
  %1662 = vmatmul.mubr.bf16.gmra.mrb[0].mxu0 %v1503
  %v1663 = vpop.f32.mrb[0].mxu0
  %v1664 = vadd.f32 %v1555, %v1663
  %v1665 = vpop.f32.mrb[0].mxu0
  %v1666 = vpop.f32.mrb[0].mxu0
  %v1667 = vadd.f32 %v1555, %v1666
  %v1668 = vpop.f32.mrb[0].mxu0
  %1669 = vmatprep.mubr.bf16.mxu0 0
  %1670 = vmatmul.mubr.bf16.gmra.mrb[0].mxu0 %v1504
  %v1671 = vpop.f32.mrb[0].mxu0
  %v1672 = vadd.f32 %v1555, %v1671
  %v1673 = vpop.f32.mrb[0].mxu0
  %v1674 = vpop.f32.mrb[0].mxu0
  %v1675 = vadd.f32 %v1555, %v1674
  %v1676 = vpop.f32.mrb[0].mxu0
  %1677 = vmatprep.mubr.bf16.mxu0 0
  %1678 = vmatmul.mubr.bf16.gmra.mrb[0].mxu0 %v1505
  %v1679 = vpop.f32.mrb[0].mxu0
  %v1680 = vadd.f32 %v1555, %v1679
  %v1681 = vpop.f32.mrb[0].mxu0
  %v1682 = vpop.f32.mrb[0].mxu0
  %v1683 = vadd.f32 %v1555, %v1682
  %v1684 = vpop.f32.mrb[0].mxu0
  %1685 = vmatprep.mubr.bf16.mxu0 0
  %1686 = vmatmul.mubr.bf16.gmra.mrb[0].mxu0 %v1506
  %v1687 = vpop.f32.mrb[0].mxu0
  %v1688 = vadd.f32 %v1555, %v1687
  %v1689 = vpop.f32.mrb[0].mxu0
  %v1690 = vpop.f32.mrb[0].mxu0
  %v1691 = vadd.f32 %v1555, %v1690
  %v1692 = vpop.f32.mrb[0].mxu0
  %1693 = vmatprep.mubr.bf16.mxu0 0
  %1694 = vmatmul.mubr.bf16.gmra.mrb[0].mxu0 %v1507
  %v1695 = vpop.f32.mrb[0].mxu0
  %v1696 = vadd.f32 %v1555, %v1695
  %v1697 = vpop.f32.mrb[0].mxu0
  %v1698 = vpop.f32.mrb[0].mxu0
  %v1699 = vadd.f32 %v1555, %v1698
  %v1700 = vpop.f32.mrb[0].mxu0
  %1701 = vmatprep.mubr.bf16.mxu0 0
  %1702 = vmatmul.mubr.bf16.gmra.mrb[0].mxu0 %v1508
  %v1703 = vpop.f32.mrb[0].mxu0
  %v1704 = vadd.f32 %v1555, %v1703
  %v1705 = vpop.f32.mrb[0].mxu0
  %v1706 = vpop.f32.mrb[0].mxu0
  %v1707 = vadd.f32 %v1555, %v1706
  %v1708 = vpop.f32.mrb[0].mxu0
  %1709 = vmatprep.mubr.bf16.mxu0 0
  %1710 = vmatmul.mubr.bf16.gmra.mrb[0].mxu0 %v1509
  %v1711 = vpop.f32.mrb[0].mxu0
  %v1712 = vadd.f32 %v1555, %v1711
  %v1713 = vpop.f32.mrb[0].mxu0
  %v1714 = vpop.f32.mrb[0].mxu0
  %v1715 = vadd.f32 %v1555, %v1714
  %v1716 = vpop.f32.mrb[0].mxu0
  %1717 = vmatprep.mubr.bf16.mxu0 0
  %1718 = vmatmul.mubr.bf16.gmra.mrb[0].mxu0 %v1510
  %v1719 = vpop.f32.mrb[0].mxu0
  %v1720 = vadd.f32 %v1555, %v1719
  %v1721 = vpop.f32.mrb[0].mxu0
  %v1722 = vpop.f32.mrb[0].mxu0
  %v1723 = vadd.f32 %v1555, %v1722
  %v1724 = vpop.f32.mrb[0].mxu0
  %1725 = vmatprep.mubr.bf16.mxu0 0
  %1726 = vmatmul.mubr.bf16.gmra.mrb[0].mxu0 %v1511
  %v1727 = vpop.f32.mrb[0].mxu0
  %v1728 = vadd.f32 %v1555, %v1727
  %v1729 = vpop.f32.mrb[0].mxu0
  %v1730 = vpop.f32.mrb[0].mxu0
  %v1731 = vadd.f32 %v1555, %v1730
  %v1732 = vpop.f32.mrb[0].mxu0
  %1733 = vmatprep.mubr.bf16.mxu0 0
  %1734 = vmatmul.mubr.bf16.gmra.mrb[0].mxu0 %v1512
  %v1735 = vpop.f32.mrb[0].mxu0
  %v1736 = vadd.f32 %v1555, %v1735
  %v1737 = vpop.f32.mrb[0].mxu0
  %v1738 = vpop.f32.mrb[0].mxu0
  %v1739 = vadd.f32 %v1555, %v1738
  %v1740 = vpop.f32.mrb[0].mxu0
  %1741 = vmatprep.mubr.bf16.mxu0 0
  %1742 = vmatmul.mubr.bf16.gmra.mrb[0].mxu0 %v1513
  %v1743 = vpop.f32.mrb[0].mxu0
  %v1744 = vadd.f32 %v1555, %v1743
  %v1745 = vpop.f32.mrb[0].mxu0
  %v1746 = vpop.f32.mrb[0].mxu0
  %v1747 = vadd.f32 %v1555, %v1746
  %v1748 = vpop.f32.mrb[0].mxu0
  %1749 = vmatprep.mubr.bf16.mxu0 0
  %1750 = vmatmul.mubr.bf16.gmra.mrb[0].mxu0 %v1514
  %v1751 = vpop.f32.mrb[0].mxu0
  %v1752 = vadd.f32 %v1555, %v1751
  %v1753 = vpop.f32.mrb[0].mxu0
  %v1754 = vpop.f32.mrb[0].mxu0
  %v1755 = vadd.f32 %v1555, %v1754
  %v1756 = vpop.f32.mrb[0].mxu0
  %1757 = vmatprep.mubr.bf16.mxu0 0
  %1758 = vmatmul.mubr.bf16.gmra.mrb[0].mxu0 %v1515
  %v1759 = vpop.f32.mrb[0].mxu0
  %v1760 = vadd.f32 %v1555, %v1759
  %v1761 = vpop.f32.mrb[0].mxu0
  %v1762 = vpop.f32.mrb[0].mxu0
  %v1763 = vadd.f32 %v1555, %v1762
  %v1764 = vpop.f32.mrb[0].mxu0
  %1765 = vmatprep.mubr.bf16.mxu0 0
  %1766 = vmatmul.mubr.bf16.gmra.mrb[0].mxu0 %v1516
  %v1767 = vpop.f32.mrb[0].mxu0
  %v1768 = vadd.f32 %v1555, %v1767
  %v1769 = vpop.f32.mrb[0].mxu0
  %v1770 = vpop.f32.mrb[0].mxu0
  %v1771 = vadd.f32 %v1555, %v1770
  %v1772 = vpop.f32.mrb[0].mxu0
  %1773 = vmatprep.mubr.bf16.mxu0 0
  %1774 = vmatmul.mubr.bf16.gmra.mrb[0].mxu0 %v1517
  %v1775 = vpop.f32.mrb[0].mxu0
  %v1776 = vadd.f32 %v1555, %v1775
  %v1777 = vpop.f32.mrb[0].mxu0
  %v1778 = vpop.f32.mrb[0].mxu0
  %v1779 = vadd.f32 %v1555, %v1778
  %v1780 = vpop.f32.mrb[0].mxu0
  %1781 = vmatprep.mubr.bf16.mxu0 0
  %1782 = vmatmul.mubr.bf16.gmra.mrb[0].mxu0 %v1518
  %v1783 = vpop.f32.mrb[0].mxu0
  %v1784 = vadd.f32 %v1555, %v1783
  %v1785 = vpop.f32.mrb[0].mxu0
  %v1786 = vpop.f32.mrb[0].mxu0
  %v1787 = vadd.f32 %v1555, %v1786
  %v1788 = vpop.f32.mrb[0].mxu0
  %1789 = vmatprep.mubr.bf16.mxu0 0
  %1790 = vmatmul.mubr.bf16.gmra.mrb[0].mxu0 %v1519
  %v1791 = vpop.f32.mrb[0].mxu0
  %v1792 = vadd.f32 %v1555, %v1791
  %v1793 = vpop.f32.mrb[0].mxu0
  %v1794 = vpop.f32.mrb[0].mxu0
  %v1795 = vadd.f32 %v1555, %v1794
  %v1796 = vpop.f32.mrb[0].mxu0
  %1797 = vmatprep.mubr.bf16.mxu0 0
  %1798 = vmatmul.mubr.bf16.gmra.mrb[0].mxu0 %v1520
  %v1799 = vpop.f32.mrb[0].mxu0
  %v1800 = vadd.f32 %v1555, %v1799
  %v1801 = vpop.f32.mrb[0].mxu0
  %v1802 = vpop.f32.mrb[0].mxu0
  %v1803 = vadd.f32 %v1555, %v1802
  %v1804 = vpop.f32.mrb[0].mxu0
  %1805 = vmatprep.mubr.bf16.mxu0 0
  %1806 = vmatmul.mubr.bf16.gmra.mrb[0].mxu0 %v1521
  %v1807 = vpop.f32.mrb[0].mxu0
  %v1808 = vadd.f32 %v1555, %v1807
  %v1809 = vpop.f32.mrb[0].mxu0
  %v1810 = vpop.f32.mrb[0].mxu0
  %v1811 = vadd.f32 %v1555, %v1810
  %v1812 = vpop.f32.mrb[0].mxu0
  %1813 = vmatprep.mubr.bf16.mxu0 0
  %1814 = vmatmul.mubr.bf16.gmra.mrb[0].mxu0 %v1522
  %v1815 = vpop.f32.mrb[0].mxu0
  %v1816 = vadd.f32 %v1555, %v1815
  %v1817 = vpop.f32.mrb[0].mxu0
  %v1818 = vpop.f32.mrb[0].mxu0
  %v1819 = vadd.f32 %v1555, %v1818
  %v1820 = vpop.f32.mrb[0].mxu0
  %1821 = vmatprep.mubr.bf16.mxu0 0
  %1822 = vmatmul.mubr.bf16.gmra.mrb[0].mxu0 %v1523
  %v1823 = vpop.f32.mrb[0].mxu0
  %v1824 = vadd.f32 %v1555, %v1823
  %v1825 = vpop.f32.mrb[0].mxu0
  %v1826 = vpop.f32.mrb[0].mxu0
  %v1827 = vadd.f32 %v1555, %v1826
  %v1828 = vpop.f32.mrb[0].mxu0
  %1829 = vmatprep.mubr.bf16.mxu0 0
  %1830 = vmatmul.mubr.bf16.gmra.mrb[0].mxu0 %v1524
  %v1831 = vpop.f32.mrb[0].mxu0
  %v1832 = vadd.f32 %v1555, %v1831
  %v1833 = vpop.f32.mrb[0].mxu0
  %v1834 = vpop.f32.mrb[0].mxu0
  %v1835 = vadd.f32 %v1555, %v1834
  %v1836 = vpop.f32.mrb[0].mxu0
  %1837 = vmatprep.mubr.bf16.mxu0 0
  %1838 = vmatmul.mubr.bf16.gmra.mrb[0].mxu0 %v1525
  %v1839 = vpop.f32.mrb[0].mxu0
  %v1840 = vadd.f32 %v1555, %v1839
  %v1841 = vpop.f32.mrb[0].mxu0
  %v1842 = vpop.f32.mrb[0].mxu0
  %v1843 = vadd.f32 %v1555, %v1842
  %v1844 = vpop.f32.mrb[0].mxu0
  %1845 = vmatprep.mubr.bf16.mxu0 0
  %1846 = vmatmul.mubr.bf16.gmra.mrb[0].mxu0 %v1526
  %v1847 = vpop.f32.mrb[0].mxu0
  %v1848 = vadd.f32 %v1555, %v1847
  %v1849 = vpop.f32.mrb[0].mxu0
  %v1850 = vpop.f32.mrb[0].mxu0
  %v1851 = vadd.f32 %v1555, %v1850
  %v1852 = vpop.f32.mrb[0].mxu0
  %1853 = vmatprep.mubr.bf16.mxu0 0
  %1854 = vmatmul.mubr.bf16.gmra.mrb[0].mxu0 %v1527
  %v1855 = vpop.f32.mrb[0].mxu0
  %v1856 = vadd.f32 %v1555, %v1855
  %v1857 = vpop.f32.mrb[0].mxu0
  %v1858 = vpop.f32.mrb[0].mxu0
  %v1859 = vadd.f32 %v1555, %v1858
  %v1860 = vpop.f32.mrb[0].mxu0
  %1861 = vmatprep.mubr.bf16.mxu0 0
  %1862 = vmatmul.mubr.bf16.gmra.mrb[0].mxu0 %v1528
  %v1863 = vpop.f32.mrb[0].mxu0
  %v1864 = vadd.f32 %v1555, %v1863
  %v1865 = vpop.f32.mrb[0].mxu0
  %v1866 = vpop.f32.mrb[0].mxu0
  %v1867 = vadd.f32 %v1555, %v1866
  %v1868 = vpop.f32.mrb[0].mxu0
  %1869 = vmatprep.mubr.bf16.mxu0 0
  %1870 = vmatmul.mubr.bf16.gmra.mrb[0].mxu0 %v1529
  %v1871 = vpop.f32.mrb[0].mxu0
  %v1872 = vadd.f32 %v1555, %v1871
  %v1873 = vpop.f32.mrb[0].mxu0
  %v1874 = vpop.f32.mrb[0].mxu0
  %v1875 = vadd.f32 %v1555, %v1874
  %v1876 = vpop.f32.mrb[0].mxu0
  %1877 = vmatprep.mubr.bf16.mxu0 0
  %1878 = vmatmul.mubr.bf16.gmra.mrb[0].mxu0 %v1530
  %v1879 = vpop.f32.mrb[0].mxu0
  %v1880 = vadd.f32 %v1555, %v1879
  %v1881 = vpop.f32.mrb[0].mxu0
  %v1882 = vpop.f32.mrb[0].mxu0
  %v1883 = vadd.f32 %v1555, %v1882
  %v1884 = vpop.f32.mrb[0].mxu0
  %1885 = vmatprep.mubr.bf16.mxu0 0
  %1886 = vmatmul.mubr.bf16.gmra.mrb[0].mxu0 %v1531
  %v1887 = vpop.f32.mrb[0].mxu0
  %v1888 = vadd.f32 %v1555, %v1887
  %v1889 = vpop.f32.mrb[0].mxu0
  %v1890 = vpop.f32.mrb[0].mxu0
  %v1891 = vadd.f32 %v1555, %v1890
  %v1892 = vpop.f32.mrb[0].mxu0
  %1893 = vdwg.mxu0
  %v1894 = vmax.f32 %v1640, 0.0
  %v1895 = vmax.f32 %v1643, 0.0
  %v1896 = vmax.f32 %v1648, 0.0
  %v1897 = vmax.f32 %v1651, 0.0
  %v1898 = vmax.f32 %v1656, 0.0
  %v1899 = vmax.f32 %v1659, 0.0
  %v1900 = vmax.f32 %v1664, 0.0
  %v1901 = vmax.f32 %v1667, 0.0
  %v1902 = vmax.f32 %v1672, 0.0
  %v1903 = vmax.f32 %v1675, 0.0
  %v1904 = vmax.f32 %v1680, 0.0
  %v1905 = vmax.f32 %v1683, 0.0
  %v1906 = vmax.f32 %v1688, 0.0
  %v1907 = vmax.f32 %v1691, 0.0
  %v1908 = vmax.f32 %v1696, 0.0
  %v1909 = vmax.f32 %v1699, 0.0
  %v1910 = vmax.f32 %v1704, 0.0
  %v1911 = vmax.f32 %v1707, 0.0
  %v1912 = vmax.f32 %v1712, 0.0
  %v1913 = vmax.f32 %v1715, 0.0
  %v1914 = vmax.f32 %v1720, 0.0
  %v1915 = vmax.f32 %v1723, 0.0
  %v1916 = vmax.f32 %v1728, 0.0
  %v1917 = vmax.f32 %v1731, 0.0
  %v1918 = vmax.f32 %v1736, 0.0
  %v1919 = vmax.f32 %v1739, 0.0
  %v1920 = vmax.f32 %v1744, 0.0
  %v1921 = vmax.f32 %v1747, 0.0
  %v1922 = vmax.f32 %v1752, 0.0
  %v1923 = vmax.f32 %v1755, 0.0
  %v1924 = vmax.f32 %v1760, 0.0
  %v1925 = vmax.f32 %v1763, 0.0
  %v1926 = vmax.f32 %v1768, 0.0
  %v1927 = vmax.f32 %v1771, 0.0
  %v1928 = vmax.f32 %v1776, 0.0
  %v1929 = vmax.f32 %v1779, 0.0
  %v1930 = vmax.f32 %v1784, 0.0
  %v1931 = vmax.f32 %v1787, 0.0
  %v1932 = vmax.f32 %v1792, 0.0
  %v1933 = vmax.f32 %v1795, 0.0
  %v1934 = vmax.f32 %v1800, 0.0
  %v1935 = vmax.f32 %v1803, 0.0
  %v1936 = vmax.f32 %v1808, 0.0
  %v1937 = vmax.f32 %v1811, 0.0
  %v1938 = vmax.f32 %v1816, 0.0
  %v1939 = vmax.f32 %v1819, 0.0
  %v1940 = vmax.f32 %v1824, 0.0
  %v1941 = vmax.f32 %v1827, 0.0
  %v1942 = vmax.f32 %v1832, 0.0
  %v1943 = vmax.f32 %v1835, 0.0
  %v1944 = vmax.f32 %v1840, 0.0
  %v1945 = vmax.f32 %v1843, 0.0
  %v1946 = vmax.f32 %v1848, 0.0
  %v1947 = vmax.f32 %v1851, 0.0
  %v1948 = vmax.f32 %v1856, 0.0
  %v1949 = vmax.f32 %v1859, 0.0
  %v1950 = vmax.f32 %v1864, 0.0
  %v1951 = vmax.f32 %v1867, 0.0
  %v1952 = vmax.f32 %v1872, 0.0
  %v1953 = vmax.f32 %v1875, 0.0
  %v1954 = vmax.f32 %v1880, 0.0
  %v1955 = vmax.f32 %v1883, 0.0
  %v1956 = vmax.f32 %v1888, 0.0
  %v1957 = vmax.f32 %v1891, 0.0
  %v1958 = vpack.c.bf16 %v1895, %v1894
  %v1959 = vpack.c.bf16 %v1897, %v1896
  %v1960 = vpack.c.bf16 %v1899, %v1898
  %v1961 = vpack.c.bf16 %v1901, %v1900
  %v1962 = vpack.c.bf16 %v1903, %v1902
  %v1963 = vpack.c.bf16 %v1905, %v1904
  %v1964 = vpack.c.bf16 %v1907, %v1906
  %v1965 = vpack.c.bf16 %v1909, %v1908
  %v1966 = vpack.c.bf16 %v1911, %v1910
  %v1967 = vpack.c.bf16 %v1913, %v1912
  %v1968 = vpack.c.bf16 %v1915, %v1914
  %v1969 = vpack.c.bf16 %v1917, %v1916
  %v1970 = vpack.c.bf16 %v1919, %v1918
  %v1971 = vpack.c.bf16 %v1921, %v1920
  %v1972 = vpack.c.bf16 %v1923, %v1922
  %v1973 = vpack.c.bf16 %v1925, %v1924
  %v1974 = vpack.c.bf16 %v1927, %v1926
  %v1975 = vpack.c.bf16 %v1929, %v1928
  %v1976 = vpack.c.bf16 %v1931, %v1930
  %v1977 = vpack.c.bf16 %v1933, %v1932
  %v1978 = vpack.c.bf16 %v1935, %v1934
  %v1979 = vpack.c.bf16 %v1937, %v1936
  %v1980 = vpack.c.bf16 %v1939, %v1938
  %v1981 = vpack.c.bf16 %v1941, %v1940
  %v1982 = vpack.c.bf16 %v1943, %v1942
  %v1983 = vpack.c.bf16 %v1945, %v1944
  %v1984 = vpack.c.bf16 %v1947, %v1946
  %v1985 = vpack.c.bf16 %v1949, %v1948
  %v1986 = vpack.c.bf16 %v1951, %v1950
  %v1987 = vpack.c.bf16 %v1953, %v1952
  %v1988 = vpack.c.bf16 %v1955, %v1954
  %v1989 = vpack.c.bf16 %v1957, %v1956
  %s1990 = scalar_lea.vmem %s2, 192
  %v1991 = vld [vmem:[%s1990] sm:$0xf]
  %v1992 = vld [vmem:[%s1990 + $0x4] sm:$0xf]
  %v1993 = vld [vmem:[%s1990 + $0x8] sm:$0xf]
  %v1994 = vld [vmem:[%s1990 + $0xc] sm:$0xf]
  %v1995 = vld [vmem:[%s1990 + $0x10] sm:$0xf]
  %v1996 = vld [vmem:[%s1990 + $0x14] sm:$0xf]
  %v1997 = vld [vmem:[%s1990 + $0x18] sm:$0xf]
  %v1998 = vld [vmem:[%s1990 + $0x1c] sm:$0xf]
  %v1999 = vld [vmem:[%s1990 + $0x20] sm:$0xf]
  %v2000 = vld [vmem:[%s1990 + $0x24] sm:$0xf]
  %v2001 = vld [vmem:[%s1990 + $0x28] sm:$0xf]
  %v2002 = vld [vmem:[%s1990 + $0x2c] sm:$0xf]
  %v2003 = vld [vmem:[%s1990 + $0x30] sm:$0xf]
  %v2004 = vld [vmem:[%s1990 + $0x34] sm:$0xf]
  %v2005 = vld [vmem:[%s1990 + $0x38] sm:$0xf]
  %v2006 = vld [vmem:[%s1990 + $0x3c] sm:$0xf]
  %s2007 = scalar_lea.vmem %s3, 4
  %v2008 = vld [vmem:[%s2007] sm:$0x1]
  %v2010 = vlaneseq
  %v2011 = vshrl.u32 %v2010, 7
  %v2012 = vsub.s32 0, %v2011
  %v2013 = vrot.slane %v2008, %v2012
  %v2031 = vunpack.c.l.b16 %v1991
  %v2032 = vunpack.c.l.b16 %v1992
  %v2033 = vunpack.c.l.b16 %v1993
  %v2034 = vunpack.c.l.b16 %v1994
  %v2035 = vunpack.c.l.b16 %v1995
  %v2036 = vunpack.c.l.b16 %v1996
  %v2037 = vunpack.c.l.b16 %v1997
  %v2038 = vunpack.c.l.b16 %v1998
  %v2039 = vunpack.c.l.b16 %v1999
  %v2040 = vunpack.c.l.b16 %v2000
  %v2041 = vunpack.c.l.b16 %v2001
  %v2042 = vunpack.c.l.b16 %v2002
  %v2043 = vunpack.c.l.b16 %v2003
  %v2044 = vunpack.c.l.b16 %v2004
  %v2045 = vunpack.c.l.b16 %v2005
  %v2046 = vunpack.c.l.b16 %v2006
  %v2047 = vpack.c.b16 %v2032, %v2031
  %v2048 = vpack.c.b16 %v2034, %v2033
  %v2049 = vpack.c.b16 %v2036, %v2035
  %v2050 = vpack.c.b16 %v2038, %v2037
  %v2051 = vpack.c.b16 %v2040, %v2039
  %v2052 = vpack.c.b16 %v2042, %v2041
  %v2053 = vpack.c.b16 %v2044, %v2043
  %v2054 = vpack.c.b16 %v2046, %v2045
  %2063 = vmatprep.subr.bf16.mxu0 0
  %2064 = vmatpush1.bf16.msra.mxu0 %v2047
  %2065 = vmatprep.subr.bf16.mxu0 0
  %2066 = vmatpush1.bf16.msra.mxu0 %v2048
  %2067 = vmatprep.subr.bf16.mxu0 0
  %2068 = vmatpush1.bf16.msra.mxu0 %v2049
  %2069 = vmatprep.subr.bf16.mxu0 0
  %2070 = vmatpush1.bf16.msra.mxu0 %v2050
  %2071 = vmatprep.subr.bf16.mxu0 0
  %2072 = vmatpush1.bf16.msra.mxu0 %v2051
  %2073 = vmatprep.subr.bf16.mxu0 0
  %2074 = vmatpush1.bf16.msra.mxu0 %v2052
  %2075 = vmatprep.subr.bf16.mxu0 0
  %2076 = vmatpush1.bf16.msra.mxu0 %v2053
  %2077 = vmatprep.subr.bf16.mxu0 0
  %2078 = vmatpush1.bf16.msra.mxu0 %v2054
  %2079 = vmatprep.subr.bf16.mxu0 0
  %2080 = vmatpush1.bf16.msra.mxu0 0
  %2081 = vmatprep.subr.bf16.mxu0 0
  %2082 = vmatpush1.bf16.msra.mxu0 0
  %2083 = vmatprep.subr.bf16.mxu0 0
  %2084 = vmatpush1.bf16.msra.mxu0 0
  %2085 = vmatprep.subr.bf16.mxu0 0
  %2086 = vmatpush1.bf16.msra.mxu0 0
  %2087 = vmatprep.subr.bf16.mxu0 0
  %2088 = vmatpush1.bf16.msra.mxu0 0
  %2089 = vmatprep.subr.bf16.mxu0 0
  %2090 = vmatpush1.bf16.msra.mxu0 0
  %2091 = vmatprep.subr.bf16.mxu0 0
  %2092 = vmatpush1.bf16.msra.mxu0 0
  %2093 = vmatprep.subr.bf16.mxu0 0
  %2094 = vmatpush1.bf16.msra.mxu0 0
  %2095 = vmatprep.mubr.bf16.mxu0 0
  %2096 = vmatmul.mubr.bf16.gmra.mrb[0].mxu0 %v1958
  %v2097 = vpop.f32.mrb[0].mxu0
  %v2098 = vadd.f32 %v2013, %v2097
  %v2099 = vpop.f32.mrb[0].mxu0
  %v2100 = vpop.f32.mrb[0].mxu0
  %v2101 = vadd.f32 %v2013, %v2100
  %v2102 = vpop.f32.mrb[0].mxu0
  %2103 = vmatprep.mubr.bf16.mxu0 0
  %2104 = vmatmul.mubr.bf16.gmra.mrb[0].mxu0 %v1959
  %v2105 = vpop.f32.mrb[0].mxu0
  %v2106 = vadd.f32 %v2013, %v2105
  %v2107 = vpop.f32.mrb[0].mxu0
  %v2108 = vpop.f32.mrb[0].mxu0
  %v2109 = vadd.f32 %v2013, %v2108
  %v2110 = vpop.f32.mrb[0].mxu0
  %2111 = vmatprep.mubr.bf16.mxu0 0
  %2112 = vmatmul.mubr.bf16.gmra.mrb[0].mxu0 %v1960
  %v2113 = vpop.f32.mrb[0].mxu0
  %v2114 = vadd.f32 %v2013, %v2113
  %v2115 = vpop.f32.mrb[0].mxu0
  %v2116 = vpop.f32.mrb[0].mxu0
  %v2117 = vadd.f32 %v2013, %v2116
  %v2118 = vpop.f32.mrb[0].mxu0
  %2119 = vmatprep.mubr.bf16.mxu0 0
  %2120 = vmatmul.mubr.bf16.gmra.mrb[0].mxu0 %v1961
  %v2121 = vpop.f32.mrb[0].mxu0
  %v2122 = vadd.f32 %v2013, %v2121
  %v2123 = vpop.f32.mrb[0].mxu0
  %v2124 = vpop.f32.mrb[0].mxu0
  %v2125 = vadd.f32 %v2013, %v2124
  %v2126 = vpop.f32.mrb[0].mxu0
  %2127 = vmatprep.mubr.bf16.mxu0 0
  %2128 = vmatmul.mubr.bf16.gmra.mrb[0].mxu0 %v1962
  %v2129 = vpop.f32.mrb[0].mxu0
  %v2130 = vadd.f32 %v2013, %v2129
  %v2131 = vpop.f32.mrb[0].mxu0
  %v2132 = vpop.f32.mrb[0].mxu0
  %v2133 = vadd.f32 %v2013, %v2132
  %v2134 = vpop.f32.mrb[0].mxu0
  %2135 = vmatprep.mubr.bf16.mxu0 0
  %2136 = vmatmul.mubr.bf16.gmra.mrb[0].mxu0 %v1963
  %v2137 = vpop.f32.mrb[0].mxu0
  %v2138 = vadd.f32 %v2013, %v2137
  %v2139 = vpop.f32.mrb[0].mxu0
  %v2140 = vpop.f32.mrb[0].mxu0
  %v2141 = vadd.f32 %v2013, %v2140
  %v2142 = vpop.f32.mrb[0].mxu0
  %2143 = vmatprep.mubr.bf16.mxu0 0
  %2144 = vmatmul.mubr.bf16.gmra.mrb[0].mxu0 %v1964
  %v2145 = vpop.f32.mrb[0].mxu0
  %v2146 = vadd.f32 %v2013, %v2145
  %v2147 = vpop.f32.mrb[0].mxu0
  %v2148 = vpop.f32.mrb[0].mxu0
  %v2149 = vadd.f32 %v2013, %v2148
  %v2150 = vpop.f32.mrb[0].mxu0
  %2151 = vmatprep.mubr.bf16.mxu0 0
  %2152 = vmatmul.mubr.bf16.gmra.mrb[0].mxu0 %v1965
  %v2153 = vpop.f32.mrb[0].mxu0
  %v2154 = vadd.f32 %v2013, %v2153
  %v2155 = vpop.f32.mrb[0].mxu0
  %v2156 = vpop.f32.mrb[0].mxu0
  %v2157 = vadd.f32 %v2013, %v2156
  %v2158 = vpop.f32.mrb[0].mxu0
  %2159 = vmatprep.mubr.bf16.mxu0 0
  %2160 = vmatmul.mubr.bf16.gmra.mrb[0].mxu0 %v1966
  %v2161 = vpop.f32.mrb[0].mxu0
  %v2162 = vadd.f32 %v2013, %v2161
  %v2163 = vpop.f32.mrb[0].mxu0
  %v2164 = vpop.f32.mrb[0].mxu0
  %v2165 = vadd.f32 %v2013, %v2164
  %v2166 = vpop.f32.mrb[0].mxu0
  %2167 = vmatprep.mubr.bf16.mxu0 0
  %2168 = vmatmul.mubr.bf16.gmra.mrb[0].mxu0 %v1967
  %v2169 = vpop.f32.mrb[0].mxu0
  %v2170 = vadd.f32 %v2013, %v2169
  %v2171 = vpop.f32.mrb[0].mxu0
  %v2172 = vpop.f32.mrb[0].mxu0
  %v2173 = vadd.f32 %v2013, %v2172
  %v2174 = vpop.f32.mrb[0].mxu0
  %2175 = vmatprep.mubr.bf16.mxu0 0
  %2176 = vmatmul.mubr.bf16.gmra.mrb[0].mxu0 %v1968
  %v2177 = vpop.f32.mrb[0].mxu0
  %v2178 = vadd.f32 %v2013, %v2177
  %v2179 = vpop.f32.mrb[0].mxu0
  %v2180 = vpop.f32.mrb[0].mxu0
  %v2181 = vadd.f32 %v2013, %v2180
  %v2182 = vpop.f32.mrb[0].mxu0
  %2183 = vmatprep.mubr.bf16.mxu0 0
  %2184 = vmatmul.mubr.bf16.gmra.mrb[0].mxu0 %v1969
  %v2185 = vpop.f32.mrb[0].mxu0
  %v2186 = vadd.f32 %v2013, %v2185
  %v2187 = vpop.f32.mrb[0].mxu0
  %v2188 = vpop.f32.mrb[0].mxu0
  %v2189 = vadd.f32 %v2013, %v2188
  %v2190 = vpop.f32.mrb[0].mxu0
  %2191 = vmatprep.mubr.bf16.mxu0 0
  %2192 = vmatmul.mubr.bf16.gmra.mrb[0].mxu0 %v1970
  %v2193 = vpop.f32.mrb[0].mxu0
  %v2194 = vadd.f32 %v2013, %v2193
  %v2195 = vpop.f32.mrb[0].mxu0
  %v2196 = vpop.f32.mrb[0].mxu0
  %v2197 = vadd.f32 %v2013, %v2196
  %v2198 = vpop.f32.mrb[0].mxu0
  %2199 = vmatprep.mubr.bf16.mxu0 0
  %2200 = vmatmul.mubr.bf16.gmra.mrb[0].mxu0 %v1971
  %v2201 = vpop.f32.mrb[0].mxu0
  %v2202 = vadd.f32 %v2013, %v2201
  %v2203 = vpop.f32.mrb[0].mxu0
  %v2204 = vpop.f32.mrb[0].mxu0
  %v2205 = vadd.f32 %v2013, %v2204
  %v2206 = vpop.f32.mrb[0].mxu0
  %2207 = vmatprep.mubr.bf16.mxu0 0
  %2208 = vmatmul.mubr.bf16.gmra.mrb[0].mxu0 %v1972
  %v2209 = vpop.f32.mrb[0].mxu0
  %v2210 = vadd.f32 %v2013, %v2209
  %v2211 = vpop.f32.mrb[0].mxu0
  %v2212 = vpop.f32.mrb[0].mxu0
  %v2213 = vadd.f32 %v2013, %v2212
  %v2214 = vpop.f32.mrb[0].mxu0
  %2215 = vmatprep.mubr.bf16.mxu0 0
  %2216 = vmatmul.mubr.bf16.gmra.mrb[0].mxu0 %v1973
  %v2217 = vpop.f32.mrb[0].mxu0
  %v2218 = vadd.f32 %v2013, %v2217
  %v2219 = vpop.f32.mrb[0].mxu0
  %v2220 = vpop.f32.mrb[0].mxu0
  %v2221 = vadd.f32 %v2013, %v2220
  %v2222 = vpop.f32.mrb[0].mxu0
  %2223 = vmatprep.mubr.bf16.mxu0 0
  %2224 = vmatmul.mubr.bf16.gmra.mrb[0].mxu0 %v1974
  %v2225 = vpop.f32.mrb[0].mxu0
  %v2226 = vadd.f32 %v2013, %v2225
  %v2227 = vpop.f32.mrb[0].mxu0
  %v2228 = vpop.f32.mrb[0].mxu0
  %v2229 = vadd.f32 %v2013, %v2228
  %v2230 = vpop.f32.mrb[0].mxu0
  %2231 = vmatprep.mubr.bf16.mxu0 0
  %2232 = vmatmul.mubr.bf16.gmra.mrb[0].mxu0 %v1975
  %v2233 = vpop.f32.mrb[0].mxu0
  %v2234 = vadd.f32 %v2013, %v2233
  %v2235 = vpop.f32.mrb[0].mxu0
  %v2236 = vpop.f32.mrb[0].mxu0
  %v2237 = vadd.f32 %v2013, %v2236
  %v2238 = vpop.f32.mrb[0].mxu0
  %2239 = vmatprep.mubr.bf16.mxu0 0
  %2240 = vmatmul.mubr.bf16.gmra.mrb[0].mxu0 %v1976
  %v2241 = vpop.f32.mrb[0].mxu0
  %v2242 = vadd.f32 %v2013, %v2241
  %v2243 = vpop.f32.mrb[0].mxu0
  %v2244 = vpop.f32.mrb[0].mxu0
  %v2245 = vadd.f32 %v2013, %v2244
  %v2246 = vpop.f32.mrb[0].mxu0
  %2247 = vmatprep.mubr.bf16.mxu0 0
  %2248 = vmatmul.mubr.bf16.gmra.mrb[0].mxu0 %v1977
  %v2249 = vpop.f32.mrb[0].mxu0
  %v2250 = vadd.f32 %v2013, %v2249
  %v2251 = vpop.f32.mrb[0].mxu0
  %v2252 = vpop.f32.mrb[0].mxu0
  %v2253 = vadd.f32 %v2013, %v2252
  %v2254 = vpop.f32.mrb[0].mxu0
  %2255 = vmatprep.mubr.bf16.mxu0 0
  %2256 = vmatmul.mubr.bf16.gmra.mrb[0].mxu0 %v1978
  %v2257 = vpop.f32.mrb[0].mxu0
  %v2258 = vadd.f32 %v2013, %v2257
  %v2259 = vpop.f32.mrb[0].mxu0
  %v2260 = vpop.f32.mrb[0].mxu0
  %v2261 = vadd.f32 %v2013, %v2260
  %v2262 = vpop.f32.mrb[0].mxu0
  %2263 = vmatprep.mubr.bf16.mxu0 0
  %2264 = vmatmul.mubr.bf16.gmra.mrb[0].mxu0 %v1979
  %v2265 = vpop.f32.mrb[0].mxu0
  %v2266 = vadd.f32 %v2013, %v2265
  %v2267 = vpop.f32.mrb[0].mxu0
  %v2268 = vpop.f32.mrb[0].mxu0
  %v2269 = vadd.f32 %v2013, %v2268
  %v2270 = vpop.f32.mrb[0].mxu0
  %2271 = vmatprep.mubr.bf16.mxu0 0
  %2272 = vmatmul.mubr.bf16.gmra.mrb[0].mxu0 %v1980
  %v2273 = vpop.f32.mrb[0].mxu0
  %v2274 = vadd.f32 %v2013, %v2273
  %v2275 = vpop.f32.mrb[0].mxu0
  %v2276 = vpop.f32.mrb[0].mxu0
  %v2277 = vadd.f32 %v2013, %v2276
  %v2278 = vpop.f32.mrb[0].mxu0
  %2279 = vmatprep.mubr.bf16.mxu0 0
  %2280 = vmatmul.mubr.bf16.gmra.mrb[0].mxu0 %v1981
  %v2281 = vpop.f32.mrb[0].mxu0
  %v2282 = vadd.f32 %v2013, %v2281
  %v2283 = vpop.f32.mrb[0].mxu0
  %v2284 = vpop.f32.mrb[0].mxu0
  %v2285 = vadd.f32 %v2013, %v2284
  %v2286 = vpop.f32.mrb[0].mxu0
  %2287 = vmatprep.mubr.bf16.mxu0 0
  %2288 = vmatmul.mubr.bf16.gmra.mrb[0].mxu0 %v1982
  %v2289 = vpop.f32.mrb[0].mxu0
  %v2290 = vadd.f32 %v2013, %v2289
  %v2291 = vpop.f32.mrb[0].mxu0
  %v2292 = vpop.f32.mrb[0].mxu0
  %v2293 = vadd.f32 %v2013, %v2292
  %v2294 = vpop.f32.mrb[0].mxu0
  %2295 = vmatprep.mubr.bf16.mxu0 0
  %2296 = vmatmul.mubr.bf16.gmra.mrb[0].mxu0 %v1983
  %v2297 = vpop.f32.mrb[0].mxu0
  %v2298 = vadd.f32 %v2013, %v2297
  %v2299 = vpop.f32.mrb[0].mxu0
  %v2300 = vpop.f32.mrb[0].mxu0
  %v2301 = vadd.f32 %v2013, %v2300
  %v2302 = vpop.f32.mrb[0].mxu0
  %2303 = vmatprep.mubr.bf16.mxu0 0
  %2304 = vmatmul.mubr.bf16.gmra.mrb[0].mxu0 %v1984
  %v2305 = vpop.f32.mrb[0].mxu0
  %v2306 = vadd.f32 %v2013, %v2305
  %v2307 = vpop.f32.mrb[0].mxu0
  %v2308 = vpop.f32.mrb[0].mxu0
  %v2309 = vadd.f32 %v2013, %v2308
  %v2310 = vpop.f32.mrb[0].mxu0
  %2311 = vmatprep.mubr.bf16.mxu0 0
  %2312 = vmatmul.mubr.bf16.gmra.mrb[0].mxu0 %v1985
  %v2313 = vpop.f32.mrb[0].mxu0
  %v2314 = vadd.f32 %v2013, %v2313
  %v2315 = vpop.f32.mrb[0].mxu0
  %v2316 = vpop.f32.mrb[0].mxu0
  %v2317 = vadd.f32 %v2013, %v2316
  %v2318 = vpop.f32.mrb[0].mxu0
  %2319 = vmatprep.mubr.bf16.mxu0 0
  %2320 = vmatmul.mubr.bf16.gmra.mrb[0].mxu0 %v1986
  %v2321 = vpop.f32.mrb[0].mxu0
  %v2322 = vadd.f32 %v2013, %v2321
  %v2323 = vpop.f32.mrb[0].mxu0
  %v2324 = vpop.f32.mrb[0].mxu0
  %v2325 = vadd.f32 %v2013, %v2324
  %v2326 = vpop.f32.mrb[0].mxu0
  %2327 = vmatprep.mubr.bf16.mxu0 0
  %2328 = vmatmul.mubr.bf16.gmra.mrb[0].mxu0 %v1987
  %v2329 = vpop.f32.mrb[0].mxu0
  %v2330 = vadd.f32 %v2013, %v2329
  %v2331 = vpop.f32.mrb[0].mxu0
  %v2332 = vpop.f32.mrb[0].mxu0
  %v2333 = vadd.f32 %v2013, %v2332
  %v2334 = vpop.f32.mrb[0].mxu0
  %2335 = vmatprep.mubr.bf16.mxu0 0
  %2336 = vmatmul.mubr.bf16.gmra.mrb[0].mxu0 %v1988
  %v2337 = vpop.f32.mrb[0].mxu0
  %v2338 = vadd.f32 %v2013, %v2337
  %v2339 = vpop.f32.mrb[0].mxu0
  %v2340 = vpop.f32.mrb[0].mxu0
  %v2341 = vadd.f32 %v2013, %v2340
  %v2342 = vpop.f32.mrb[0].mxu0
  %2343 = vmatprep.mubr.bf16.mxu0 0
  %2344 = vmatmul.mubr.bf16.gmra.mrb[0].mxu0 %v1989
  %v2345 = vpop.f32.mrb[0].mxu0
  %v2346 = vadd.f32 %v2013, %v2345
  %v2347 = vpop.f32.mrb[0].mxu0
  %v2348 = vpop.f32.mrb[0].mxu0
  %v2349 = vadd.f32 %v2013, %v2348
  %v2350 = vpop.f32.mrb[0].mxu0
  %2351 = vdwg.mxu0
  %v2352 = vmax.f32 %v2098, 0.0
  %v2353 = vmax.f32 %v2101, 0.0
  %v2354 = vmax.f32 %v2106, 0.0
  %v2355 = vmax.f32 %v2109, 0.0
  %v2356 = vmax.f32 %v2114, 0.0
  %v2357 = vmax.f32 %v2117, 0.0
  %v2358 = vmax.f32 %v2122, 0.0
  %v2359 = vmax.f32 %v2125, 0.0
  %v2360 = vmax.f32 %v2130, 0.0
  %v2361 = vmax.f32 %v2133, 0.0
  %v2362 = vmax.f32 %v2138, 0.0
  %v2363 = vmax.f32 %v2141, 0.0
  %v2364 = vmax.f32 %v2146, 0.0
  %v2365 = vmax.f32 %v2149, 0.0
  %v2366 = vmax.f32 %v2154, 0.0
  %v2367 = vmax.f32 %v2157, 0.0
  %v2368 = vmax.f32 %v2162, 0.0
  %v2369 = vmax.f32 %v2165, 0.0
  %v2370 = vmax.f32 %v2170, 0.0
  %v2371 = vmax.f32 %v2173, 0.0
  %v2372 = vmax.f32 %v2178, 0.0
  %v2373 = vmax.f32 %v2181, 0.0
  %v2374 = vmax.f32 %v2186, 0.0
  %v2375 = vmax.f32 %v2189, 0.0
  %v2376 = vmax.f32 %v2194, 0.0
  %v2377 = vmax.f32 %v2197, 0.0
  %v2378 = vmax.f32 %v2202, 0.0
  %v2379 = vmax.f32 %v2205, 0.0
  %v2380 = vmax.f32 %v2210, 0.0
  %v2381 = vmax.f32 %v2213, 0.0
  %v2382 = vmax.f32 %v2218, 0.0
  %v2383 = vmax.f32 %v2221, 0.0
  %v2384 = vmax.f32 %v2226, 0.0
  %v2385 = vmax.f32 %v2229, 0.0
  %v2386 = vmax.f32 %v2234, 0.0
  %v2387 = vmax.f32 %v2237, 0.0
  %v2388 = vmax.f32 %v2242, 0.0
  %v2389 = vmax.f32 %v2245, 0.0
  %v2390 = vmax.f32 %v2250, 0.0
  %v2391 = vmax.f32 %v2253, 0.0
  %v2392 = vmax.f32 %v2258, 0.0
  %v2393 = vmax.f32 %v2261, 0.0
  %v2394 = vmax.f32 %v2266, 0.0
  %v2395 = vmax.f32 %v2269, 0.0
  %v2396 = vmax.f32 %v2274, 0.0
  %v2397 = vmax.f32 %v2277, 0.0
  %v2398 = vmax.f32 %v2282, 0.0
  %v2399 = vmax.f32 %v2285, 0.0
  %v2400 = vmax.f32 %v2290, 0.0
  %v2401 = vmax.f32 %v2293, 0.0
  %v2402 = vmax.f32 %v2298, 0.0
  %v2403 = vmax.f32 %v2301, 0.0
  %v2404 = vmax.f32 %v2306, 0.0
  %v2405 = vmax.f32 %v2309, 0.0
  %v2406 = vmax.f32 %v2314, 0.0
  %v2407 = vmax.f32 %v2317, 0.0
  %v2408 = vmax.f32 %v2322, 0.0
  %v2409 = vmax.f32 %v2325, 0.0
  %v2410 = vmax.f32 %v2330, 0.0
  %v2411 = vmax.f32 %v2333, 0.0
  %v2412 = vmax.f32 %v2338, 0.0
  %v2413 = vmax.f32 %v2341, 0.0
  %v2414 = vmax.f32 %v2346, 0.0
  %v2415 = vmax.f32 %v2349, 0.0
  %v2416 = vpack.c.bf16 %v2353, %v2352
  %v2417 = vpack.c.bf16 %v2355, %v2354
  %v2418 = vpack.c.bf16 %v2357, %v2356
  %v2419 = vpack.c.bf16 %v2359, %v2358
  %v2420 = vpack.c.bf16 %v2361, %v2360
  %v2421 = vpack.c.bf16 %v2363, %v2362
  %v2422 = vpack.c.bf16 %v2365, %v2364
  %v2423 = vpack.c.bf16 %v2367, %v2366
  %v2424 = vpack.c.bf16 %v2369, %v2368
  %v2425 = vpack.c.bf16 %v2371, %v2370
  %v2426 = vpack.c.bf16 %v2373, %v2372
  %v2427 = vpack.c.bf16 %v2375, %v2374
  %v2428 = vpack.c.bf16 %v2377, %v2376
  %v2429 = vpack.c.bf16 %v2379, %v2378
  %v2430 = vpack.c.bf16 %v2381, %v2380
  %v2431 = vpack.c.bf16 %v2383, %v2382
  %v2432 = vpack.c.bf16 %v2385, %v2384
  %v2433 = vpack.c.bf16 %v2387, %v2386
  %v2434 = vpack.c.bf16 %v2389, %v2388
  %v2435 = vpack.c.bf16 %v2391, %v2390
  %v2436 = vpack.c.bf16 %v2393, %v2392
  %v2437 = vpack.c.bf16 %v2395, %v2394
  %v2438 = vpack.c.bf16 %v2397, %v2396
  %v2439 = vpack.c.bf16 %v2399, %v2398
  %v2440 = vpack.c.bf16 %v2401, %v2400
  %v2441 = vpack.c.bf16 %v2403, %v2402
  %v2442 = vpack.c.bf16 %v2405, %v2404
  %v2443 = vpack.c.bf16 %v2407, %v2406
  %v2444 = vpack.c.bf16 %v2409, %v2408
  %v2445 = vpack.c.bf16 %v2411, %v2410
  %v2446 = vpack.c.bf16 %v2413, %v2412
  %v2447 = vpack.c.bf16 %v2415, %v2414
  %s2448 = scalar_lea.vmem %s2, 256
  %v2449 = vld [vmem:[%s2448] sm:$0xf]
  %v2450 = vld [vmem:[%s2448 + $0x4] sm:$0xf]
  %v2451 = vld [vmem:[%s2448 + $0x8] sm:$0xf]
  %v2452 = vld [vmem:[%s2448 + $0xc] sm:$0xf]
  %v2453 = vld [vmem:[%s2448 + $0x10] sm:$0xf]
  %v2454 = vld [vmem:[%s2448 + $0x14] sm:$0xf]
  %v2455 = vld [vmem:[%s2448 + $0x18] sm:$0xf]
  %v2456 = vld [vmem:[%s2448 + $0x1c] sm:$0xf]
  %v2457 = vld [vmem:[%s2448 + $0x20] sm:$0xf]
  %v2458 = vld [vmem:[%s2448 + $0x24] sm:$0xf]
  %v2459 = vld [vmem:[%s2448 + $0x28] sm:$0xf]
  %v2460 = vld [vmem:[%s2448 + $0x2c] sm:$0xf]
  %v2461 = vld [vmem:[%s2448 + $0x30] sm:$0xf]
  %v2462 = vld [vmem:[%s2448 + $0x34] sm:$0xf]
  %v2463 = vld [vmem:[%s2448 + $0x38] sm:$0xf]
  %v2464 = vld [vmem:[%s2448 + $0x3c] sm:$0xf]
  %s2465 = scalar_lea.vmem %s3, 5
  %v2466 = vld [vmem:[%s2465] sm:$0x1]
  %v2468 = vlaneseq
  %v2469 = vshrl.u32 %v2468, 7
  %v2470 = vsub.s32 0, %v2469
  %v2471 = vrot.slane %v2466, %v2470
  %v2489 = vunpack.c.l.b16 %v2449
  %v2490 = vunpack.c.l.b16 %v2450
  %v2491 = vunpack.c.l.b16 %v2451
  %v2492 = vunpack.c.l.b16 %v2452
  %v2493 = vunpack.c.l.b16 %v2453
  %v2494 = vunpack.c.l.b16 %v2454
  %v2495 = vunpack.c.l.b16 %v2455
  %v2496 = vunpack.c.l.b16 %v2456
  %v2497 = vunpack.c.l.b16 %v2457
  %v2498 = vunpack.c.l.b16 %v2458
  %v2499 = vunpack.c.l.b16 %v2459
  %v2500 = vunpack.c.l.b16 %v2460
  %v2501 = vunpack.c.l.b16 %v2461
  %v2502 = vunpack.c.l.b16 %v2462
  %v2503 = vunpack.c.l.b16 %v2463
  %v2504 = vunpack.c.l.b16 %v2464
  %v2505 = vpack.c.b16 %v2490, %v2489
  %v2506 = vpack.c.b16 %v2492, %v2491
  %v2507 = vpack.c.b16 %v2494, %v2493
  %v2508 = vpack.c.b16 %v2496, %v2495
  %v2509 = vpack.c.b16 %v2498, %v2497
  %v2510 = vpack.c.b16 %v2500, %v2499
  %v2511 = vpack.c.b16 %v2502, %v2501
  %v2512 = vpack.c.b16 %v2504, %v2503
  %2521 = vmatprep.subr.bf16.mxu0 0
  %2522 = vmatpush1.bf16.msra.mxu0 %v2505
  %2523 = vmatprep.subr.bf16.mxu0 0
  %2524 = vmatpush1.bf16.msra.mxu0 %v2506
  %2525 = vmatprep.subr.bf16.mxu0 0
  %2526 = vmatpush1.bf16.msra.mxu0 %v2507
  %2527 = vmatprep.subr.bf16.mxu0 0
  %2528 = vmatpush1.bf16.msra.mxu0 %v2508
  %2529 = vmatprep.subr.bf16.mxu0 0
  %2530 = vmatpush1.bf16.msra.mxu0 %v2509
  %2531 = vmatprep.subr.bf16.mxu0 0
  %2532 = vmatpush1.bf16.msra.mxu0 %v2510
  %2533 = vmatprep.subr.bf16.mxu0 0
  %2534 = vmatpush1.bf16.msra.mxu0 %v2511
  %2535 = vmatprep.subr.bf16.mxu0 0
  %2536 = vmatpush1.bf16.msra.mxu0 %v2512
  %2537 = vmatprep.subr.bf16.mxu0 0
  %2538 = vmatpush1.bf16.msra.mxu0 0
  %2539 = vmatprep.subr.bf16.mxu0 0
  %2540 = vmatpush1.bf16.msra.mxu0 0
  %2541 = vmatprep.subr.bf16.mxu0 0
  %2542 = vmatpush1.bf16.msra.mxu0 0
  %2543 = vmatprep.subr.bf16.mxu0 0
  %2544 = vmatpush1.bf16.msra.mxu0 0
  %2545 = vmatprep.subr.bf16.mxu0 0
  %2546 = vmatpush1.bf16.msra.mxu0 0
  %2547 = vmatprep.subr.bf16.mxu0 0
  %2548 = vmatpush1.bf16.msra.mxu0 0
  %2549 = vmatprep.subr.bf16.mxu0 0
  %2550 = vmatpush1.bf16.msra.mxu0 0
  %2551 = vmatprep.subr.bf16.mxu0 0
  %2552 = vmatpush1.bf16.msra.mxu0 0
  %2553 = vmatprep.mubr.bf16.mxu0 0
  %2554 = vmatmul.mubr.bf16.gmra.mrb[0].mxu0 %v2416
  %v2555 = vpop.f32.mrb[0].mxu0
  %v2556 = vadd.f32 %v2471, %v2555
  %v2557 = vpop.f32.mrb[0].mxu0
  %v2558 = vpop.f32.mrb[0].mxu0
  %v2559 = vadd.f32 %v2471, %v2558
  %v2560 = vpop.f32.mrb[0].mxu0
  %2561 = vmatprep.mubr.bf16.mxu0 0
  %2562 = vmatmul.mubr.bf16.gmra.mrb[0].mxu0 %v2417
  %v2563 = vpop.f32.mrb[0].mxu0
  %v2564 = vadd.f32 %v2471, %v2563
  %v2565 = vpop.f32.mrb[0].mxu0
  %v2566 = vpop.f32.mrb[0].mxu0
  %v2567 = vadd.f32 %v2471, %v2566
  %v2568 = vpop.f32.mrb[0].mxu0
  %2569 = vmatprep.mubr.bf16.mxu0 0
  %2570 = vmatmul.mubr.bf16.gmra.mrb[0].mxu0 %v2418
  %v2571 = vpop.f32.mrb[0].mxu0
  %v2572 = vadd.f32 %v2471, %v2571
  %v2573 = vpop.f32.mrb[0].mxu0
  %v2574 = vpop.f32.mrb[0].mxu0
  %v2575 = vadd.f32 %v2471, %v2574
  %v2576 = vpop.f32.mrb[0].mxu0
  %2577 = vmatprep.mubr.bf16.mxu0 0
  %2578 = vmatmul.mubr.bf16.gmra.mrb[0].mxu0 %v2419
  %v2579 = vpop.f32.mrb[0].mxu0
  %v2580 = vadd.f32 %v2471, %v2579
  %v2581 = vpop.f32.mrb[0].mxu0
  %v2582 = vpop.f32.mrb[0].mxu0
  %v2583 = vadd.f32 %v2471, %v2582
  %v2584 = vpop.f32.mrb[0].mxu0
  %2585 = vmatprep.mubr.bf16.mxu0 0
  %2586 = vmatmul.mubr.bf16.gmra.mrb[0].mxu0 %v2420
  %v2587 = vpop.f32.mrb[0].mxu0
  %v2588 = vadd.f32 %v2471, %v2587
  %v2589 = vpop.f32.mrb[0].mxu0
  %v2590 = vpop.f32.mrb[0].mxu0
  %v2591 = vadd.f32 %v2471, %v2590
  %v2592 = vpop.f32.mrb[0].mxu0
  %2593 = vmatprep.mubr.bf16.mxu0 0
  %2594 = vmatmul.mubr.bf16.gmra.mrb[0].mxu0 %v2421
  %v2595 = vpop.f32.mrb[0].mxu0
  %v2596 = vadd.f32 %v2471, %v2595
  %v2597 = vpop.f32.mrb[0].mxu0
  %v2598 = vpop.f32.mrb[0].mxu0
  %v2599 = vadd.f32 %v2471, %v2598
  %v2600 = vpop.f32.mrb[0].mxu0
  %2601 = vmatprep.mubr.bf16.mxu0 0
  %2602 = vmatmul.mubr.bf16.gmra.mrb[0].mxu0 %v2422
  %v2603 = vpop.f32.mrb[0].mxu0
  %v2604 = vadd.f32 %v2471, %v2603
  %v2605 = vpop.f32.mrb[0].mxu0
  %v2606 = vpop.f32.mrb[0].mxu0
  %v2607 = vadd.f32 %v2471, %v2606
  %v2608 = vpop.f32.mrb[0].mxu0
  %2609 = vmatprep.mubr.bf16.mxu0 0
  %2610 = vmatmul.mubr.bf16.gmra.mrb[0].mxu0 %v2423
  %v2611 = vpop.f32.mrb[0].mxu0
  %v2612 = vadd.f32 %v2471, %v2611
  %v2613 = vpop.f32.mrb[0].mxu0
  %v2614 = vpop.f32.mrb[0].mxu0
  %v2615 = vadd.f32 %v2471, %v2614
  %v2616 = vpop.f32.mrb[0].mxu0
  %2617 = vmatprep.mubr.bf16.mxu0 0
  %2618 = vmatmul.mubr.bf16.gmra.mrb[0].mxu0 %v2424
  %v2619 = vpop.f32.mrb[0].mxu0
  %v2620 = vadd.f32 %v2471, %v2619
  %v2621 = vpop.f32.mrb[0].mxu0
  %v2622 = vpop.f32.mrb[0].mxu0
  %v2623 = vadd.f32 %v2471, %v2622
  %v2624 = vpop.f32.mrb[0].mxu0
  %2625 = vmatprep.mubr.bf16.mxu0 0
  %2626 = vmatmul.mubr.bf16.gmra.mrb[0].mxu0 %v2425
  %v2627 = vpop.f32.mrb[0].mxu0
  %v2628 = vadd.f32 %v2471, %v2627
  %v2629 = vpop.f32.mrb[0].mxu0
  %v2630 = vpop.f32.mrb[0].mxu0
  %v2631 = vadd.f32 %v2471, %v2630
  %v2632 = vpop.f32.mrb[0].mxu0
  %2633 = vmatprep.mubr.bf16.mxu0 0
  %2634 = vmatmul.mubr.bf16.gmra.mrb[0].mxu0 %v2426
  %v2635 = vpop.f32.mrb[0].mxu0
  %v2636 = vadd.f32 %v2471, %v2635
  %v2637 = vpop.f32.mrb[0].mxu0
  %v2638 = vpop.f32.mrb[0].mxu0
  %v2639 = vadd.f32 %v2471, %v2638
  %v2640 = vpop.f32.mrb[0].mxu0
  %2641 = vmatprep.mubr.bf16.mxu0 0
  %2642 = vmatmul.mubr.bf16.gmra.mrb[0].mxu0 %v2427
  %v2643 = vpop.f32.mrb[0].mxu0
  %v2644 = vadd.f32 %v2471, %v2643
  %v2645 = vpop.f32.mrb[0].mxu0
  %v2646 = vpop.f32.mrb[0].mxu0
  %v2647 = vadd.f32 %v2471, %v2646
  %v2648 = vpop.f32.mrb[0].mxu0
  %2649 = vmatprep.mubr.bf16.mxu0 0
  %2650 = vmatmul.mubr.bf16.gmra.mrb[0].mxu0 %v2428
  %v2651 = vpop.f32.mrb[0].mxu0
  %v2652 = vadd.f32 %v2471, %v2651
  %v2653 = vpop.f32.mrb[0].mxu0
  %v2654 = vpop.f32.mrb[0].mxu0
  %v2655 = vadd.f32 %v2471, %v2654
  %v2656 = vpop.f32.mrb[0].mxu0
  %2657 = vmatprep.mubr.bf16.mxu0 0
  %2658 = vmatmul.mubr.bf16.gmra.mrb[0].mxu0 %v2429
  %v2659 = vpop.f32.mrb[0].mxu0
  %v2660 = vadd.f32 %v2471, %v2659
  %v2661 = vpop.f32.mrb[0].mxu0
  %v2662 = vpop.f32.mrb[0].mxu0
  %v2663 = vadd.f32 %v2471, %v2662
  %v2664 = vpop.f32.mrb[0].mxu0
  %2665 = vmatprep.mubr.bf16.mxu0 0
  %2666 = vmatmul.mubr.bf16.gmra.mrb[0].mxu0 %v2430
  %v2667 = vpop.f32.mrb[0].mxu0
  %v2668 = vadd.f32 %v2471, %v2667
  %v2669 = vpop.f32.mrb[0].mxu0
  %v2670 = vpop.f32.mrb[0].mxu0
  %v2671 = vadd.f32 %v2471, %v2670
  %v2672 = vpop.f32.mrb[0].mxu0
  %2673 = vmatprep.mubr.bf16.mxu0 0
  %2674 = vmatmul.mubr.bf16.gmra.mrb[0].mxu0 %v2431
  %v2675 = vpop.f32.mrb[0].mxu0
  %v2676 = vadd.f32 %v2471, %v2675
  %v2677 = vpop.f32.mrb[0].mxu0
  %v2678 = vpop.f32.mrb[0].mxu0
  %v2679 = vadd.f32 %v2471, %v2678
  %v2680 = vpop.f32.mrb[0].mxu0
  %2681 = vmatprep.mubr.bf16.mxu0 0
  %2682 = vmatmul.mubr.bf16.gmra.mrb[0].mxu0 %v2432
  %v2683 = vpop.f32.mrb[0].mxu0
  %v2684 = vadd.f32 %v2471, %v2683
  %v2685 = vpop.f32.mrb[0].mxu0
  %v2686 = vpop.f32.mrb[0].mxu0
  %v2687 = vadd.f32 %v2471, %v2686
  %v2688 = vpop.f32.mrb[0].mxu0
  %2689 = vmatprep.mubr.bf16.mxu0 0
  %2690 = vmatmul.mubr.bf16.gmra.mrb[0].mxu0 %v2433
  %v2691 = vpop.f32.mrb[0].mxu0
  %v2692 = vadd.f32 %v2471, %v2691
  %v2693 = vpop.f32.mrb[0].mxu0
  %v2694 = vpop.f32.mrb[0].mxu0
  %v2695 = vadd.f32 %v2471, %v2694
  %v2696 = vpop.f32.mrb[0].mxu0
  %2697 = vmatprep.mubr.bf16.mxu0 0
  %2698 = vmatmul.mubr.bf16.gmra.mrb[0].mxu0 %v2434
  %v2699 = vpop.f32.mrb[0].mxu0
  %v2700 = vadd.f32 %v2471, %v2699
  %v2701 = vpop.f32.mrb[0].mxu0
  %v2702 = vpop.f32.mrb[0].mxu0
  %v2703 = vadd.f32 %v2471, %v2702
  %v2704 = vpop.f32.mrb[0].mxu0
  %2705 = vmatprep.mubr.bf16.mxu0 0
  %2706 = vmatmul.mubr.bf16.gmra.mrb[0].mxu0 %v2435
  %v2707 = vpop.f32.mrb[0].mxu0
  %v2708 = vadd.f32 %v2471, %v2707
  %v2709 = vpop.f32.mrb[0].mxu0
  %v2710 = vpop.f32.mrb[0].mxu0
  %v2711 = vadd.f32 %v2471, %v2710
  %v2712 = vpop.f32.mrb[0].mxu0
  %2713 = vmatprep.mubr.bf16.mxu0 0
  %2714 = vmatmul.mubr.bf16.gmra.mrb[0].mxu0 %v2436
  %v2715 = vpop.f32.mrb[0].mxu0
  %v2716 = vadd.f32 %v2471, %v2715
  %v2717 = vpop.f32.mrb[0].mxu0
  %v2718 = vpop.f32.mrb[0].mxu0
  %v2719 = vadd.f32 %v2471, %v2718
  %v2720 = vpop.f32.mrb[0].mxu0
  %2721 = vmatprep.mubr.bf16.mxu0 0
  %2722 = vmatmul.mubr.bf16.gmra.mrb[0].mxu0 %v2437
  %v2723 = vpop.f32.mrb[0].mxu0
  %v2724 = vadd.f32 %v2471, %v2723
  %v2725 = vpop.f32.mrb[0].mxu0
  %v2726 = vpop.f32.mrb[0].mxu0
  %v2727 = vadd.f32 %v2471, %v2726
  %v2728 = vpop.f32.mrb[0].mxu0
  %2729 = vmatprep.mubr.bf16.mxu0 0
  %2730 = vmatmul.mubr.bf16.gmra.mrb[0].mxu0 %v2438
  %v2731 = vpop.f32.mrb[0].mxu0
  %v2732 = vadd.f32 %v2471, %v2731
  %v2733 = vpop.f32.mrb[0].mxu0
  %v2734 = vpop.f32.mrb[0].mxu0
  %v2735 = vadd.f32 %v2471, %v2734
  %v2736 = vpop.f32.mrb[0].mxu0
  %2737 = vmatprep.mubr.bf16.mxu0 0
  %2738 = vmatmul.mubr.bf16.gmra.mrb[0].mxu0 %v2439
  %v2739 = vpop.f32.mrb[0].mxu0
  %v2740 = vadd.f32 %v2471, %v2739
  %v2741 = vpop.f32.mrb[0].mxu0
  %v2742 = vpop.f32.mrb[0].mxu0
  %v2743 = vadd.f32 %v2471, %v2742
  %v2744 = vpop.f32.mrb[0].mxu0
  %2745 = vmatprep.mubr.bf16.mxu0 0
  %2746 = vmatmul.mubr.bf16.gmra.mrb[0].mxu0 %v2440
  %v2747 = vpop.f32.mrb[0].mxu0
  %v2748 = vadd.f32 %v2471, %v2747
  %v2749 = vpop.f32.mrb[0].mxu0
  %v2750 = vpop.f32.mrb[0].mxu0
  %v2751 = vadd.f32 %v2471, %v2750
  %v2752 = vpop.f32.mrb[0].mxu0
  %2753 = vmatprep.mubr.bf16.mxu0 0
  %2754 = vmatmul.mubr.bf16.gmra.mrb[0].mxu0 %v2441
  %v2755 = vpop.f32.mrb[0].mxu0
  %v2756 = vadd.f32 %v2471, %v2755
  %v2757 = vpop.f32.mrb[0].mxu0
  %v2758 = vpop.f32.mrb[0].mxu0
  %v2759 = vadd.f32 %v2471, %v2758
  %v2760 = vpop.f32.mrb[0].mxu0
  %2761 = vmatprep.mubr.bf16.mxu0 0
  %2762 = vmatmul.mubr.bf16.gmra.mrb[0].mxu0 %v2442
  %v2763 = vpop.f32.mrb[0].mxu0
  %v2764 = vadd.f32 %v2471, %v2763
  %v2765 = vpop.f32.mrb[0].mxu0
  %v2766 = vpop.f32.mrb[0].mxu0
  %v2767 = vadd.f32 %v2471, %v2766
  %v2768 = vpop.f32.mrb[0].mxu0
  %2769 = vmatprep.mubr.bf16.mxu0 0
  %2770 = vmatmul.mubr.bf16.gmra.mrb[0].mxu0 %v2443
  %v2771 = vpop.f32.mrb[0].mxu0
  %v2772 = vadd.f32 %v2471, %v2771
  %v2773 = vpop.f32.mrb[0].mxu0
  %v2774 = vpop.f32.mrb[0].mxu0
  %v2775 = vadd.f32 %v2471, %v2774
  %v2776 = vpop.f32.mrb[0].mxu0
  %2777 = vmatprep.mubr.bf16.mxu0 0
  %2778 = vmatmul.mubr.bf16.gmra.mrb[0].mxu0 %v2444
  %v2779 = vpop.f32.mrb[0].mxu0
  %v2780 = vadd.f32 %v2471, %v2779
  %v2781 = vpop.f32.mrb[0].mxu0
  %v2782 = vpop.f32.mrb[0].mxu0
  %v2783 = vadd.f32 %v2471, %v2782
  %v2784 = vpop.f32.mrb[0].mxu0
  %2785 = vmatprep.mubr.bf16.mxu0 0
  %2786 = vmatmul.mubr.bf16.gmra.mrb[0].mxu0 %v2445
  %v2787 = vpop.f32.mrb[0].mxu0
  %v2788 = vadd.f32 %v2471, %v2787
  %v2789 = vpop.f32.mrb[0].mxu0
  %v2790 = vpop.f32.mrb[0].mxu0
  %v2791 = vadd.f32 %v2471, %v2790
  %v2792 = vpop.f32.mrb[0].mxu0
  %2793 = vmatprep.mubr.bf16.mxu0 0
  %2794 = vmatmul.mubr.bf16.gmra.mrb[0].mxu0 %v2446
  %v2795 = vpop.f32.mrb[0].mxu0
  %v2796 = vadd.f32 %v2471, %v2795
  %v2797 = vpop.f32.mrb[0].mxu0
  %v2798 = vpop.f32.mrb[0].mxu0
  %v2799 = vadd.f32 %v2471, %v2798
  %v2800 = vpop.f32.mrb[0].mxu0
  %2801 = vmatprep.mubr.bf16.mxu0 0
  %2802 = vmatmul.mubr.bf16.gmra.mrb[0].mxu0 %v2447
  %v2803 = vpop.f32.mrb[0].mxu0
  %v2804 = vadd.f32 %v2471, %v2803
  %v2805 = vpop.f32.mrb[0].mxu0
  %v2806 = vpop.f32.mrb[0].mxu0
  %v2807 = vadd.f32 %v2471, %v2806
  %v2808 = vpop.f32.mrb[0].mxu0
  %2809 = vdwg.mxu0
  %v2810 = vmax.f32 %v2556, 0.0
  %v2811 = vmax.f32 %v2559, 0.0
  %v2812 = vmax.f32 %v2564, 0.0
  %v2813 = vmax.f32 %v2567, 0.0
  %v2814 = vmax.f32 %v2572, 0.0
  %v2815 = vmax.f32 %v2575, 0.0
  %v2816 = vmax.f32 %v2580, 0.0
  %v2817 = vmax.f32 %v2583, 0.0
  %v2818 = vmax.f32 %v2588, 0.0
  %v2819 = vmax.f32 %v2591, 0.0
  %v2820 = vmax.f32 %v2596, 0.0
  %v2821 = vmax.f32 %v2599, 0.0
  %v2822 = vmax.f32 %v2604, 0.0
  %v2823 = vmax.f32 %v2607, 0.0
  %v2824 = vmax.f32 %v2612, 0.0
  %v2825 = vmax.f32 %v2615, 0.0
  %v2826 = vmax.f32 %v2620, 0.0
  %v2827 = vmax.f32 %v2623, 0.0
  %v2828 = vmax.f32 %v2628, 0.0
  %v2829 = vmax.f32 %v2631, 0.0
  %v2830 = vmax.f32 %v2636, 0.0
  %v2831 = vmax.f32 %v2639, 0.0
  %v2832 = vmax.f32 %v2644, 0.0
  %v2833 = vmax.f32 %v2647, 0.0
  %v2834 = vmax.f32 %v2652, 0.0
  %v2835 = vmax.f32 %v2655, 0.0
  %v2836 = vmax.f32 %v2660, 0.0
  %v2837 = vmax.f32 %v2663, 0.0
  %v2838 = vmax.f32 %v2668, 0.0
  %v2839 = vmax.f32 %v2671, 0.0
  %v2840 = vmax.f32 %v2676, 0.0
  %v2841 = vmax.f32 %v2679, 0.0
  %v2842 = vmax.f32 %v2684, 0.0
  %v2843 = vmax.f32 %v2687, 0.0
  %v2844 = vmax.f32 %v2692, 0.0
  %v2845 = vmax.f32 %v2695, 0.0
  %v2846 = vmax.f32 %v2700, 0.0
  %v2847 = vmax.f32 %v2703, 0.0
  %v2848 = vmax.f32 %v2708, 0.0
  %v2849 = vmax.f32 %v2711, 0.0
  %v2850 = vmax.f32 %v2716, 0.0
  %v2851 = vmax.f32 %v2719, 0.0
  %v2852 = vmax.f32 %v2724, 0.0
  %v2853 = vmax.f32 %v2727, 0.0
  %v2854 = vmax.f32 %v2732, 0.0
  %v2855 = vmax.f32 %v2735, 0.0
  %v2856 = vmax.f32 %v2740, 0.0
  %v2857 = vmax.f32 %v2743, 0.0
  %v2858 = vmax.f32 %v2748, 0.0
  %v2859 = vmax.f32 %v2751, 0.0
  %v2860 = vmax.f32 %v2756, 0.0
  %v2861 = vmax.f32 %v2759, 0.0
  %v2862 = vmax.f32 %v2764, 0.0
  %v2863 = vmax.f32 %v2767, 0.0
  %v2864 = vmax.f32 %v2772, 0.0
  %v2865 = vmax.f32 %v2775, 0.0
  %v2866 = vmax.f32 %v2780, 0.0
  %v2867 = vmax.f32 %v2783, 0.0
  %v2868 = vmax.f32 %v2788, 0.0
  %v2869 = vmax.f32 %v2791, 0.0
  %v2870 = vmax.f32 %v2796, 0.0
  %v2871 = vmax.f32 %v2799, 0.0
  %v2872 = vmax.f32 %v2804, 0.0
  %v2873 = vmax.f32 %v2807, 0.0
  %v2874 = vpack.c.bf16 %v2811, %v2810
  %v2875 = vpack.c.bf16 %v2813, %v2812
  %v2876 = vpack.c.bf16 %v2815, %v2814
  %v2877 = vpack.c.bf16 %v2817, %v2816
  %v2878 = vpack.c.bf16 %v2819, %v2818
  %v2879 = vpack.c.bf16 %v2821, %v2820
  %v2880 = vpack.c.bf16 %v2823, %v2822
  %v2881 = vpack.c.bf16 %v2825, %v2824
  %v2882 = vpack.c.bf16 %v2827, %v2826
  %v2883 = vpack.c.bf16 %v2829, %v2828
  %v2884 = vpack.c.bf16 %v2831, %v2830
  %v2885 = vpack.c.bf16 %v2833, %v2832
  %v2886 = vpack.c.bf16 %v2835, %v2834
  %v2887 = vpack.c.bf16 %v2837, %v2836
  %v2888 = vpack.c.bf16 %v2839, %v2838
  %v2889 = vpack.c.bf16 %v2841, %v2840
  %v2890 = vpack.c.bf16 %v2843, %v2842
  %v2891 = vpack.c.bf16 %v2845, %v2844
  %v2892 = vpack.c.bf16 %v2847, %v2846
  %v2893 = vpack.c.bf16 %v2849, %v2848
  %v2894 = vpack.c.bf16 %v2851, %v2850
  %v2895 = vpack.c.bf16 %v2853, %v2852
  %v2896 = vpack.c.bf16 %v2855, %v2854
  %v2897 = vpack.c.bf16 %v2857, %v2856
  %v2898 = vpack.c.bf16 %v2859, %v2858
  %v2899 = vpack.c.bf16 %v2861, %v2860
  %v2900 = vpack.c.bf16 %v2863, %v2862
  %v2901 = vpack.c.bf16 %v2865, %v2864
  %v2902 = vpack.c.bf16 %v2867, %v2866
  %v2903 = vpack.c.bf16 %v2869, %v2868
  %v2904 = vpack.c.bf16 %v2871, %v2870
  %v2905 = vpack.c.bf16 %v2873, %v2872
  %v2906 = vld [vmem:[%s4] sm:$0xf]
  %v2907 = vld [vmem:[%s4 + $0x4] sm:$0xf]
  %v2908 = vld [vmem:[%s4 + $0x8] sm:$0xf]
  %v2909 = vld [vmem:[%s4 + $0xc] sm:$0xf]
  %v2910 = vld [vmem:[%s4 + $0x10] sm:$0xf]
  %v2911 = vld [vmem:[%s4 + $0x14] sm:$0xf]
  %v2912 = vld [vmem:[%s4 + $0x18] sm:$0xf]
  %v2913 = vld [vmem:[%s4 + $0x1c] sm:$0xf]
  %v2914 = vld [vmem:[%s4 + $0x20] sm:$0xf]
  %v2915 = vld [vmem:[%s4 + $0x24] sm:$0xf]
  %v2916 = vld [vmem:[%s4 + $0x28] sm:$0xf]
  %v2917 = vld [vmem:[%s4 + $0x2c] sm:$0xf]
  %v2918 = vld [vmem:[%s4 + $0x30] sm:$0xf]
  %v2919 = vld [vmem:[%s4 + $0x34] sm:$0xf]
  %v2920 = vld [vmem:[%s4 + $0x38] sm:$0xf]
  %v2921 = vld [vmem:[%s4 + $0x3c] sm:$0xf]
  %v2922 = vld [vmem:[%s5] sm:$0x1]
  %v2924 = vlaneseq
  %v2925 = vshrl.u32 %v2924, 7
  %v2926 = vsub.s32 0, %v2925
  %v2927 = vrot.slane %v2922, %v2926
  %v2945 = vunpack.c.l.b16 %v2906
  %v2946 = vunpack.c.l.b16 %v2907
  %v2947 = vunpack.c.l.b16 %v2908
  %v2948 = vunpack.c.l.b16 %v2909
  %v2949 = vunpack.c.l.b16 %v2910
  %v2950 = vunpack.c.l.b16 %v2911
  %v2951 = vunpack.c.l.b16 %v2912
  %v2952 = vunpack.c.l.b16 %v2913
  %v2953 = vunpack.c.l.b16 %v2914
  %v2954 = vunpack.c.l.b16 %v2915
  %v2955 = vunpack.c.l.b16 %v2916
  %v2956 = vunpack.c.l.b16 %v2917
  %v2957 = vunpack.c.l.b16 %v2918
  %v2958 = vunpack.c.l.b16 %v2919
  %v2959 = vunpack.c.l.b16 %v2920
  %v2960 = vunpack.c.l.b16 %v2921
  %v2961 = vpack.c.b16 %v2946, %v2945
  %v2962 = vpack.c.b16 %v2948, %v2947
  %v2963 = vpack.c.b16 %v2950, %v2949
  %v2964 = vpack.c.b16 %v2952, %v2951
  %v2965 = vpack.c.b16 %v2954, %v2953
  %v2966 = vpack.c.b16 %v2956, %v2955
  %v2967 = vpack.c.b16 %v2958, %v2957
  %v2968 = vpack.c.b16 %v2960, %v2959
  %2977 = vmatprep.subr.bf16.mxu0 0
  %2978 = vmatpush1.bf16.msra.mxu0 %v2961
  %2979 = vmatprep.subr.bf16.mxu0 0
  %2980 = vmatpush1.bf16.msra.mxu0 %v2962
  %2981 = vmatprep.subr.bf16.mxu0 0
  %2982 = vmatpush1.bf16.msra.mxu0 %v2963
  %2983 = vmatprep.subr.bf16.mxu0 0
  %2984 = vmatpush1.bf16.msra.mxu0 %v2964
  %2985 = vmatprep.subr.bf16.mxu0 0
  %2986 = vmatpush1.bf16.msra.mxu0 %v2965
  %2987 = vmatprep.subr.bf16.mxu0 0
  %2988 = vmatpush1.bf16.msra.mxu0 %v2966
  %2989 = vmatprep.subr.bf16.mxu0 0
  %2990 = vmatpush1.bf16.msra.mxu0 %v2967
  %2991 = vmatprep.subr.bf16.mxu0 0
  %2992 = vmatpush1.bf16.msra.mxu0 %v2968
  %2993 = vmatprep.subr.bf16.mxu0 0
  %2994 = vmatpush1.bf16.msra.mxu0 0
  %2995 = vmatprep.subr.bf16.mxu0 0
  %2996 = vmatpush1.bf16.msra.mxu0 0
  %2997 = vmatprep.subr.bf16.mxu0 0
  %2998 = vmatpush1.bf16.msra.mxu0 0
  %2999 = vmatprep.subr.bf16.mxu0 0
  %3000 = vmatpush1.bf16.msra.mxu0 0
  %3001 = vmatprep.subr.bf16.mxu0 0
  %3002 = vmatpush1.bf16.msra.mxu0 0
  %3003 = vmatprep.subr.bf16.mxu0 0
  %3004 = vmatpush1.bf16.msra.mxu0 0
  %3005 = vmatprep.subr.bf16.mxu0 0
  %3006 = vmatpush1.bf16.msra.mxu0 0
  %3007 = vmatprep.subr.bf16.mxu0 0
  %3008 = vmatpush1.bf16.msra.mxu0 0
  %3009 = vmatprep.mubr.bf16.mxu0 0
  %3010 = vmatmul.mubr.bf16.gmra.mrb[0].mxu0 %v2874
  %v3011 = vpop.f32.mrb[0].mxu0
  %v3012 = vadd.f32 %v2927, %v3011
  %v3013 = vpop.f32.mrb[0].mxu0
  %v3014 = vpop.f32.mrb[0].mxu0
  %v3015 = vadd.f32 %v2927, %v3014
  %v3016 = vpop.f32.mrb[0].mxu0
  %3017 = vmatprep.mubr.bf16.mxu0 0
  %3018 = vmatmul.mubr.bf16.gmra.mrb[0].mxu0 %v2875
  %v3019 = vpop.f32.mrb[0].mxu0
  %v3020 = vadd.f32 %v2927, %v3019
  %v3021 = vpop.f32.mrb[0].mxu0
  %v3022 = vpop.f32.mrb[0].mxu0
  %v3023 = vadd.f32 %v2927, %v3022
  %v3024 = vpop.f32.mrb[0].mxu0
  %3025 = vmatprep.mubr.bf16.mxu0 0
  %3026 = vmatmul.mubr.bf16.gmra.mrb[0].mxu0 %v2876
  %v3027 = vpop.f32.mrb[0].mxu0
  %v3028 = vadd.f32 %v2927, %v3027
  %v3029 = vpop.f32.mrb[0].mxu0
  %v3030 = vpop.f32.mrb[0].mxu0
  %v3031 = vadd.f32 %v2927, %v3030
  %v3032 = vpop.f32.mrb[0].mxu0
  %3033 = vmatprep.mubr.bf16.mxu0 0
  %3034 = vmatmul.mubr.bf16.gmra.mrb[0].mxu0 %v2877
  %v3035 = vpop.f32.mrb[0].mxu0
  %v3036 = vadd.f32 %v2927, %v3035
  %v3037 = vpop.f32.mrb[0].mxu0
  %v3038 = vpop.f32.mrb[0].mxu0
  %v3039 = vadd.f32 %v2927, %v3038
  %v3040 = vpop.f32.mrb[0].mxu0
  %3041 = vmatprep.mubr.bf16.mxu0 0
  %3042 = vmatmul.mubr.bf16.gmra.mrb[0].mxu0 %v2878
  %v3043 = vpop.f32.mrb[0].mxu0
  %v3044 = vadd.f32 %v2927, %v3043
  %v3045 = vpop.f32.mrb[0].mxu0
  %v3046 = vpop.f32.mrb[0].mxu0
  %v3047 = vadd.f32 %v2927, %v3046
  %v3048 = vpop.f32.mrb[0].mxu0
  %3049 = vmatprep.mubr.bf16.mxu0 0
  %3050 = vmatmul.mubr.bf16.gmra.mrb[0].mxu0 %v2879
  %v3051 = vpop.f32.mrb[0].mxu0
  %v3052 = vadd.f32 %v2927, %v3051
  %v3053 = vpop.f32.mrb[0].mxu0
  %v3054 = vpop.f32.mrb[0].mxu0
  %v3055 = vadd.f32 %v2927, %v3054
  %v3056 = vpop.f32.mrb[0].mxu0
  %3057 = vmatprep.mubr.bf16.mxu0 0
  %3058 = vmatmul.mubr.bf16.gmra.mrb[0].mxu0 %v2880
  %v3059 = vpop.f32.mrb[0].mxu0
  %v3060 = vadd.f32 %v2927, %v3059
  %v3061 = vpop.f32.mrb[0].mxu0
  %v3062 = vpop.f32.mrb[0].mxu0
  %v3063 = vadd.f32 %v2927, %v3062
  %v3064 = vpop.f32.mrb[0].mxu0
  %3065 = vmatprep.mubr.bf16.mxu0 0
  %3066 = vmatmul.mubr.bf16.gmra.mrb[0].mxu0 %v2881
  %v3067 = vpop.f32.mrb[0].mxu0
  %v3068 = vadd.f32 %v2927, %v3067
  %v3069 = vpop.f32.mrb[0].mxu0
  %v3070 = vpop.f32.mrb[0].mxu0
  %v3071 = vadd.f32 %v2927, %v3070
  %v3072 = vpop.f32.mrb[0].mxu0
  %3073 = vmatprep.mubr.bf16.mxu0 0
  %3074 = vmatmul.mubr.bf16.gmra.mrb[0].mxu0 %v2882
  %v3075 = vpop.f32.mrb[0].mxu0
  %v3076 = vadd.f32 %v2927, %v3075
  %v3077 = vpop.f32.mrb[0].mxu0
  %v3078 = vpop.f32.mrb[0].mxu0
  %v3079 = vadd.f32 %v2927, %v3078
  %v3080 = vpop.f32.mrb[0].mxu0
  %3081 = vmatprep.mubr.bf16.mxu0 0
  %3082 = vmatmul.mubr.bf16.gmra.mrb[0].mxu0 %v2883
  %v3083 = vpop.f32.mrb[0].mxu0
  %v3084 = vadd.f32 %v2927, %v3083
  %v3085 = vpop.f32.mrb[0].mxu0
  %v3086 = vpop.f32.mrb[0].mxu0
  %v3087 = vadd.f32 %v2927, %v3086
  %v3088 = vpop.f32.mrb[0].mxu0
  %3089 = vmatprep.mubr.bf16.mxu0 0
  %3090 = vmatmul.mubr.bf16.gmra.mrb[0].mxu0 %v2884
  %v3091 = vpop.f32.mrb[0].mxu0
  %v3092 = vadd.f32 %v2927, %v3091
  %v3093 = vpop.f32.mrb[0].mxu0
  %v3094 = vpop.f32.mrb[0].mxu0
  %v3095 = vadd.f32 %v2927, %v3094
  %v3096 = vpop.f32.mrb[0].mxu0
  %3097 = vmatprep.mubr.bf16.mxu0 0
  %3098 = vmatmul.mubr.bf16.gmra.mrb[0].mxu0 %v2885
  %v3099 = vpop.f32.mrb[0].mxu0
  %v3100 = vadd.f32 %v2927, %v3099
  %v3101 = vpop.f32.mrb[0].mxu0
  %v3102 = vpop.f32.mrb[0].mxu0
  %v3103 = vadd.f32 %v2927, %v3102
  %v3104 = vpop.f32.mrb[0].mxu0
  %3105 = vmatprep.mubr.bf16.mxu0 0
  %3106 = vmatmul.mubr.bf16.gmra.mrb[0].mxu0 %v2886
  %v3107 = vpop.f32.mrb[0].mxu0
  %v3108 = vadd.f32 %v2927, %v3107
  %v3109 = vpop.f32.mrb[0].mxu0
  %v3110 = vpop.f32.mrb[0].mxu0
  %v3111 = vadd.f32 %v2927, %v3110
  %v3112 = vpop.f32.mrb[0].mxu0
  %3113 = vmatprep.mubr.bf16.mxu0 0
  %3114 = vmatmul.mubr.bf16.gmra.mrb[0].mxu0 %v2887
  %v3115 = vpop.f32.mrb[0].mxu0
  %v3116 = vadd.f32 %v2927, %v3115
  %v3117 = vpop.f32.mrb[0].mxu0
  %v3118 = vpop.f32.mrb[0].mxu0
  %v3119 = vadd.f32 %v2927, %v3118
  %v3120 = vpop.f32.mrb[0].mxu0
  %3121 = vmatprep.mubr.bf16.mxu0 0
  %3122 = vmatmul.mubr.bf16.gmra.mrb[0].mxu0 %v2888
  %v3123 = vpop.f32.mrb[0].mxu0
  %v3124 = vadd.f32 %v2927, %v3123
  %v3125 = vpop.f32.mrb[0].mxu0
  %v3126 = vpop.f32.mrb[0].mxu0
  %v3127 = vadd.f32 %v2927, %v3126
  %v3128 = vpop.f32.mrb[0].mxu0
  %3129 = vmatprep.mubr.bf16.mxu0 0
  %3130 = vmatmul.mubr.bf16.gmra.mrb[0].mxu0 %v2889
  %v3131 = vpop.f32.mrb[0].mxu0
  %v3132 = vadd.f32 %v2927, %v3131
  %v3133 = vpop.f32.mrb[0].mxu0
  %v3134 = vpop.f32.mrb[0].mxu0
  %v3135 = vadd.f32 %v2927, %v3134
  %v3136 = vpop.f32.mrb[0].mxu0
  %3137 = vmatprep.mubr.bf16.mxu0 0
  %3138 = vmatmul.mubr.bf16.gmra.mrb[0].mxu0 %v2890
  %v3139 = vpop.f32.mrb[0].mxu0
  %v3140 = vadd.f32 %v2927, %v3139
  %v3141 = vpop.f32.mrb[0].mxu0
  %v3142 = vpop.f32.mrb[0].mxu0
  %v3143 = vadd.f32 %v2927, %v3142
  %v3144 = vpop.f32.mrb[0].mxu0
  %3145 = vmatprep.mubr.bf16.mxu0 0
  %3146 = vmatmul.mubr.bf16.gmra.mrb[0].mxu0 %v2891
  %v3147 = vpop.f32.mrb[0].mxu0
  %v3148 = vadd.f32 %v2927, %v3147
  %v3149 = vpop.f32.mrb[0].mxu0
  %v3150 = vpop.f32.mrb[0].mxu0
  %v3151 = vadd.f32 %v2927, %v3150
  %v3152 = vpop.f32.mrb[0].mxu0
  %3153 = vmatprep.mubr.bf16.mxu0 0
  %3154 = vmatmul.mubr.bf16.gmra.mrb[0].mxu0 %v2892
  %v3155 = vpop.f32.mrb[0].mxu0
  %v3156 = vadd.f32 %v2927, %v3155
  %v3157 = vpop.f32.mrb[0].mxu0
  %v3158 = vpop.f32.mrb[0].mxu0
  %v3159 = vadd.f32 %v2927, %v3158
  %v3160 = vpop.f32.mrb[0].mxu0
  %3161 = vmatprep.mubr.bf16.mxu0 0
  %3162 = vmatmul.mubr.bf16.gmra.mrb[0].mxu0 %v2893
  %v3163 = vpop.f32.mrb[0].mxu0
  %v3164 = vadd.f32 %v2927, %v3163
  %v3165 = vpop.f32.mrb[0].mxu0
  %v3166 = vpop.f32.mrb[0].mxu0
  %v3167 = vadd.f32 %v2927, %v3166
  %v3168 = vpop.f32.mrb[0].mxu0
  %3169 = vmatprep.mubr.bf16.mxu0 0
  %3170 = vmatmul.mubr.bf16.gmra.mrb[0].mxu0 %v2894
  %v3171 = vpop.f32.mrb[0].mxu0
  %v3172 = vadd.f32 %v2927, %v3171
  %v3173 = vpop.f32.mrb[0].mxu0
  %v3174 = vpop.f32.mrb[0].mxu0
  %v3175 = vadd.f32 %v2927, %v3174
  %v3176 = vpop.f32.mrb[0].mxu0
  %3177 = vmatprep.mubr.bf16.mxu0 0
  %3178 = vmatmul.mubr.bf16.gmra.mrb[0].mxu0 %v2895
  %v3179 = vpop.f32.mrb[0].mxu0
  %v3180 = vadd.f32 %v2927, %v3179
  %v3181 = vpop.f32.mrb[0].mxu0
  %v3182 = vpop.f32.mrb[0].mxu0
  %v3183 = vadd.f32 %v2927, %v3182
  %v3184 = vpop.f32.mrb[0].mxu0
  %3185 = vmatprep.mubr.bf16.mxu0 0
  %3186 = vmatmul.mubr.bf16.gmra.mrb[0].mxu0 %v2896
  %v3187 = vpop.f32.mrb[0].mxu0
  %v3188 = vadd.f32 %v2927, %v3187
  %v3189 = vpop.f32.mrb[0].mxu0
  %v3190 = vpop.f32.mrb[0].mxu0
  %v3191 = vadd.f32 %v2927, %v3190
  %v3192 = vpop.f32.mrb[0].mxu0
  %3193 = vmatprep.mubr.bf16.mxu0 0
  %3194 = vmatmul.mubr.bf16.gmra.mrb[0].mxu0 %v2897
  %v3195 = vpop.f32.mrb[0].mxu0
  %v3196 = vadd.f32 %v2927, %v3195
  %v3197 = vpop.f32.mrb[0].mxu0
  %v3198 = vpop.f32.mrb[0].mxu0
  %v3199 = vadd.f32 %v2927, %v3198
  %v3200 = vpop.f32.mrb[0].mxu0
  %3201 = vmatprep.mubr.bf16.mxu0 0
  %3202 = vmatmul.mubr.bf16.gmra.mrb[0].mxu0 %v2898
  %v3203 = vpop.f32.mrb[0].mxu0
  %v3204 = vadd.f32 %v2927, %v3203
  %v3205 = vpop.f32.mrb[0].mxu0
  %v3206 = vpop.f32.mrb[0].mxu0
  %v3207 = vadd.f32 %v2927, %v3206
  %v3208 = vpop.f32.mrb[0].mxu0
  %3209 = vmatprep.mubr.bf16.mxu0 0
  %3210 = vmatmul.mubr.bf16.gmra.mrb[0].mxu0 %v2899
  %v3211 = vpop.f32.mrb[0].mxu0
  %v3212 = vadd.f32 %v2927, %v3211
  %v3213 = vpop.f32.mrb[0].mxu0
  %v3214 = vpop.f32.mrb[0].mxu0
  %v3215 = vadd.f32 %v2927, %v3214
  %v3216 = vpop.f32.mrb[0].mxu0
  %3217 = vmatprep.mubr.bf16.mxu0 0
  %3218 = vmatmul.mubr.bf16.gmra.mrb[0].mxu0 %v2900
  %v3219 = vpop.f32.mrb[0].mxu0
  %v3220 = vadd.f32 %v2927, %v3219
  %v3221 = vpop.f32.mrb[0].mxu0
  %v3222 = vpop.f32.mrb[0].mxu0
  %v3223 = vadd.f32 %v2927, %v3222
  %v3224 = vpop.f32.mrb[0].mxu0
  %3225 = vmatprep.mubr.bf16.mxu0 0
  %3226 = vmatmul.mubr.bf16.gmra.mrb[0].mxu0 %v2901
  %v3227 = vpop.f32.mrb[0].mxu0
  %v3228 = vadd.f32 %v2927, %v3227
  %v3229 = vpop.f32.mrb[0].mxu0
  %v3230 = vpop.f32.mrb[0].mxu0
  %v3231 = vadd.f32 %v2927, %v3230
  %v3232 = vpop.f32.mrb[0].mxu0
  %3233 = vmatprep.mubr.bf16.mxu0 0
  %3234 = vmatmul.mubr.bf16.gmra.mrb[0].mxu0 %v2902
  %v3235 = vpop.f32.mrb[0].mxu0
  %v3236 = vadd.f32 %v2927, %v3235
  %v3237 = vpop.f32.mrb[0].mxu0
  %v3238 = vpop.f32.mrb[0].mxu0
  %v3239 = vadd.f32 %v2927, %v3238
  %v3240 = vpop.f32.mrb[0].mxu0
  %3241 = vmatprep.mubr.bf16.mxu0 0
  %3242 = vmatmul.mubr.bf16.gmra.mrb[0].mxu0 %v2903
  %v3243 = vpop.f32.mrb[0].mxu0
  %v3244 = vadd.f32 %v2927, %v3243
  %v3245 = vpop.f32.mrb[0].mxu0
  %v3246 = vpop.f32.mrb[0].mxu0
  %v3247 = vadd.f32 %v2927, %v3246
  %v3248 = vpop.f32.mrb[0].mxu0
  %3249 = vmatprep.mubr.bf16.mxu0 0
  %3250 = vmatmul.mubr.bf16.gmra.mrb[0].mxu0 %v2904
  %v3251 = vpop.f32.mrb[0].mxu0
  %v3252 = vadd.f32 %v2927, %v3251
  %v3253 = vpop.f32.mrb[0].mxu0
  %v3254 = vpop.f32.mrb[0].mxu0
  %v3255 = vadd.f32 %v2927, %v3254
  %v3256 = vpop.f32.mrb[0].mxu0
  %3257 = vmatprep.mubr.bf16.mxu0 0
  %3258 = vmatmul.mubr.bf16.gmra.mrb[0].mxu0 %v2905
  %v3259 = vpop.f32.mrb[0].mxu0
  %v3260 = vadd.f32 %v2927, %v3259
  %v3261 = vpop.f32.mrb[0].mxu0
  %v3262 = vpop.f32.mrb[0].mxu0
  %v3263 = vadd.f32 %v2927, %v3262
  %v3264 = vpop.f32.mrb[0].mxu0
  %3265 = vdwg.mxu0
  %3266 = vst [vmem:[%s6] sm:$0xff] %v3012
  %3267 = vst [vmem:[%s6 + $0x8] sm:$0xff] %v3015
  %3268 = vst [vmem:[%s6 + $0x10] sm:$0xff] %v3020
  %3269 = vst [vmem:[%s6 + $0x18] sm:$0xff] %v3023
  %3270 = vst [vmem:[%s6 + $0x20] sm:$0xff] %v3028
  %3271 = vst [vmem:[%s6 + $0x28] sm:$0xff] %v3031
  %3272 = vst [vmem:[%s6 + $0x30] sm:$0xff] %v3036
  %3273 = vst [vmem:[%s6 + $0x38] sm:$0xff] %v3039
  %3274 = vst [vmem:[%s6 + $0x40] sm:$0xff] %v3044
  %3275 = vst [vmem:[%s6 + $0x48] sm:$0xff] %v3047
  %3276 = vst [vmem:[%s6 + $0x50] sm:$0xff] %v3052
  %3277 = vst [vmem:[%s6 + $0x58] sm:$0xff] %v3055
  %3278 = vst [vmem:[%s6 + $0x60] sm:$0xff] %v3060
  %3279 = vst [vmem:[%s6 + $0x68] sm:$0xff] %v3063
  %3280 = vst [vmem:[%s6 + $0x70] sm:$0xff] %v3068
  %3281 = vst [vmem:[%s6 + $0x78] sm:$0xff] %v3071
  %3282 = vst [vmem:[%s6 + $0x80] sm:$0xff] %v3076
  %3283 = vst [vmem:[%s6 + $0x88] sm:$0xff] %v3079
  %3284 = vst [vmem:[%s6 + $0x90] sm:$0xff] %v3084
  %3285 = vst [vmem:[%s6 + $0x98] sm:$0xff] %v3087
  %3286 = vst [vmem:[%s6 + $0xa0] sm:$0xff] %v3092
  %3287 = vst [vmem:[%s6 + $0xa8] sm:$0xff] %v3095
  %3288 = vst [vmem:[%s6 + $0xb0] sm:$0xff] %v3100
  %3289 = vst [vmem:[%s6 + $0xb8] sm:$0xff] %v3103
  %3290 = vst [vmem:[%s6 + $0xc0] sm:$0xff] %v3108
  %3291 = vst [vmem:[%s6 + $0xc8] sm:$0xff] %v3111
  %3292 = vst [vmem:[%s6 + $0xd0] sm:$0xff] %v3116
  %3293 = vst [vmem:[%s6 + $0xd8] sm:$0xff] %v3119
  %3294 = vst [vmem:[%s6 + $0xe0] sm:$0xff] %v3124
  %3295 = vst [vmem:[%s6 + $0xe8] sm:$0xff] %v3127
  %3296 = vst [vmem:[%s6 + $0xf0] sm:$0xff] %v3132
  %3297 = vst [vmem:[%s6 + $0xf8] sm:$0xff] %v3135
  %3298 = vst [vmem:[%s6 + $0x100] sm:$0xff] %v3140
  %3299 = vst [vmem:[%s6 + $0x108] sm:$0xff] %v3143
  %3300 = vst [vmem:[%s6 + $0x110] sm:$0xff] %v3148
  %3301 = vst [vmem:[%s6 + $0x118] sm:$0xff] %v3151
  %3302 = vst [vmem:[%s6 + $0x120] sm:$0xff] %v3156
  %3303 = vst [vmem:[%s6 + $0x128] sm:$0xff] %v3159
  %3304 = vst [vmem:[%s6 + $0x130] sm:$0xff] %v3164
  %3305 = vst [vmem:[%s6 + $0x138] sm:$0xff] %v3167
  %3306 = vst [vmem:[%s6 + $0x140] sm:$0xff] %v3172
  %3307 = vst [vmem:[%s6 + $0x148] sm:$0xff] %v3175
  %3308 = vst [vmem:[%s6 + $0x150] sm:$0xff] %v3180
  %3309 = vst [vmem:[%s6 + $0x158] sm:$0xff] %v3183
  %3310 = vst [vmem:[%s6 + $0x160] sm:$0xff] %v3188
  %3311 = vst [vmem:[%s6 + $0x168] sm:$0xff] %v3191
  %3312 = vst [vmem:[%s6 + $0x170] sm:$0xff] %v3196
  %3313 = vst [vmem:[%s6 + $0x178] sm:$0xff] %v3199
  %3314 = vst [vmem:[%s6 + $0x180] sm:$0xff] %v3204
  %3315 = vst [vmem:[%s6 + $0x188] sm:$0xff] %v3207
  %3316 = vst [vmem:[%s6 + $0x190] sm:$0xff] %v3212
  %3317 = vst [vmem:[%s6 + $0x198] sm:$0xff] %v3215
  %3318 = vst [vmem:[%s6 + $0x1a0] sm:$0xff] %v3220
  %3319 = vst [vmem:[%s6 + $0x1a8] sm:$0xff] %v3223
  %3320 = vst [vmem:[%s6 + $0x1b0] sm:$0xff] %v3228
  %3321 = vst [vmem:[%s6 + $0x1b8] sm:$0xff] %v3231
  %3322 = vst [vmem:[%s6 + $0x1c0] sm:$0xff] %v3236
  %3323 = vst [vmem:[%s6 + $0x1c8] sm:$0xff] %v3239
  %3324 = vst [vmem:[%s6 + $0x1d0] sm:$0xff] %v3244
  %3325 = vst [vmem:[%s6 + $0x1d8] sm:$0xff] %v3247
  %3326 = vst [vmem:[%s6 + $0x1e0] sm:$0xff] %v3252
  %3327 = vst [vmem:[%s6 + $0x1e8] sm:$0xff] %v3255
  %3328 = vst [vmem:[%s6 + $0x1f0] sm:$0xff] %v3260
  %3329 = vst [vmem:[%s6 + $0x1f8] sm:$0xff] %v3263
  // Predicated region
  $region26: #{water_quality_mlp_mae.1} parent=0 // pred_check
    _
  $region27: #{water_quality_mlp_mae.1} parent=0 // pred_check_branch
    %3331 = sbr.rel (0) target = $region29
  $region28: #{water_quality_mlp_mae.1} parent=0 // pred_region
    _
  $region29: #{water_quality_mlp_mae.1} parent=0 // pred_fallthru
    _
  // Predicated region
  $region30: #{water_quality_mlp_mae.1} parent=0 // pred_check
    _
  $region31: #{water_quality_mlp_mae.1} parent=0 // pred_check_branch
    %3333 = sbr.rel (0) target = $region33
  $region32: #{water_quality_mlp_mae.1} parent=0 // pred_region
    _
  $region33: #{water_quality_mlp_mae.1} parent=0 // pred_fallthru
    _

</llo_original>
